<compile_context>
chip_gen: v7x
topology: tpu7x:2x2x1
jax: 0.10.0
libtpu: 0.0.40
codegen_flags: <defaults>
</compile_context>

<pallas_src>
import numpy as np

import jax
import jax.numpy as jnp
from jax.experimental import pallas as pl
from jax.experimental.pallas import tpu as pltpu

# ----------------------------- configuration --------------------------------
B, C, IMG, PATCH = 2, 4, 16, 8
GRID_SZ = IMG // PATCH       # 2
N = GRID_SZ * GRID_SZ        # 4 patches per image
D = 32                       # embed_dim
HEADS = 4
HD = D // HEADS              # 8
T = N + 1                    # +cls token (global_pool=False)
DEPTH = 2
MLP_H = 4 * D                # mlp_ratio=4
P = C * PATCH * PATCH        # 256 = flattened patch length
EPS = 1e-6                   # timm ViT LayerNorm eps


# ------------------------- 2D sin-cos position embed -------------------------
def _get_1d_sincos(embed_dim, pos):
    omega = np.arange(embed_dim // 2, dtype=np.float64)
    omega /= embed_dim / 2.0
    omega = 1.0 / 10000 ** omega
    pos = pos.reshape(-1)
    out = np.einsum("m,d->md", pos, omega)
    return np.concatenate([np.sin(out), np.cos(out)], axis=1)


def get_2d_sincos_pos_embed(embed_dim, grid_size, cls_token=False):
    grid_h = np.arange(grid_size, dtype=np.float32)
    grid_w = np.arange(grid_size, dtype=np.float32)
    grid = np.stack(np.meshgrid(grid_w, grid_h), axis=0).reshape(
        [2, 1, grid_size, grid_size])
    emb_h = _get_1d_sincos(embed_dim // 2, grid[0])
    emb_w = _get_1d_sincos(embed_dim // 2, grid[1])
    pos = np.concatenate([emb_h, emb_w], axis=1)
    if cls_token:
        pos = np.concatenate([np.zeros([1, embed_dim]), pos], axis=0)
    return pos


# --------------------------- in-kernel math helpers --------------------------
def _erf(x):
    # Abramowitz & Stegun 7.1.26 polynomial, |err| < 1.5e-7 (matches exact-erf
    # nn.GELU to float32 precision using only exp/mul/add).
    a1, a2, a3, a4, a5 = (0.254829592, -0.284496736, 1.421413741,
                          -1.453152027, 1.061405429)
    p = 0.3275911
    s = jnp.where(x >= 0.0, 1.0, -1.0)
    ax = jnp.abs(x)
    t = 1.0 / (1.0 + p * ax)
    y = 1.0 - (((((a5 * t + a4) * t) + a3) * t + a2) * t + a1) * t * jnp.exp(-ax * ax)
    return s * y


def gelu_erf(x):
    return 0.5 * x * (1.0 + _erf(x * (1.0 / np.sqrt(2.0))))


def _layernorm(v, g, b):
    mu = jnp.mean(v, axis=-1, keepdims=True)
    var = jnp.mean((v - mu) ** 2, axis=-1, keepdims=True)
    return (v - mu) * jax.lax.rsqrt(var + EPS) * g + b


# ------------------------------- fused kernel --------------------------------
def encoder_kernel(patches_ref, pe_w_ref, add_ref,
                   g1_ref, b1_ref, wqkv_ref, bqkv_ref, wproj_ref, bproj_ref,
                   g2_ref, b2_ref, w1_ref, bf1_ref, w2_ref, bf2_ref,
                   o_ref):
    # Patch embed fused with cls prepend + pos-embed in ONE full-tile op:
    # patches row 0 is all-zero (cls slot); add_ref row 0 = cls + pos[0],
    # rows 1.. = pe_b + pos[r].
    x = jnp.dot(patches_ref[...], pe_w_ref[...],
                preferred_element_type=jnp.float32) + add_ref[...]
    # TODO(synk): pos_drop is nn.Dropout -> identity in eval mode; omitted.

    for d in range(DEPTH):                        # depth statically unrolled
        # ---- attention branch (pre-norm); 1/sqrt(HD) folded into wqkv/bqkv ----
        xn = _layernorm(x, g1_ref[d], b1_ref[d])
        qkv = jnp.dot(xn, wqkv_ref[d],
                      preferred_element_type=jnp.float32) + bqkv_ref[d]
        q_all = qkv[:, :D]                        # slice q/k/v once per layer
        k_all = qkv[:, D:2 * D]
        v_all = qkv[:, 2 * D:]
        heads = []
        for h in range(HEADS):
            q = q_all[:, h * HD:(h + 1) * HD]
            k = k_all[:, h * HD:(h + 1) * HD]
            v = v_all[:, h * HD:(h + 1) * HD]
            s = jnp.dot(q, k.T, preferred_element_type=jnp.float32)   # (T, T)
            s = s - jnp.max(s, axis=-1, keepdims=True)
            e = jnp.exp(s)
            a = e * (1.0 / jnp.sum(e, axis=-1, keepdims=True))
            heads.append(jnp.dot(a, v, preferred_element_type=jnp.float32))
        o_heads = jnp.concatenate(heads, axis=-1)                      # (T, D)
        x = x + jnp.dot(o_heads, wproj_ref[d],
                        preferred_element_type=jnp.float32) + bproj_ref[d]

        # ---- MLP branch (pre-norm) ----
        xn2 = _layernorm(x, g2_ref[d], b2_ref[d])
        h1 = gelu_erf(jnp.dot(xn2, w1_ref[d],
                              preferred_element_type=jnp.float32) + bf1_ref[d])
        x = x + jnp.dot(h1, w2_ref[d],
                        preferred_element_type=jnp.float32) + bf2_ref[d]

    o_ref[...] = x


# ------------------------------ pallas_call glue ------------------------------
def extract_patches(x):
    # NCHW -> (B, N, C*p*p) with (c, ph, pw) flatten order == Conv2d weight order
    bsz = x.shape[0]
    x = x.reshape(bsz, C, GRID_SZ, PATCH, GRID_SZ, PATCH)
    x = x.transpose(0, 2, 4, 1, 3, 5)            # (B, Gh, Gw, C, ph, pw)
    return x.reshape(bsz, N, P)


def _fixed(shape):
    zeros = (0,) * len(shape)
    return pl.BlockSpec(shape, lambda b, _z=zeros: _z)


def _per_image(shape):
    zeros = (0,) * len(shape)
    return pl.BlockSpec((None,) + shape, lambda b, _z=zeros: (b,) + _z)


def mae_encoder_forward(x, params):
    patches = extract_patches(x)                                     # (B, N, P)
    patches_ext = jnp.concatenate(
        [jnp.zeros((B, 1, P), jnp.float32), patches], axis=1)        # (B, T, P)

    pos = params["pos"]
    add = jnp.concatenate([params["cls"] + pos[0:1],
                           params["pe_b"] + pos[1:]], axis=0)        # (T, D)

    # stack per-layer weights; fold attention scale into q cols of wqkv & bqkv
    st = {k: jnp.stack([blk[k] for blk in params["blocks"]], axis=0)
          for k in params["blocks"][0]}
    scale = 1.0 / np.sqrt(HD)
    st["wqkv"] = st["wqkv"].at[:, :, :D].multiply(scale)
    st["bqkv"] = st["bqkv"].at[:, :, :D].multiply(scale)

    args = (patches_ext, params["pe_w"], add,
            st["g1"], st["b1"], st["wqkv"], st["bqkv"], st["wproj"],
            st["bproj"], st["g2"], st["b2"], st["w1"], st["bf1"],
            st["w2"], st["bf2"])

    flops = B * (2 * T * P * D
                 + DEPTH * (2 * T * D * 3 * D + HEADS * 4 * T * T * HD
                            + 2 * T * D * D + 4 * T * D * MLP_H))
    transcend = B * DEPTH * (HEADS * T * T + T * MLP_H)
    bytes_acc = sum(int(np.prod(a.shape)) * 4 for a in args) + B * T * D * 4

    out = pl.pallas_call(
        encoder_kernel,
        out_shape=jax.ShapeDtypeStruct((B, T, D), jnp.float32),
        grid=(B,),
        in_specs=[
            _per_image((T, P)),                                  # patches_ext
            _fixed((P, D)),                                      # pe_w
            _fixed((T, D)),                                      # add
            _fixed((DEPTH, 1, D)), _fixed((DEPTH, 1, D)),        # g1, b1
            _fixed((DEPTH, D, 3 * D)), _fixed((DEPTH, 1, 3 * D)),  # wqkv, bqkv
            _fixed((DEPTH, D, D)), _fixed((DEPTH, 1, D)),        # wproj, bproj
            _fixed((DEPTH, 1, D)), _fixed((DEPTH, 1, D)),        # g2, b2
            _fixed((DEPTH, D, MLP_H)), _fixed((DEPTH, 1, MLP_H)),  # w1, bf1
            _fixed((DEPTH, MLP_H, D)), _fixed((DEPTH, 1, D)),    # w2, bf2
        ],
        out_specs=_per_image((T, D)),
        compiler_params=pltpu.CompilerParams(
            dimension_semantics=("parallel",)),
        cost_estimate=pl.CostEstimate(flops=int(flops),
                                      transcendentals=int(transcend),
                                      bytes_accessed=int(bytes_acc)),
    )(*args)
    return out[:, 0], out                                            # (token, patches)


# ------------------------------ parameter init --------------------------------
def init_params(key):
    keys = jax.random.split(key, 2 + DEPTH)
    p = {
        "pe_w": jax.random.normal(keys[0], (P, D), jnp.float32) * 0.02,
        "pe_b": jnp.zeros((1, D), jnp.float32),
        "cls": jax.random.normal(keys[1], (1, D), jnp.float32) * 0.02,
        "pos": jnp.asarray(
            get_2d_sincos_pos_embed(D, GRID_SZ, cls_token=True), jnp.float32),
        "blocks": [],
    }
    for d in range(DEPTH):
        bk = jax.random.split(keys[2 + d], 4)
        p["blocks"].append(dict(
            g1=jnp.ones((1, D), jnp.float32), b1=jnp.zeros((1, D), jnp.float32),
            wqkv=jax.random.normal(bk[0], (D, 3 * D), jnp.float32) * 0.02,
            bqkv=jnp.zeros((1, 3 * D), jnp.float32),
            wproj=jax.random.normal(bk[1], (D, D), jnp.float32) * 0.02,
            bproj=jnp.zeros((1, D), jnp.float32),
            g2=jnp.ones((1, D), jnp.float32), b2=jnp.zeros((1, D), jnp.float32),
            w1=jax.random.normal(bk[2], (D, MLP_H), jnp.float32) * 0.02,
            bf1=jnp.zeros((1, MLP_H), jnp.float32),
            w2=jax.random.normal(bk[3], (MLP_H, D), jnp.float32) * 0.02,
            bf2=jnp.zeros((1, D), jnp.float32),
        ))
    return p


# --------------------------- pure-JAX reference -------------------------------
def _ref_block(h, blk):
    def ln(v, g, b):
        mu = v.mean(-1, keepdims=True)
        var = ((v - mu) ** 2).mean(-1, keepdims=True)
        return (v - mu) / jnp.sqrt(var + EPS) * g + b

    bsz = h.shape[0]
    xn = ln(h, blk["g1"][0], blk["b1"][0])
    qkv = xn @ blk["wqkv"] + blk["bqkv"][0]
    q = qkv[..., :D].reshape(bsz, T, HEADS, HD).transpose(0, 2, 1, 3)
    k = qkv[..., D:2 * D].reshape(bsz, T, HEADS, HD).transpose(0, 2, 1, 3)
    v = qkv[..., 2 * D:].reshape(bsz, T, HEADS, HD).transpose(0, 2, 1, 3)
    s = (q @ k.transpose(0, 1, 3, 2)) / np.sqrt(HD)
    a = jax.nn.softmax(s, axis=-1)
    o = (a @ v).transpose(0, 2, 1, 3).reshape(bsz, T, D)
    h = h + o @ blk["wproj"] + blk["bproj"][0]
    xn2 = ln(h, blk["g2"][0], blk["b2"][0])
    m = gelu_erf(xn2 @ blk["w1"] + blk["bf1"][0]) @ blk["w2"] + blk["bf2"][0]
    return h + m


def reference_forward(x, params):
    bsz = x.shape[0]
    patches = extract_patches(x)                                     # (B, N, P)
    emb = patches @ params["pe_w"] + params["pe_b"][0]
    cls = jnp.broadcast_to(params["cls"][None], (bsz, 1, D))
    h = jnp.concatenate([cls, emb], axis=1) + params["pos"][None]
    for blk in params["blocks"]:
        h = _ref_block(h, blk)
    return h[:, 0], h


# ----------------------------------- main -------------------------------------
if __name__ == "__main__":
    key = jax.random.PRNGKey(0)
    kx, kp = jax.random.split(key)
    x = jax.random.normal(kx, (B, C, IMG, IMG), jnp.float32)
    params = init_params(kp)

    token, patches_out = mae_encoder_forward(x, params)
    jax.block_until_ready((token, patches_out))

    ref_token, ref_patches = reference_forward(x, params)
    assert token.shape == (B, D) and patches_out.shape == (B, T, D)
    np.testing.assert_allclose(np.asarray(patches_out), np.asarray(ref_patches),
                               atol=1e-4, rtol=1e-4)
    np.testing.assert_allclose(np.asarray(token), np.asarray(ref_token),
                               atol=1e-4, rtol=1e-4)
    print("KERNEL_OK")
</pallas_src>

<mosaic_0001>
module attributes {stable_mosaic.version = 11 : i64} {
  func.func @encoder_kernel(%arg0: i32, %arg1: memref<1x5x256xf32, #tpu.memory_space<vmem>>, %arg2: memref<256x32xf32, #tpu.memory_space<vmem>>, %arg3: memref<5x32xf32, #tpu.memory_space<vmem>>, %arg4: memref<2x1x32xf32, #tpu.memory_space<vmem>>, %arg5: memref<2x1x32xf32, #tpu.memory_space<vmem>>, %arg6: memref<2x32x96xf32, #tpu.memory_space<vmem>>, %arg7: memref<2x1x96xf32, #tpu.memory_space<vmem>>, %arg8: memref<2x32x32xf32, #tpu.memory_space<vmem>>, %arg9: memref<2x1x32xf32, #tpu.memory_space<vmem>>, %arg10: memref<2x1x32xf32, #tpu.memory_space<vmem>>, %arg11: memref<2x1x32xf32, #tpu.memory_space<vmem>>, %arg12: memref<2x32x128xf32, #tpu.memory_space<vmem>>, %arg13: memref<2x1x128xf32, #tpu.memory_space<vmem>>, %arg14: memref<2x128x32xf32, #tpu.memory_space<vmem>>, %arg15: memref<2x1x32xf32, #tpu.memory_space<vmem>>, %arg16: memref<1x5x32xf32, #tpu.memory_space<vmem>>) attributes {dimension_semantics = [#tpu.dimension_semantics<parallel>], iteration_bounds = array<i64: 2>, scalar_prefetch = 0 : i64, scratch_operands = 0 : i64, tpu.core_type = #tpu.core_type<tc>, window_params = [{transform_indices = @transform_0, window_bounds = array<i64: 1, 5, 256>}, {pipeline_mode = #tpu.pipeline_mode<synchronous>, transform_indices = @transform_1, window_bounds = array<i64: 256, 32>}, {pipeline_mode = #tpu.pipeline_mode<synchronous>, transform_indices = @transform_2, window_bounds = array<i64: 5, 32>}, {pipeline_mode = #tpu.pipeline_mode<synchronous>, transform_indices = @transform_3, window_bounds = array<i64: 2, 1, 32>}, {pipeline_mode = #tpu.pipeline_mode<synchronous>, transform_indices = @transform_4, window_bounds = array<i64: 2, 1, 32>}, {pipeline_mode = #tpu.pipeline_mode<synchronous>, transform_indices = @transform_5, window_bounds = array<i64: 2, 32, 96>}, {pipeline_mode = #tpu.pipeline_mode<synchronous>, transform_indices = @transform_6, window_bounds = array<i64: 2, 1, 96>}, {pipeline_mode = #tpu.pipeline_mode<synchronous>, transform_indices = @transform_7, window_bounds = array<i64: 2, 32, 32>}, {pipeline_mode = #tpu.pipeline_mode<synchronous>, transform_indices = @transform_8, window_bounds = array<i64: 2, 1, 32>}, {pipeline_mode = #tpu.pipeline_mode<synchronous>, transform_indices = @transform_9, window_bounds = array<i64: 2, 1, 32>}, {pipeline_mode = #tpu.pipeline_mode<synchronous>, transform_indices = @transform_10, window_bounds = array<i64: 2, 1, 32>}, {pipeline_mode = #tpu.pipeline_mode<synchronous>, transform_indices = @transform_11, window_bounds = array<i64: 2, 32, 128>}, {pipeline_mode = #tpu.pipeline_mode<synchronous>, transform_indices = @transform_12, window_bounds = array<i64: 2, 1, 128>}, {pipeline_mode = #tpu.pipeline_mode<synchronous>, transform_indices = @transform_13, window_bounds = array<i64: 2, 128, 32>}, {pipeline_mode = #tpu.pipeline_mode<synchronous>, transform_indices = @transform_14, window_bounds = array<i64: 2, 1, 32>}, {transform_indices = @transform_15, window_bounds = array<i64: 1, 5, 32>}]} {
    %c0 = arith.constant 0 : index
    %c0_0 = arith.constant 0 : index
    %c0_1 = arith.constant 0 : index
    %0 = vector.load %arg1[%c0, %c0_0, %c0_1] : memref<1x5x256xf32, #tpu.memory_space<vmem>>, vector<1x5x256xf32>
    %1 = vector.shape_cast %0 : vector<1x5x256xf32> to vector<5x256xf32>
    %c0_2 = arith.constant 0 : index
    %c0_3 = arith.constant 0 : index
    %2 = vector.load %arg2[%c0_2, %c0_3] : memref<256x32xf32, #tpu.memory_space<vmem>>, vector<256x32xf32>
    %cst = arith.constant dense<0.000000e+00> : vector<5x32xf32>
    %3 = tpu.matmul %1, %2, %cst {dimension_numbers = #tpu.dot_dimension_numbers<[1], [0], [0], [1], [0, 0, 1, 1], [], []>} : vector<5x256xf32>, vector<256x32xf32>, vector<5x32xf32> -> vector<5x32xf32>
    %c0_4 = arith.constant 0 : index
    %c0_5 = arith.constant 0 : index
    %4 = vector.load %arg3[%c0_4, %c0_5] : memref<5x32xf32, #tpu.memory_space<vmem>>, vector<5x32xf32>
    %5 = arith.addf %3, %4 : vector<5x32xf32>
    %c0_6 = arith.constant 0 : index
    %c0_7 = arith.constant 0 : index
    %c0_8 = arith.constant 0 : index
    %6 = vector.load %arg4[%c0_6, %c0_7, %c0_8] : memref<2x1x32xf32, #tpu.memory_space<vmem>>, vector<1x1x32xf32>
    %7 = vector.shape_cast %6 : vector<1x1x32xf32> to vector<1x32xf32>
    %c0_9 = arith.constant 0 : index
    %c0_10 = arith.constant 0 : index
    %c0_11 = arith.constant 0 : index
    %8 = vector.load %arg5[%c0_9, %c0_10, %c0_11] : memref<2x1x32xf32, #tpu.memory_space<vmem>>, vector<1x1x32xf32>
    %9 = vector.shape_cast %8 : vector<1x1x32xf32> to vector<1x32xf32>
    %cst_12 = arith.constant dense<0.000000e+00> : vector<5xf32>
    %10 = vector.multi_reduction <add>, %5, %cst_12 [1] : vector<5x32xf32> to vector<5xf32>
    %11 = vector.shape_cast %10 : vector<5xf32> to vector<5x1xf32>
    %cst_13 = arith.constant 3.200000e+01 : f32
    %12 = vector.broadcast %cst_13 : f32 to vector<5x1xf32>
    %13 = arith.divf %11, %12 : vector<5x1xf32>
    %14 = vector.broadcast %13 : vector<5x1xf32> to vector<5x32xf32>
    %15 = arith.subf %5, %14 : vector<5x32xf32>
    %16 = arith.mulf %15, %15 : vector<5x32xf32>
    %cst_14 = arith.constant dense<0.000000e+00> : vector<5xf32>
    %17 = vector.multi_reduction <add>, %16, %cst_14 [1] : vector<5x32xf32> to vector<5xf32>
    %18 = vector.shape_cast %17 : vector<5xf32> to vector<5x1xf32>
    %cst_15 = arith.constant 3.200000e+01 : f32
    %19 = vector.broadcast %cst_15 : f32 to vector<5x1xf32>
    %20 = arith.divf %18, %19 : vector<5x1xf32>
    %21 = vector.broadcast %13 : vector<5x1xf32> to vector<5x32xf32>
    %22 = arith.subf %5, %21 : vector<5x32xf32>
    %cst_16 = arith.constant 9.99999997E-7 : f32
    %23 = vector.broadcast %cst_16 : f32 to vector<5x1xf32>
    %24 = arith.addf %20, %23 : vector<5x1xf32>
    %25 = math.rsqrt %24 : vector<5x1xf32>
    %26 = vector.broadcast %25 : vector<5x1xf32> to vector<5x32xf32>
    %27 = arith.mulf %22, %26 : vector<5x32xf32>
    %28 = vector.broadcast %7 : vector<1x32xf32> to vector<5x32xf32>
    %29 = arith.mulf %27, %28 : vector<5x32xf32>
    %30 = vector.broadcast %9 : vector<1x32xf32> to vector<5x32xf32>
    %31 = arith.addf %29, %30 : vector<5x32xf32>
    %c0_17 = arith.constant 0 : index
    %c0_18 = arith.constant 0 : index
    %c0_19 = arith.constant 0 : index
    %32 = vector.load %arg6[%c0_17, %c0_18, %c0_19] : memref<2x32x96xf32, #tpu.memory_space<vmem>>, vector<1x32x96xf32>
    %33 = vector.shape_cast %32 : vector<1x32x96xf32> to vector<32x96xf32>
    %cst_20 = arith.constant dense<0.000000e+00> : vector<5x96xf32>
    %34 = tpu.matmul %31, %33, %cst_20 {dimension_numbers = #tpu.dot_dimension_numbers<[1], [0], [0], [1], [0, 0, 1, 1], [], []>} : vector<5x32xf32>, vector<32x96xf32>, vector<5x96xf32> -> vector<5x96xf32>
    %c0_21 = arith.constant 0 : index
    %c0_22 = arith.constant 0 : index
    %c0_23 = arith.constant 0 : index
    %35 = vector.load %arg7[%c0_21, %c0_22, %c0_23] : memref<2x1x96xf32, #tpu.memory_space<vmem>>, vector<1x1x96xf32>
    %36 = vector.shape_cast %35 : vector<1x1x96xf32> to vector<1x96xf32>
    %37 = vector.broadcast %36 : vector<1x96xf32> to vector<5x96xf32>
    %38 = arith.addf %34, %37 : vector<5x96xf32>
    %39 = vector.extract_strided_slice %38 {offsets = [0, 0], sizes = [5, 32], strides = [1, 1]} : vector<5x96xf32> to vector<5x32xf32>
    %40 = vector.extract_strided_slice %38 {offsets = [0, 32], sizes = [5, 32], strides = [1, 1]} : vector<5x96xf32> to vector<5x32xf32>
    %41 = vector.extract_strided_slice %38 {offsets = [0, 64], sizes = [5, 32], strides = [1, 1]} : vector<5x96xf32> to vector<5x32xf32>
    %42 = vector.extract_strided_slice %39 {offsets = [0, 0], sizes = [5, 8], strides = [1, 1]} : vector<5x32xf32> to vector<5x8xf32>
    %43 = vector.extract_strided_slice %40 {offsets = [0, 0], sizes = [5, 8], strides = [1, 1]} : vector<5x32xf32> to vector<5x8xf32>
    %44 = vector.extract_strided_slice %41 {offsets = [0, 0], sizes = [5, 8], strides = [1, 1]} : vector<5x32xf32> to vector<5x8xf32>
    %45 = tpu.transpose %43, [1, 0] : vector<5x8xf32> -> vector<8x5xf32>
    %cst_24 = arith.constant dense<0.000000e+00> : vector<5x5xf32>
    %46 = tpu.matmul %42, %45, %cst_24 {dimension_numbers = #tpu.dot_dimension_numbers<[1], [0], [0], [1], [0, 0, 1, 1], [], []>} : vector<5x8xf32>, vector<8x5xf32>, vector<5x5xf32> -> vector<5x5xf32>
    %cst_25 = arith.constant dense<0xFF800000> : vector<5xf32>
    %47 = vector.multi_reduction <maximumf>, %46, %cst_25 [1] : vector<5x5xf32> to vector<5xf32>
    %48 = vector.shape_cast %47 : vector<5xf32> to vector<5x1xf32>
    %49 = vector.broadcast %48 : vector<5x1xf32> to vector<5x5xf32>
    %50 = arith.subf %46, %49 : vector<5x5xf32>
    %51 = math.exp %50 : vector<5x5xf32>
    %cst_26 = arith.constant dense<0.000000e+00> : vector<5xf32>
    %52 = vector.multi_reduction <add>, %51, %cst_26 [1] : vector<5x5xf32> to vector<5xf32>
    %53 = vector.shape_cast %52 : vector<5xf32> to vector<5x1xf32>
    %cst_27 = arith.constant 1.000000e+00 : f32
    %54 = vector.broadcast %cst_27 : f32 to vector<5x1xf32>
    %55 = arith.divf %54, %53 : vector<5x1xf32>
    %56 = vector.broadcast %55 : vector<5x1xf32> to vector<5x5xf32>
    %57 = arith.mulf %51, %56 : vector<5x5xf32>
    %cst_28 = arith.constant dense<0.000000e+00> : vector<5x8xf32>
    %58 = tpu.matmul %57, %44, %cst_28 {dimension_numbers = #tpu.dot_dimension_numbers<[1], [0], [0], [1], [0, 0, 1, 1], [], []>} : vector<5x5xf32>, vector<5x8xf32>, vector<5x8xf32> -> vector<5x8xf32>
    %59 = vector.extract_strided_slice %39 {offsets = [0, 8], sizes = [5, 8], strides = [1, 1]} : vector<5x32xf32> to vector<5x8xf32>
    %60 = vector.extract_strided_slice %40 {offsets = [0, 8], sizes = [5, 8], strides = [1, 1]} : vector<5x32xf32> to vector<5x8xf32>
    %61 = vector.extract_strided_slice %41 {offsets = [0, 8], sizes = [5, 8], strides = [1, 1]} : vector<5x32xf32> to vector<5x8xf32>
    %62 = tpu.transpose %60, [1, 0] : vector<5x8xf32> -> vector<8x5xf32>
    %cst_29 = arith.constant dense<0.000000e+00> : vector<5x5xf32>
    %63 = tpu.matmul %59, %62, %cst_29 {dimension_numbers = #tpu.dot_dimension_numbers<[1], [0], [0], [1], [0, 0, 1, 1], [], []>} : vector<5x8xf32>, vector<8x5xf32>, vector<5x5xf32> -> vector<5x5xf32>
    %cst_30 = arith.constant dense<0xFF800000> : vector<5xf32>
    %64 = vector.multi_reduction <maximumf>, %63, %cst_30 [1] : vector<5x5xf32> to vector<5xf32>
    %65 = vector.shape_cast %64 : vector<5xf32> to vector<5x1xf32>
    %66 = vector.broadcast %65 : vector<5x1xf32> to vector<5x5xf32>
    %67 = arith.subf %63, %66 : vector<5x5xf32>
    %68 = math.exp %67 : vector<5x5xf32>
    %cst_31 = arith.constant dense<0.000000e+00> : vector<5xf32>
    %69 = vector.multi_reduction <add>, %68, %cst_31 [1] : vector<5x5xf32> to vector<5xf32>
    %70 = vector.shape_cast %69 : vector<5xf32> to vector<5x1xf32>
    %cst_32 = arith.constant 1.000000e+00 : f32
    %71 = vector.broadcast %cst_32 : f32 to vector<5x1xf32>
    %72 = arith.divf %71, %70 : vector<5x1xf32>
    %73 = vector.broadcast %72 : vector<5x1xf32> to vector<5x5xf32>
    %74 = arith.mulf %68, %73 : vector<5x5xf32>
    %cst_33 = arith.constant dense<0.000000e+00> : vector<5x8xf32>
    %75 = tpu.matmul %74, %61, %cst_33 {dimension_numbers = #tpu.dot_dimension_numbers<[1], [0], [0], [1], [0, 0, 1, 1], [], []>} : vector<5x5xf32>, vector<5x8xf32>, vector<5x8xf32> -> vector<5x8xf32>
    %76 = vector.extract_strided_slice %39 {offsets = [0, 16], sizes = [5, 8], strides = [1, 1]} : vector<5x32xf32> to vector<5x8xf32>
    %77 = vector.extract_strided_slice %40 {offsets = [0, 16], sizes = [5, 8], strides = [1, 1]} : vector<5x32xf32> to vector<5x8xf32>
    %78 = vector.extract_strided_slice %41 {offsets = [0, 16], sizes = [5, 8], strides = [1, 1]} : vector<5x32xf32> to vector<5x8xf32>
    %79 = tpu.transpose %77, [1, 0] : vector<5x8xf32> -> vector<8x5xf32>
    %cst_34 = arith.constant dense<0.000000e+00> : vector<5x5xf32>
    %80 = tpu.matmul %76, %79, %cst_34 {dimension_numbers = #tpu.dot_dimension_numbers<[1], [0], [0], [1], [0, 0, 1, 1], [], []>} : vector<5x8xf32>, vector<8x5xf32>, vector<5x5xf32> -> vector<5x5xf32>
    %cst_35 = arith.constant dense<0xFF800000> : vector<5xf32>
    %81 = vector.multi_reduction <maximumf>, %80, %cst_35 [1] : vector<5x5xf32> to vector<5xf32>
    %82 = vector.shape_cast %81 : vector<5xf32> to vector<5x1xf32>
    %83 = vector.broadcast %82 : vector<5x1xf32> to vector<5x5xf32>
    %84 = arith.subf %80, %83 : vector<5x5xf32>
    %85 = math.exp %84 : vector<5x5xf32>
    %cst_36 = arith.constant dense<0.000000e+00> : vector<5xf32>
    %86 = vector.multi_reduction <add>, %85, %cst_36 [1] : vector<5x5xf32> to vector<5xf32>
    %87 = vector.shape_cast %86 : vector<5xf32> to vector<5x1xf32>
    %cst_37 = arith.constant 1.000000e+00 : f32
    %88 = vector.broadcast %cst_37 : f32 to vector<5x1xf32>
    %89 = arith.divf %88, %87 : vector<5x1xf32>
    %90 = vector.broadcast %89 : vector<5x1xf32> to vector<5x5xf32>
    %91 = arith.mulf %85, %90 : vector<5x5xf32>
    %cst_38 = arith.constant dense<0.000000e+00> : vector<5x8xf32>
    %92 = tpu.matmul %91, %78, %cst_38 {dimension_numbers = #tpu.dot_dimension_numbers<[1], [0], [0], [1], [0, 0, 1, 1], [], []>} : vector<5x5xf32>, vector<5x8xf32>, vector<5x8xf32> -> vector<5x8xf32>
    %93 = vector.extract_strided_slice %39 {offsets = [0, 24], sizes = [5, 8], strides = [1, 1]} : vector<5x32xf32> to vector<5x8xf32>
    %94 = vector.extract_strided_slice %40 {offsets = [0, 24], sizes = [5, 8], strides = [1, 1]} : vector<5x32xf32> to vector<5x8xf32>
    %95 = vector.extract_strided_slice %41 {offsets = [0, 24], sizes = [5, 8], strides = [1, 1]} : vector<5x32xf32> to vector<5x8xf32>
    %96 = tpu.transpose %94, [1, 0] : vector<5x8xf32> -> vector<8x5xf32>
    %cst_39 = arith.constant dense<0.000000e+00> : vector<5x5xf32>
    %97 = tpu.matmul %93, %96, %cst_39 {dimension_numbers = #tpu.dot_dimension_numbers<[1], [0], [0], [1], [0, 0, 1, 1], [], []>} : vector<5x8xf32>, vector<8x5xf32>, vector<5x5xf32> -> vector<5x5xf32>
    %cst_40 = arith.constant dense<0xFF800000> : vector<5xf32>
    %98 = vector.multi_reduction <maximumf>, %97, %cst_40 [1] : vector<5x5xf32> to vector<5xf32>
    %99 = vector.shape_cast %98 : vector<5xf32> to vector<5x1xf32>
    %100 = vector.broadcast %99 : vector<5x1xf32> to vector<5x5xf32>
    %101 = arith.subf %97, %100 : vector<5x5xf32>
    %102 = math.exp %101 : vector<5x5xf32>
    %cst_41 = arith.constant dense<0.000000e+00> : vector<5xf32>
    %103 = vector.multi_reduction <add>, %102, %cst_41 [1] : vector<5x5xf32> to vector<5xf32>
    %104 = vector.shape_cast %103 : vector<5xf32> to vector<5x1xf32>
    %cst_42 = arith.constant 1.000000e+00 : f32
    %105 = vector.broadcast %cst_42 : f32 to vector<5x1xf32>
    %106 = arith.divf %105, %104 : vector<5x1xf32>
    %107 = vector.broadcast %106 : vector<5x1xf32> to vector<5x5xf32>
    %108 = arith.mulf %102, %107 : vector<5x5xf32>
    %cst_43 = arith.constant dense<0.000000e+00> : vector<5x8xf32>
    %109 = tpu.matmul %108, %95, %cst_43 {dimension_numbers = #tpu.dot_dimension_numbers<[1], [0], [0], [1], [0, 0, 1, 1], [], []>} : vector<5x5xf32>, vector<5x8xf32>, vector<5x8xf32> -> vector<5x8xf32>
    %110 = tpu.concatenate %58, %75, %92, %109 in 1 : vector<5x8xf32>, vector<5x8xf32>, vector<5x8xf32>, vector<5x8xf32> -> vector<5x32xf32>
    %c0_44 = arith.constant 0 : index
    %c0_45 = arith.constant 0 : index
    %c0_46 = arith.constant 0 : index
    %111 = vector.load %arg8[%c0_44, %c0_45, %c0_46] : memref<2x32x32xf32, #tpu.memory_space<vmem>>, vector<1x32x32xf32>
    %112 = vector.shape_cast %111 : vector<1x32x32xf32> to vector<32x32xf32>
    %cst_47 = arith.constant dense<0.000000e+00> : vector<5x32xf32>
    %113 = tpu.matmul %110, %112, %cst_47 {dimension_numbers = #tpu.dot_dimension_numbers<[1], [0], [0], [1], [0, 0, 1, 1], [], []>} : vector<5x32xf32>, vector<32x32xf32>, vector<5x32xf32> -> vector<5x32xf32>
    %114 = arith.addf %5, %113 : vector<5x32xf32>
    %c0_48 = arith.constant 0 : index
    %c0_49 = arith.constant 0 : index
    %c0_50 = arith.constant 0 : index
    %115 = vector.load %arg9[%c0_48, %c0_49, %c0_50] : memref<2x1x32xf32, #tpu.memory_space<vmem>>, vector<1x1x32xf32>
    %116 = vector.shape_cast %115 : vector<1x1x32xf32> to vector<1x32xf32>
    %117 = vector.broadcast %116 : vector<1x32xf32> to vector<5x32xf32>
    %118 = arith.addf %114, %117 : vector<5x32xf32>
    %c0_51 = arith.constant 0 : index
    %c0_52 = arith.constant 0 : index
    %c0_53 = arith.constant 0 : index
    %119 = vector.load %arg10[%c0_51, %c0_52, %c0_53] : memref<2x1x32xf32, #tpu.memory_space<vmem>>, vector<1x1x32xf32>
    %120 = vector.shape_cast %119 : vector<1x1x32xf32> to vector<1x32xf32>
    %c0_54 = arith.constant 0 : index
    %c0_55 = arith.constant 0 : index
    %c0_56 = arith.constant 0 : index
    %121 = vector.load %arg11[%c0_54, %c0_55, %c0_56] : memref<2x1x32xf32, #tpu.memory_space<vmem>>, vector<1x1x32xf32>
    %122 = vector.shape_cast %121 : vector<1x1x32xf32> to vector<1x32xf32>
    %cst_57 = arith.constant dense<0.000000e+00> : vector<5xf32>
    %123 = vector.multi_reduction <add>, %118, %cst_57 [1] : vector<5x32xf32> to vector<5xf32>
    %124 = vector.shape_cast %123 : vector<5xf32> to vector<5x1xf32>
    %cst_58 = arith.constant 3.200000e+01 : f32
    %125 = vector.broadcast %cst_58 : f32 to vector<5x1xf32>
    %126 = arith.divf %124, %125 : vector<5x1xf32>
    %127 = vector.broadcast %126 : vector<5x1xf32> to vector<5x32xf32>
    %128 = arith.subf %118, %127 : vector<5x32xf32>
    %129 = arith.mulf %128, %128 : vector<5x32xf32>
    %cst_59 = arith.constant dense<0.000000e+00> : vector<5xf32>
    %130 = vector.multi_reduction <add>, %129, %cst_59 [1] : vector<5x32xf32> to vector<5xf32>
    %131 = vector.shape_cast %130 : vector<5xf32> to vector<5x1xf32>
    %cst_60 = arith.constant 3.200000e+01 : f32
    %132 = vector.broadcast %cst_60 : f32 to vector<5x1xf32>
    %133 = arith.divf %131, %132 : vector<5x1xf32>
    %134 = vector.broadcast %126 : vector<5x1xf32> to vector<5x32xf32>
    %135 = arith.subf %118, %134 : vector<5x32xf32>
    %cst_61 = arith.constant 9.99999997E-7 : f32
    %136 = vector.broadcast %cst_61 : f32 to vector<5x1xf32>
    %137 = arith.addf %133, %136 : vector<5x1xf32>
    %138 = math.rsqrt %137 : vector<5x1xf32>
    %139 = vector.broadcast %138 : vector<5x1xf32> to vector<5x32xf32>
    %140 = arith.mulf %135, %139 : vector<5x32xf32>
    %141 = vector.broadcast %120 : vector<1x32xf32> to vector<5x32xf32>
    %142 = arith.mulf %140, %141 : vector<5x32xf32>
    %143 = vector.broadcast %122 : vector<1x32xf32> to vector<5x32xf32>
    %144 = arith.addf %142, %143 : vector<5x32xf32>
    %c0_62 = arith.constant 0 : index
    %c0_63 = arith.constant 0 : index
    %c0_64 = arith.constant 0 : index
    %145 = vector.load %arg12[%c0_62, %c0_63, %c0_64] : memref<2x32x128xf32, #tpu.memory_space<vmem>>, vector<1x32x128xf32>
    %146 = vector.shape_cast %145 : vector<1x32x128xf32> to vector<32x128xf32>
    %cst_65 = arith.constant dense<0.000000e+00> : vector<5x128xf32>
    %147 = tpu.matmul %144, %146, %cst_65 {dimension_numbers = #tpu.dot_dimension_numbers<[1], [0], [0], [1], [0, 0, 1, 1], [], []>} : vector<5x32xf32>, vector<32x128xf32>, vector<5x128xf32> -> vector<5x128xf32>
    %c0_66 = arith.constant 0 : index
    %c0_67 = arith.constant 0 : index
    %c0_68 = arith.constant 0 : index
    %148 = vector.load %arg13[%c0_66, %c0_67, %c0_68] : memref<2x1x128xf32, #tpu.memory_space<vmem>>, vector<1x1x128xf32>
    %149 = vector.shape_cast %148 : vector<1x1x128xf32> to vector<1x128xf32>
    %150 = vector.broadcast %149 : vector<1x128xf32> to vector<5x128xf32>
    %151 = arith.addf %147, %150 : vector<5x128xf32>
    %cst_69 = arith.constant 5.000000e-01 : f32
    %152 = vector.broadcast %cst_69 : f32 to vector<5x128xf32>
    %153 = arith.mulf %152, %151 : vector<5x128xf32>
    %cst_70 = arith.constant 0.707106769 : f32
    %154 = vector.broadcast %cst_70 : f32 to vector<5x128xf32>
    %155 = arith.mulf %151, %154 : vector<5x128xf32>
    %cst_71 = arith.constant 0.000000e+00 : f32
    %156 = vector.broadcast %cst_71 : f32 to vector<5x128xf32>
    %157 = arith.cmpf oge, %155, %156 : vector<5x128xf32>
    %cst_72 = arith.constant 1.000000e+00 : f32
    %cst_73 = arith.constant -1.000000e+00 : f32
    %158 = vector.broadcast %cst_72 : f32 to vector<5x128xf32>
    %159 = vector.broadcast %cst_73 : f32 to vector<5x128xf32>
    %160 = arith.select %157, %158, %159 : vector<5x128xi1>, vector<5x128xf32>
    %161 = math.absf %155 : vector<5x128xf32>
    %cst_74 = arith.constant 0.327591091 : f32
    %162 = vector.broadcast %cst_74 : f32 to vector<5x128xf32>
    %163 = arith.mulf %162, %161 : vector<5x128xf32>
    %cst_75 = arith.constant 1.000000e+00 : f32
    %164 = vector.broadcast %cst_75 : f32 to vector<5x128xf32>
    %165 = arith.addf %164, %163 : vector<5x128xf32>
    %cst_76 = arith.constant 1.000000e+00 : f32
    %166 = vector.broadcast %cst_76 : f32 to vector<5x128xf32>
    %167 = arith.divf %166, %165 : vector<5x128xf32>
    %cst_77 = arith.constant 1.06140542 : f32
    %168 = vector.broadcast %cst_77 : f32 to vector<5x128xf32>
    %169 = arith.mulf %168, %167 : vector<5x128xf32>
    %cst_78 = arith.constant -1.45315206 : f32
    %170 = vector.broadcast %cst_78 : f32 to vector<5x128xf32>
    %171 = arith.addf %169, %170 : vector<5x128xf32>
    %172 = arith.mulf %171, %167 : vector<5x128xf32>
    %cst_79 = arith.constant 1.42141378 : f32
    %173 = vector.broadcast %cst_79 : f32 to vector<5x128xf32>
    %174 = arith.addf %172, %173 : vector<5x128xf32>
    %175 = arith.mulf %174, %167 : vector<5x128xf32>
    %cst_80 = arith.constant -0.284496725 : f32
    %176 = vector.broadcast %cst_80 : f32 to vector<5x128xf32>
    %177 = arith.addf %175, %176 : vector<5x128xf32>
    %178 = arith.mulf %177, %167 : vector<5x128xf32>
    %cst_81 = arith.constant 0.254829586 : f32
    %179 = vector.broadcast %cst_81 : f32 to vector<5x128xf32>
    %180 = arith.addf %178, %179 : vector<5x128xf32>
    %181 = arith.mulf %180, %167 : vector<5x128xf32>
    %cst_82 = arith.constant 0.000000e+00 : f32
    %182 = vector.broadcast %cst_82 : f32 to vector<5x128xf32>
    %183 = arith.subf %182, %161 : vector<5x128xf32>
    %184 = arith.mulf %183, %161 : vector<5x128xf32>
    %185 = math.exp %184 : vector<5x128xf32>
    %186 = arith.mulf %181, %185 : vector<5x128xf32>
    %cst_83 = arith.constant 1.000000e+00 : f32
    %187 = vector.broadcast %cst_83 : f32 to vector<5x128xf32>
    %188 = arith.subf %187, %186 : vector<5x128xf32>
    %189 = arith.mulf %160, %188 : vector<5x128xf32>
    %cst_84 = arith.constant 1.000000e+00 : f32
    %190 = vector.broadcast %cst_84 : f32 to vector<5x128xf32>
    %191 = arith.addf %190, %189 : vector<5x128xf32>
    %192 = arith.mulf %153, %191 : vector<5x128xf32>
    %c0_85 = arith.constant 0 : index
    %c0_86 = arith.constant 0 : index
    %c0_87 = arith.constant 0 : index
    %193 = vector.load %arg14[%c0_85, %c0_86, %c0_87] : memref<2x128x32xf32, #tpu.memory_space<vmem>>, vector<1x128x32xf32>
    %194 = vector.shape_cast %193 : vector<1x128x32xf32> to vector<128x32xf32>
    %cst_88 = arith.constant dense<0.000000e+00> : vector<5x32xf32>
    %195 = tpu.matmul %192, %194, %cst_88 {dimension_numbers = #tpu.dot_dimension_numbers<[1], [0], [0], [1], [0, 0, 1, 1], [], []>} : vector<5x128xf32>, vector<128x32xf32>, vector<5x32xf32> -> vector<5x32xf32>
    %196 = arith.addf %118, %195 : vector<5x32xf32>
    %c0_89 = arith.constant 0 : index
    %c0_90 = arith.constant 0 : index
    %c0_91 = arith.constant 0 : index
    %197 = vector.load %arg15[%c0_89, %c0_90, %c0_91] : memref<2x1x32xf32, #tpu.memory_space<vmem>>, vector<1x1x32xf32>
    %198 = vector.shape_cast %197 : vector<1x1x32xf32> to vector<1x32xf32>
    %199 = vector.broadcast %198 : vector<1x32xf32> to vector<5x32xf32>
    %200 = arith.addf %196, %199 : vector<5x32xf32>
    %c1 = arith.constant 1 : index
    %c0_92 = arith.constant 0 : index
    %c0_93 = arith.constant 0 : index
    %201 = vector.load %arg4[%c1, %c0_92, %c0_93] : memref<2x1x32xf32, #tpu.memory_space<vmem>>, vector<1x1x32xf32>
    %202 = vector.shape_cast %201 : vector<1x1x32xf32> to vector<1x32xf32>
    %c1_94 = arith.constant 1 : index
    %c0_95 = arith.constant 0 : index
    %c0_96 = arith.constant 0 : index
    %203 = vector.load %arg5[%c1_94, %c0_95, %c0_96] : memref<2x1x32xf32, #tpu.memory_space<vmem>>, vector<1x1x32xf32>
    %204 = vector.shape_cast %203 : vector<1x1x32xf32> to vector<1x32xf32>
    %cst_97 = arith.constant dense<0.000000e+00> : vector<5xf32>
    %205 = vector.multi_reduction <add>, %200, %cst_97 [1] : vector<5x32xf32> to vector<5xf32>
    %206 = vector.shape_cast %205 : vector<5xf32> to vector<5x1xf32>
    %cst_98 = arith.constant 3.200000e+01 : f32
    %207 = vector.broadcast %cst_98 : f32 to vector<5x1xf32>
    %208 = arith.divf %206, %207 : vector<5x1xf32>
    %209 = vector.broadcast %208 : vector<5x1xf32> to vector<5x32xf32>
    %210 = arith.subf %200, %209 : vector<5x32xf32>
    %211 = arith.mulf %210, %210 : vector<5x32xf32>
    %cst_99 = arith.constant dense<0.000000e+00> : vector<5xf32>
    %212 = vector.multi_reduction <add>, %211, %cst_99 [1] : vector<5x32xf32> to vector<5xf32>
    %213 = vector.shape_cast %212 : vector<5xf32> to vector<5x1xf32>
    %cst_100 = arith.constant 3.200000e+01 : f32
    %214 = vector.broadcast %cst_100 : f32 to vector<5x1xf32>
    %215 = arith.divf %213, %214 : vector<5x1xf32>
    %216 = vector.broadcast %208 : vector<5x1xf32> to vector<5x32xf32>
    %217 = arith.subf %200, %216 : vector<5x32xf32>
    %cst_101 = arith.constant 9.99999997E-7 : f32
    %218 = vector.broadcast %cst_101 : f32 to vector<5x1xf32>
    %219 = arith.addf %215, %218 : vector<5x1xf32>
    %220 = math.rsqrt %219 : vector<5x1xf32>
    %221 = vector.broadcast %220 : vector<5x1xf32> to vector<5x32xf32>
    %222 = arith.mulf %217, %221 : vector<5x32xf32>
    %223 = vector.broadcast %202 : vector<1x32xf32> to vector<5x32xf32>
    %224 = arith.mulf %222, %223 : vector<5x32xf32>
    %225 = vector.broadcast %204 : vector<1x32xf32> to vector<5x32xf32>
    %226 = arith.addf %224, %225 : vector<5x32xf32>
    %c1_102 = arith.constant 1 : index
    %c0_103 = arith.constant 0 : index
    %c0_104 = arith.constant 0 : index
    %227 = vector.load %arg6[%c1_102, %c0_103, %c0_104] : memref<2x32x96xf32, #tpu.memory_space<vmem>>, vector<1x32x96xf32>
    %228 = vector.shape_cast %227 : vector<1x32x96xf32> to vector<32x96xf32>
    %cst_105 = arith.constant dense<0.000000e+00> : vector<5x96xf32>
    %229 = tpu.matmul %226, %228, %cst_105 {dimension_numbers = #tpu.dot_dimension_numbers<[1], [0], [0], [1], [0, 0, 1, 1], [], []>} : vector<5x32xf32>, vector<32x96xf32>, vector<5x96xf32> -> vector<5x96xf32>
    %c1_106 = arith.constant 1 : index
    %c0_107 = arith.constant 0 : index
    %c0_108 = arith.constant 0 : index
    %230 = vector.load %arg7[%c1_106, %c0_107, %c0_108] : memref<2x1x96xf32, #tpu.memory_space<vmem>>, vector<1x1x96xf32>
    %231 = vector.shape_cast %230 : vector<1x1x96xf32> to vector<1x96xf32>
    %232 = vector.broadcast %231 : vector<1x96xf32> to vector<5x96xf32>
    %233 = arith.addf %229, %232 : vector<5x96xf32>
    %234 = vector.extract_strided_slice %233 {offsets = [0, 0], sizes = [5, 32], strides = [1, 1]} : vector<5x96xf32> to vector<5x32xf32>
    %235 = vector.extract_strided_slice %233 {offsets = [0, 32], sizes = [5, 32], strides = [1, 1]} : vector<5x96xf32> to vector<5x32xf32>
    %236 = vector.extract_strided_slice %233 {offsets = [0, 64], sizes = [5, 32], strides = [1, 1]} : vector<5x96xf32> to vector<5x32xf32>
    %237 = vector.extract_strided_slice %234 {offsets = [0, 0], sizes = [5, 8], strides = [1, 1]} : vector<5x32xf32> to vector<5x8xf32>
    %238 = vector.extract_strided_slice %235 {offsets = [0, 0], sizes = [5, 8], strides = [1, 1]} : vector<5x32xf32> to vector<5x8xf32>
    %239 = vector.extract_strided_slice %236 {offsets = [0, 0], sizes = [5, 8], strides = [1, 1]} : vector<5x32xf32> to vector<5x8xf32>
    %240 = tpu.transpose %238, [1, 0] : vector<5x8xf32> -> vector<8x5xf32>
    %cst_109 = arith.constant dense<0.000000e+00> : vector<5x5xf32>
    %241 = tpu.matmul %237, %240, %cst_109 {dimension_numbers = #tpu.dot_dimension_numbers<[1], [0], [0], [1], [0, 0, 1, 1], [], []>} : vector<5x8xf32>, vector<8x5xf32>, vector<5x5xf32> -> vector<5x5xf32>
    %cst_110 = arith.constant dense<0xFF800000> : vector<5xf32>
    %242 = vector.multi_reduction <maximumf>, %241, %cst_110 [1] : vector<5x5xf32> to vector<5xf32>
    %243 = vector.shape_cast %242 : vector<5xf32> to vector<5x1xf32>
    %244 = vector.broadcast %243 : vector<5x1xf32> to vector<5x5xf32>
    %245 = arith.subf %241, %244 : vector<5x5xf32>
    %246 = math.exp %245 : vector<5x5xf32>
    %cst_111 = arith.constant dense<0.000000e+00> : vector<5xf32>
    %247 = vector.multi_reduction <add>, %246, %cst_111 [1] : vector<5x5xf32> to vector<5xf32>
    %248 = vector.shape_cast %247 : vector<5xf32> to vector<5x1xf32>
    %cst_112 = arith.constant 1.000000e+00 : f32
    %249 = vector.broadcast %cst_112 : f32 to vector<5x1xf32>
    %250 = arith.divf %249, %248 : vector<5x1xf32>
    %251 = vector.broadcast %250 : vector<5x1xf32> to vector<5x5xf32>
    %252 = arith.mulf %246, %251 : vector<5x5xf32>
    %cst_113 = arith.constant dense<0.000000e+00> : vector<5x8xf32>
    %253 = tpu.matmul %252, %239, %cst_113 {dimension_numbers = #tpu.dot_dimension_numbers<[1], [0], [0], [1], [0, 0, 1, 1], [], []>} : vector<5x5xf32>, vector<5x8xf32>, vector<5x8xf32> -> vector<5x8xf32>
    %254 = vector.extract_strided_slice %234 {offsets = [0, 8], sizes = [5, 8], strides = [1, 1]} : vector<5x32xf32> to vector<5x8xf32>
    %255 = vector.extract_strided_slice %235 {offsets = [0, 8], sizes = [5, 8], strides = [1, 1]} : vector<5x32xf32> to vector<5x8xf32>
    %256 = vector.extract_strided_slice %236 {offsets = [0, 8], sizes = [5, 8], strides = [1, 1]} : vector<5x32xf32> to vector<5x8xf32>
    %257 = tpu.transpose %255, [1, 0] : vector<5x8xf32> -> vector<8x5xf32>
    %cst_114 = arith.constant dense<0.000000e+00> : vector<5x5xf32>
    %258 = tpu.matmul %254, %257, %cst_114 {dimension_numbers = #tpu.dot_dimension_numbers<[1], [0], [0], [1], [0, 0, 1, 1], [], []>} : vector<5x8xf32>, vector<8x5xf32>, vector<5x5xf32> -> vector<5x5xf32>
    %cst_115 = arith.constant dense<0xFF800000> : vector<5xf32>
    %259 = vector.multi_reduction <maximumf>, %258, %cst_115 [1] : vector<5x5xf32> to vector<5xf32>
    %260 = vector.shape_cast %259 : vector<5xf32> to vector<5x1xf32>
    %261 = vector.broadcast %260 : vector<5x1xf32> to vector<5x5xf32>
    %262 = arith.subf %258, %261 : vector<5x5xf32>
    %263 = math.exp %262 : vector<5x5xf32>
    %cst_116 = arith.constant dense<0.000000e+00> : vector<5xf32>
    %264 = vector.multi_reduction <add>, %263, %cst_116 [1] : vector<5x5xf32> to vector<5xf32>
    %265 = vector.shape_cast %264 : vector<5xf32> to vector<5x1xf32>
    %cst_117 = arith.constant 1.000000e+00 : f32
    %266 = vector.broadcast %cst_117 : f32 to vector<5x1xf32>
    %267 = arith.divf %266, %265 : vector<5x1xf32>
    %268 = vector.broadcast %267 : vector<5x1xf32> to vector<5x5xf32>
    %269 = arith.mulf %263, %268 : vector<5x5xf32>
    %cst_118 = arith.constant dense<0.000000e+00> : vector<5x8xf32>
    %270 = tpu.matmul %269, %256, %cst_118 {dimension_numbers = #tpu.dot_dimension_numbers<[1], [0], [0], [1], [0, 0, 1, 1], [], []>} : vector<5x5xf32>, vector<5x8xf32>, vector<5x8xf32> -> vector<5x8xf32>
    %271 = vector.extract_strided_slice %234 {offsets = [0, 16], sizes = [5, 8], strides = [1, 1]} : vector<5x32xf32> to vector<5x8xf32>
    %272 = vector.extract_strided_slice %235 {offsets = [0, 16], sizes = [5, 8], strides = [1, 1]} : vector<5x32xf32> to vector<5x8xf32>
    %273 = vector.extract_strided_slice %236 {offsets = [0, 16], sizes = [5, 8], strides = [1, 1]} : vector<5x32xf32> to vector<5x8xf32>
    %274 = tpu.transpose %272, [1, 0] : vector<5x8xf32> -> vector<8x5xf32>
    %cst_119 = arith.constant dense<0.000000e+00> : vector<5x5xf32>
    %275 = tpu.matmul %271, %274, %cst_119 {dimension_numbers = #tpu.dot_dimension_numbers<[1], [0], [0], [1], [0, 0, 1, 1], [], []>} : vector<5x8xf32>, vector<8x5xf32>, vector<5x5xf32> -> vector<5x5xf32>
    %cst_120 = arith.constant dense<0xFF800000> : vector<5xf32>
    %276 = vector.multi_reduction <maximumf>, %275, %cst_120 [1] : vector<5x5xf32> to vector<5xf32>
    %277 = vector.shape_cast %276 : vector<5xf32> to vector<5x1xf32>
    %278 = vector.broadcast %277 : vector<5x1xf32> to vector<5x5xf32>
    %279 = arith.subf %275, %278 : vector<5x5xf32>
    %280 = math.exp %279 : vector<5x5xf32>
    %cst_121 = arith.constant dense<0.000000e+00> : vector<5xf32>
    %281 = vector.multi_reduction <add>, %280, %cst_121 [1] : vector<5x5xf32> to vector<5xf32>
    %282 = vector.shape_cast %281 : vector<5xf32> to vector<5x1xf32>
    %cst_122 = arith.constant 1.000000e+00 : f32
    %283 = vector.broadcast %cst_122 : f32 to vector<5x1xf32>
    %284 = arith.divf %283, %282 : vector<5x1xf32>
    %285 = vector.broadcast %284 : vector<5x1xf32> to vector<5x5xf32>
    %286 = arith.mulf %280, %285 : vector<5x5xf32>
    %cst_123 = arith.constant dense<0.000000e+00> : vector<5x8xf32>
    %287 = tpu.matmul %286, %273, %cst_123 {dimension_numbers = #tpu.dot_dimension_numbers<[1], [0], [0], [1], [0, 0, 1, 1], [], []>} : vector<5x5xf32>, vector<5x8xf32>, vector<5x8xf32> -> vector<5x8xf32>
    %288 = vector.extract_strided_slice %234 {offsets = [0, 24], sizes = [5, 8], strides = [1, 1]} : vector<5x32xf32> to vector<5x8xf32>
    %289 = vector.extract_strided_slice %235 {offsets = [0, 24], sizes = [5, 8], strides = [1, 1]} : vector<5x32xf32> to vector<5x8xf32>
    %290 = vector.extract_strided_slice %236 {offsets = [0, 24], sizes = [5, 8], strides = [1, 1]} : vector<5x32xf32> to vector<5x8xf32>
    %291 = tpu.transpose %289, [1, 0] : vector<5x8xf32> -> vector<8x5xf32>
    %cst_124 = arith.constant dense<0.000000e+00> : vector<5x5xf32>
    %292 = tpu.matmul %288, %291, %cst_124 {dimension_numbers = #tpu.dot_dimension_numbers<[1], [0], [0], [1], [0, 0, 1, 1], [], []>} : vector<5x8xf32>, vector<8x5xf32>, vector<5x5xf32> -> vector<5x5xf32>
    %cst_125 = arith.constant dense<0xFF800000> : vector<5xf32>
    %293 = vector.multi_reduction <maximumf>, %292, %cst_125 [1] : vector<5x5xf32> to vector<5xf32>
    %294 = vector.shape_cast %293 : vector<5xf32> to vector<5x1xf32>
    %295 = vector.broadcast %294 : vector<5x1xf32> to vector<5x5xf32>
    %296 = arith.subf %292, %295 : vector<5x5xf32>
    %297 = math.exp %296 : vector<5x5xf32>
    %cst_126 = arith.constant dense<0.000000e+00> : vector<5xf32>
    %298 = vector.multi_reduction <add>, %297, %cst_126 [1] : vector<5x5xf32> to vector<5xf32>
    %299 = vector.shape_cast %298 : vector<5xf32> to vector<5x1xf32>
    %cst_127 = arith.constant 1.000000e+00 : f32
    %300 = vector.broadcast %cst_127 : f32 to vector<5x1xf32>
    %301 = arith.divf %300, %299 : vector<5x1xf32>
    %302 = vector.broadcast %301 : vector<5x1xf32> to vector<5x5xf32>
    %303 = arith.mulf %297, %302 : vector<5x5xf32>
    %cst_128 = arith.constant dense<0.000000e+00> : vector<5x8xf32>
    %304 = tpu.matmul %303, %290, %cst_128 {dimension_numbers = #tpu.dot_dimension_numbers<[1], [0], [0], [1], [0, 0, 1, 1], [], []>} : vector<5x5xf32>, vector<5x8xf32>, vector<5x8xf32> -> vector<5x8xf32>
    %305 = tpu.concatenate %253, %270, %287, %304 in 1 : vector<5x8xf32>, vector<5x8xf32>, vector<5x8xf32>, vector<5x8xf32> -> vector<5x32xf32>
    %c1_129 = arith.constant 1 : index
    %c0_130 = arith.constant 0 : index
    %c0_131 = arith.constant 0 : index
    %306 = vector.load %arg8[%c1_129, %c0_130, %c0_131] : memref<2x32x32xf32, #tpu.memory_space<vmem>>, vector<1x32x32xf32>
    %307 = vector.shape_cast %306 : vector<1x32x32xf32> to vector<32x32xf32>
    %cst_132 = arith.constant dense<0.000000e+00> : vector<5x32xf32>
    %308 = tpu.matmul %305, %307, %cst_132 {dimension_numbers = #tpu.dot_dimension_numbers<[1], [0], [0], [1], [0, 0, 1, 1], [], []>} : vector<5x32xf32>, vector<32x32xf32>, vector<5x32xf32> -> vector<5x32xf32>
    %309 = arith.addf %200, %308 : vector<5x32xf32>
    %c1_133 = arith.constant 1 : index
    %c0_134 = arith.constant 0 : index
    %c0_135 = arith.constant 0 : index
    %310 = vector.load %arg9[%c1_133, %c0_134, %c0_135] : memref<2x1x32xf32, #tpu.memory_space<vmem>>, vector<1x1x32xf32>
    %311 = vector.shape_cast %310 : vector<1x1x32xf32> to vector<1x32xf32>
    %312 = vector.broadcast %311 : vector<1x32xf32> to vector<5x32xf32>
    %313 = arith.addf %309, %312 : vector<5x32xf32>
    %c1_136 = arith.constant 1 : index
    %c0_137 = arith.constant 0 : index
    %c0_138 = arith.constant 0 : index
    %314 = vector.load %arg10[%c1_136, %c0_137, %c0_138] : memref<2x1x32xf32, #tpu.memory_space<vmem>>, vector<1x1x32xf32>
    %315 = vector.shape_cast %314 : vector<1x1x32xf32> to vector<1x32xf32>
    %c1_139 = arith.constant 1 : index
    %c0_140 = arith.constant 0 : index
    %c0_141 = arith.constant 0 : index
    %316 = vector.load %arg11[%c1_139, %c0_140, %c0_141] : memref<2x1x32xf32, #tpu.memory_space<vmem>>, vector<1x1x32xf32>
    %317 = vector.shape_cast %316 : vector<1x1x32xf32> to vector<1x32xf32>
    %cst_142 = arith.constant dense<0.000000e+00> : vector<5xf32>
    %318 = vector.multi_reduction <add>, %313, %cst_142 [1] : vector<5x32xf32> to vector<5xf32>
    %319 = vector.shape_cast %318 : vector<5xf32> to vector<5x1xf32>
    %cst_143 = arith.constant 3.200000e+01 : f32
    %320 = vector.broadcast %cst_143 : f32 to vector<5x1xf32>
    %321 = arith.divf %319, %320 : vector<5x1xf32>
    %322 = vector.broadcast %321 : vector<5x1xf32> to vector<5x32xf32>
    %323 = arith.subf %313, %322 : vector<5x32xf32>
    %324 = arith.mulf %323, %323 : vector<5x32xf32>
    %cst_144 = arith.constant dense<0.000000e+00> : vector<5xf32>
    %325 = vector.multi_reduction <add>, %324, %cst_144 [1] : vector<5x32xf32> to vector<5xf32>
    %326 = vector.shape_cast %325 : vector<5xf32> to vector<5x1xf32>
    %cst_145 = arith.constant 3.200000e+01 : f32
    %327 = vector.broadcast %cst_145 : f32 to vector<5x1xf32>
    %328 = arith.divf %326, %327 : vector<5x1xf32>
    %329 = vector.broadcast %321 : vector<5x1xf32> to vector<5x32xf32>
    %330 = arith.subf %313, %329 : vector<5x32xf32>
    %cst_146 = arith.constant 9.99999997E-7 : f32
    %331 = vector.broadcast %cst_146 : f32 to vector<5x1xf32>
    %332 = arith.addf %328, %331 : vector<5x1xf32>
    %333 = math.rsqrt %332 : vector<5x1xf32>
    %334 = vector.broadcast %333 : vector<5x1xf32> to vector<5x32xf32>
    %335 = arith.mulf %330, %334 : vector<5x32xf32>
    %336 = vector.broadcast %315 : vector<1x32xf32> to vector<5x32xf32>
    %337 = arith.mulf %335, %336 : vector<5x32xf32>
    %338 = vector.broadcast %317 : vector<1x32xf32> to vector<5x32xf32>
    %339 = arith.addf %337, %338 : vector<5x32xf32>
    %c1_147 = arith.constant 1 : index
    %c0_148 = arith.constant 0 : index
    %c0_149 = arith.constant 0 : index
    %340 = vector.load %arg12[%c1_147, %c0_148, %c0_149] : memref<2x32x128xf32, #tpu.memory_space<vmem>>, vector<1x32x128xf32>
    %341 = vector.shape_cast %340 : vector<1x32x128xf32> to vector<32x128xf32>
    %cst_150 = arith.constant dense<0.000000e+00> : vector<5x128xf32>
    %342 = tpu.matmul %339, %341, %cst_150 {dimension_numbers = #tpu.dot_dimension_numbers<[1], [0], [0], [1], [0, 0, 1, 1], [], []>} : vector<5x32xf32>, vector<32x128xf32>, vector<5x128xf32> -> vector<5x128xf32>
    %c1_151 = arith.constant 1 : index
    %c0_152 = arith.constant 0 : index
    %c0_153 = arith.constant 0 : index
    %343 = vector.load %arg13[%c1_151, %c0_152, %c0_153] : memref<2x1x128xf32, #tpu.memory_space<vmem>>, vector<1x1x128xf32>
    %344 = vector.shape_cast %343 : vector<1x1x128xf32> to vector<1x128xf32>
    %345 = vector.broadcast %344 : vector<1x128xf32> to vector<5x128xf32>
    %346 = arith.addf %342, %345 : vector<5x128xf32>
    %cst_154 = arith.constant 5.000000e-01 : f32
    %347 = vector.broadcast %cst_154 : f32 to vector<5x128xf32>
    %348 = arith.mulf %347, %346 : vector<5x128xf32>
    %cst_155 = arith.constant 0.707106769 : f32
    %349 = vector.broadcast %cst_155 : f32 to vector<5x128xf32>
    %350 = arith.mulf %346, %349 : vector<5x128xf32>
    %cst_156 = arith.constant 0.000000e+00 : f32
    %351 = vector.broadcast %cst_156 : f32 to vector<5x128xf32>
    %352 = arith.cmpf oge, %350, %351 : vector<5x128xf32>
    %cst_157 = arith.constant 1.000000e+00 : f32
    %cst_158 = arith.constant -1.000000e+00 : f32
    %353 = vector.broadcast %cst_157 : f32 to vector<5x128xf32>
    %354 = vector.broadcast %cst_158 : f32 to vector<5x128xf32>
    %355 = arith.select %352, %353, %354 : vector<5x128xi1>, vector<5x128xf32>
    %356 = math.absf %350 : vector<5x128xf32>
    %cst_159 = arith.constant 0.327591091 : f32
    %357 = vector.broadcast %cst_159 : f32 to vector<5x128xf32>
    %358 = arith.mulf %357, %356 : vector<5x128xf32>
    %cst_160 = arith.constant 1.000000e+00 : f32
    %359 = vector.broadcast %cst_160 : f32 to vector<5x128xf32>
    %360 = arith.addf %359, %358 : vector<5x128xf32>
    %cst_161 = arith.constant 1.000000e+00 : f32
    %361 = vector.broadcast %cst_161 : f32 to vector<5x128xf32>
    %362 = arith.divf %361, %360 : vector<5x128xf32>
    %cst_162 = arith.constant 1.06140542 : f32
    %363 = vector.broadcast %cst_162 : f32 to vector<5x128xf32>
    %364 = arith.mulf %363, %362 : vector<5x128xf32>
    %cst_163 = arith.constant -1.45315206 : f32
    %365 = vector.broadcast %cst_163 : f32 to vector<5x128xf32>
    %366 = arith.addf %364, %365 : vector<5x128xf32>
    %367 = arith.mulf %366, %362 : vector<5x128xf32>
    %cst_164 = arith.constant 1.42141378 : f32
    %368 = vector.broadcast %cst_164 : f32 to vector<5x128xf32>
    %369 = arith.addf %367, %368 : vector<5x128xf32>
    %370 = arith.mulf %369, %362 : vector<5x128xf32>
    %cst_165 = arith.constant -0.284496725 : f32
    %371 = vector.broadcast %cst_165 : f32 to vector<5x128xf32>
    %372 = arith.addf %370, %371 : vector<5x128xf32>
    %373 = arith.mulf %372, %362 : vector<5x128xf32>
    %cst_166 = arith.constant 0.254829586 : f32
    %374 = vector.broadcast %cst_166 : f32 to vector<5x128xf32>
    %375 = arith.addf %373, %374 : vector<5x128xf32>
    %376 = arith.mulf %375, %362 : vector<5x128xf32>
    %cst_167 = arith.constant 0.000000e+00 : f32
    %377 = vector.broadcast %cst_167 : f32 to vector<5x128xf32>
    %378 = arith.subf %377, %356 : vector<5x128xf32>
    %379 = arith.mulf %378, %356 : vector<5x128xf32>
    %380 = math.exp %379 : vector<5x128xf32>
    %381 = arith.mulf %376, %380 : vector<5x128xf32>
    %cst_168 = arith.constant 1.000000e+00 : f32
    %382 = vector.broadcast %cst_168 : f32 to vector<5x128xf32>
    %383 = arith.subf %382, %381 : vector<5x128xf32>
    %384 = arith.mulf %355, %383 : vector<5x128xf32>
    %cst_169 = arith.constant 1.000000e+00 : f32
    %385 = vector.broadcast %cst_169 : f32 to vector<5x128xf32>
    %386 = arith.addf %385, %384 : vector<5x128xf32>
    %387 = arith.mulf %348, %386 : vector<5x128xf32>
    %c1_170 = arith.constant 1 : index
    %c0_171 = arith.constant 0 : index
    %c0_172 = arith.constant 0 : index
    %388 = vector.load %arg14[%c1_170, %c0_171, %c0_172] : memref<2x128x32xf32, #tpu.memory_space<vmem>>, vector<1x128x32xf32>
    %389 = vector.shape_cast %388 : vector<1x128x32xf32> to vector<128x32xf32>
    %cst_173 = arith.constant dense<0.000000e+00> : vector<5x32xf32>
    %390 = tpu.matmul %387, %389, %cst_173 {dimension_numbers = #tpu.dot_dimension_numbers<[1], [0], [0], [1], [0, 0, 1, 1], [], []>} : vector<5x128xf32>, vector<128x32xf32>, vector<5x32xf32> -> vector<5x32xf32>
    %391 = arith.addf %313, %390 : vector<5x32xf32>
    %c1_174 = arith.constant 1 : index
    %c0_175 = arith.constant 0 : index
    %c0_176 = arith.constant 0 : index
    %392 = vector.load %arg15[%c1_174, %c0_175, %c0_176] : memref<2x1x32xf32, #tpu.memory_space<vmem>>, vector<1x1x32xf32>
    %393 = vector.shape_cast %392 : vector<1x1x32xf32> to vector<1x32xf32>
    %394 = vector.broadcast %393 : vector<1x32xf32> to vector<5x32xf32>
    %395 = arith.addf %391, %394 : vector<5x32xf32>
    %c0_177 = arith.constant 0 : index
    %c0_178 = arith.constant 0 : index
    %c0_179 = arith.constant 0 : index
    %396 = vector.load %arg16[%c0_177, %c0_178, %c0_179] : memref<1x5x32xf32, #tpu.memory_space<vmem>>, vector<1x5x32xf32>
    %397 = vector.shape_cast %396 : vector<1x5x32xf32> to vector<5x32xf32>
    %398 = vector.shape_cast %395 : vector<5x32xf32> to vector<1x5x32xf32>
    tpu.vector_store %arg16[%c0_177, %c0_178, %c0_179], %398 {strides = array<i32>} : memref<1x5x32xf32, #tpu.memory_space<vmem>>, vector<1x5x32xf32>,
    return
  }
  func.func @transform_0(%arg0: i32) -> (i32, i32, i32) {
    %c0_i32 = arith.constant 0 : i32
    %c0_i32_0 = arith.constant 0 : i32
    %c0_i32_1 = arith.constant 0 : i32
    return %arg0, %c0_i32, %c0_i32_0 : i32, i32, i32
  }
  func.func @transform_1(%arg0: i32) -> (i32, i32) {
    %c0_i32 = arith.constant 0 : i32
    %c0_i32_0 = arith.constant 0 : i32
    %c0_i32_1 = arith.constant 0 : i32
    return %c0_i32, %c0_i32_0 : i32, i32
  }
  func.func @transform_2(%arg0: i32) -> (i32, i32) {
    %c0_i32 = arith.constant 0 : i32
    %c0_i32_0 = arith.constant 0 : i32
    %c0_i32_1 = arith.constant 0 : i32
    return %c0_i32, %c0_i32_0 : i32, i32
  }
  func.func @transform_3(%arg0: i32) -> (i32, i32, i32) {
    %c0_i32 = arith.constant 0 : i32
    %c0_i32_0 = arith.constant 0 : i32
    %c0_i32_1 = arith.constant 0 : i32
    %c0_i32_2 = arith.constant 0 : i32
    return %c0_i32, %c0_i32_0, %c0_i32_1 : i32, i32, i32
  }
  func.func @transform_4(%arg0: i32) -> (i32, i32, i32) {
    %c0_i32 = arith.constant 0 : i32
    %c0_i32_0 = arith.constant 0 : i32
    %c0_i32_1 = arith.constant 0 : i32
    %c0_i32_2 = arith.constant 0 : i32
    return %c0_i32, %c0_i32_0, %c0_i32_1 : i32, i32, i32
  }
  func.func @transform_5(%arg0: i32) -> (i32, i32, i32) {
    %c0_i32 = arith.constant 0 : i32
    %c0_i32_0 = arith.constant 0 : i32
    %c0_i32_1 = arith.constant 0 : i32
    %c0_i32_2 = arith.constant 0 : i32
    return %c0_i32, %c0_i32_0, %c0_i32_1 : i32, i32, i32
  }
  func.func @transform_6(%arg0: i32) -> (i32, i32, i32) {
    %c0_i32 = arith.constant 0 : i32
    %c0_i32_0 = arith.constant 0 : i32
    %c0_i32_1 = arith.constant 0 : i32
    %c0_i32_2 = arith.constant 0 : i32
    return %c0_i32, %c0_i32_0, %c0_i32_1 : i32, i32, i32
  }
  func.func @transform_7(%arg0: i32) -> (i32, i32, i32) {
    %c0_i32 = arith.constant 0 : i32
    %c0_i32_0 = arith.constant 0 : i32
    %c0_i32_1 = arith.constant 0 : i32
    %c0_i32_2 = arith.constant 0 : i32
    return %c0_i32, %c0_i32_0, %c0_i32_1 : i32, i32, i32
  }
  func.func @transform_8(%arg0: i32) -> (i32, i32, i32) {
    %c0_i32 = arith.constant 0 : i32
    %c0_i32_0 = arith.constant 0 : i32
    %c0_i32_1 = arith.constant 0 : i32
    %c0_i32_2 = arith.constant 0 : i32
    return %c0_i32, %c0_i32_0, %c0_i32_1 : i32, i32, i32
  }
  func.func @transform_9(%arg0: i32) -> (i32, i32, i32) {
    %c0_i32 = arith.constant 0 : i32
    %c0_i32_0 = arith.constant 0 : i32
    %c0_i32_1 = arith.constant 0 : i32
    %c0_i32_2 = arith.constant 0 : i32
    return %c0_i32, %c0_i32_0, %c0_i32_1 : i32, i32, i32
  }
  func.func @transform_10(%arg0: i32) -> (i32, i32, i32) {
    %c0_i32 = arith.constant 0 : i32
    %c0_i32_0 = arith.constant 0 : i32
    %c0_i32_1 = arith.constant 0 : i32
    %c0_i32_2 = arith.constant 0 : i32
    return %c0_i32, %c0_i32_0, %c0_i32_1 : i32, i32, i32
  }
  func.func @transform_11(%arg0: i32) -> (i32, i32, i32) {
    %c0_i32 = arith.constant 0 : i32
    %c0_i32_0 = arith.constant 0 : i32
    %c0_i32_1 = arith.constant 0 : i32
    %c0_i32_2 = arith.constant 0 : i32
    return %c0_i32, %c0_i32_0, %c0_i32_1 : i32, i32, i32
  }
  func.func @transform_12(%arg0: i32) -> (i32, i32, i32) {
    %c0_i32 = arith.constant 0 : i32
    %c0_i32_0 = arith.constant 0 : i32
    %c0_i32_1 = arith.constant 0 : i32
    %c0_i32_2 = arith.constant 0 : i32
    return %c0_i32, %c0_i32_0, %c0_i32_1 : i32, i32, i32
  }
  func.func @transform_13(%arg0: i32) -> (i32, i32, i32) {
    %c0_i32 = arith.constant 0 : i32
    %c0_i32_0 = arith.constant 0 : i32
    %c0_i32_1 = arith.constant 0 : i32
    %c0_i32_2 = arith.constant 0 : i32
    return %c0_i32, %c0_i32_0, %c0_i32_1 : i32, i32, i32
  }
  func.func @transform_14(%arg0: i32) -> (i32, i32, i32) {
    %c0_i32 = arith.constant 0 : i32
    %c0_i32_0 = arith.constant 0 : i32
    %c0_i32_1 = arith.constant 0 : i32
    %c0_i32_2 = arith.constant 0 : i32
    return %c0_i32, %c0_i32_0, %c0_i32_1 : i32, i32, i32
  }
  func.func @transform_15(%arg0: i32) -> (i32, i32, i32) {
    %c0_i32 = arith.constant 0 : i32
    %c0_i32_0 = arith.constant 0 : i32
    %c0_i32_1 = arith.constant 0 : i32
    return %arg0, %c0_i32, %c0_i32_0 : i32, i32, i32
  }
}

</mosaic_0001>

<llo_original>
// kernel: tpu_custom_call.1
$region0: #{tpu_custom_call.1}
  #allocation0 [shape = 'u32[]', space=smem, size = 0x4, offset = 0x4, fixed_abs, tag = 'smem constant byte address 0x4 - core index']
  #allocation1 [shape = 'u32[144,128]{1,0:T(1,128)}', space=vmem, size = 0x12000, scoped, tag = 'internal scratch']
  %s0 = inlined_call_operand.vmem [shape: f32[2,5,256], index: 0, kind: input, shape index: {}]
  %s1 = inlined_call_operand.vmem [shape: f32[256,32], index: 1, kind: input, shape index: {}]
  %s2 = inlined_call_operand.vmem [shape: f32[5,32], index: 2, kind: input, shape index: {}]
  %s3 = inlined_call_operand.vmem [shape: f32[2,1,32], index: 3, kind: input, shape index: {}]
  %s4 = inlined_call_operand.vmem [shape: f32[2,1,32], index: 4, kind: input, shape index: {}]
  %s5 = inlined_call_operand.vmem [shape: f32[2,32,96], index: 5, kind: input, shape index: {}]
  %s6 = inlined_call_operand.vmem [shape: f32[2,1,96], index: 6, kind: input, shape index: {}]
  %s7 = inlined_call_operand.vmem [shape: f32[2,32,32], index: 7, kind: input, shape index: {}]
  %s8 = inlined_call_operand.vmem [shape: f32[2,1,32], index: 8, kind: input, shape index: {}]
  %s9 = inlined_call_operand.vmem [shape: f32[2,1,32], index: 9, kind: input, shape index: {}]
  %s10 = inlined_call_operand.vmem [shape: f32[2,1,32], index: 10, kind: input, shape index: {}]
  %s11 = inlined_call_operand.vmem [shape: f32[2,32,128], index: 11, kind: input, shape index: {}]
  %s12 = inlined_call_operand.vmem [shape: f32[2,1,128], index: 12, kind: input, shape index: {}]
  %s13 = inlined_call_operand.vmem [shape: f32[2,128,32], index: 13, kind: input, shape index: {}]
  %s14 = inlined_call_operand.vmem [shape: f32[2,1,32], index: 14, kind: input, shape index: {}]
  %s15 = inlined_call_operand.vmem [shape: f32[2,5,32], index: 15, kind: output, shape index: {}]
  %s16 = sld [smem:[#allocation0]]
  $region93: #{tpu_custom_call.1} parent=0
    _
  %s18 = ssub.s32 1, %s16
  %s19 = scalar_select 0, %s18, %s16
  loop: start=0, step=1, limit=4
  $region2: #{tpu_custom_call.1} parent=0 // loop_pre_header
    _
  $region3: #{tpu_custom_call.1} parent=0 // loop_header
    %s21 = sphi 0, %s25
    %p22 = scmp.ge.s32.totalorder %s21, 4
    %s31 = sphi 0, %s33
    %s34 = sphi 0, %s31
    %s35 = sphi 0, %s34
    %s51 = sphi 0, %s35
    %s55 = sphi 0, %s55
    %s57 = sphi 0, %s55
    %s58 = sphi 0, %s57
    %s72 = sphi 0, %s58
    %s76 = sphi 0, %s76
    %s78 = sphi 0, %s76
    %s79 = sphi 0, %s78
    %s93 = sphi 0, %s79
    %s97 = sphi 0, %s97
    %s99 = sphi 0, %s97
    %s100 = sphi 0, %s99
    %s114 = sphi 0, %s100
    %s118 = sphi 0, %s118
    %s120 = sphi 0, %s118
    %s121 = sphi 0, %s120
    %s135 = sphi 0, %s121
    %s139 = sphi 0, %s139
    %s141 = sphi 0, %s139
    %s142 = sphi 0, %s141
    %s156 = sphi 0, %s142
    %s160 = sphi 0, %s160
    %s162 = sphi 0, %s160
    %s163 = sphi 0, %s162
    %s177 = sphi 0, %s163
    %s181 = sphi 0, %s181
    %s183 = sphi 0, %s181
    %s184 = sphi 0, %s183
    %s198 = sphi 0, %s184
    %s202 = sphi 0, %s202
    %s204 = sphi 0, %s202
    %s205 = sphi 0, %s204
    %s219 = sphi 0, %s205
    %s223 = sphi 0, %s223
    %s225 = sphi 0, %s223
    %s226 = sphi 0, %s225
    %s240 = sphi 0, %s226
    %s244 = sphi 0, %s244
    %s246 = sphi 0, %s244
    %s247 = sphi 0, %s246
    %s261 = sphi 0, %s247
    %s265 = sphi 0, %s265
    %s267 = sphi 0, %s265
    %s268 = sphi 0, %s267
    %s282 = sphi 0, %s268
    %s286 = sphi 0, %s286
    %s288 = sphi 0, %s286
    %s289 = sphi 0, %s288
    %s303 = sphi 0, %s289
    %s307 = sphi 0, %s307
    %s309 = sphi 0, %s307
    %s310 = sphi 0, %s309
    %s324 = sphi 0, %s310
    %s328 = sphi 0, %s328
    %s330 = sphi 0, %s328
    %s331 = sphi 0, %s330
    %s345 = sphi 0, %s331
    %s351 = sphi 0, %s353
    %s354 = sphi 0, %s351
    %s355 = sphi 0, %s354
    %s371 = sphi 0, %s355
  $region4: #{tpu_custom_call.1} parent=0 // loop_header_branch
    %24 = sbr.rel (%p22) target = $region8
  $region5: #{tpu_custom_call.1} parent=0 // loop_body
    %s26 = ssub.s32 %s21, 1
    %s27 = ssub.s32 %s21, 2
    %s28 = sadd.s32 %s21, 1
    %s29 = ssub.s32 %s21, %s28
    %p30 = scmp.eq.s32.totalorder %s29, 0
    %s32 = sadd.s32 %s31, 1
    %s33 = scalar_select %p30, %s31, %s32
    %p36 = pneg %p30
    %p37 = scmp.eq.s32.totalorder %s21, 1
    %p38 = por %p36, %p37
    %p39 = scmp.ne.s32.totalorder %s31, %s34
    %p40 = scmp.eq.s32.totalorder %s21, 0
    %p41 = por %p39, %p40
    %p42 = scmp.ne.s32.totalorder %s31, %s34
    %p43 = scmp.eq.s32.totalorder %s26, 1
    %p44 = por %p42, %p43
    %p45 = scmp.ne.s32.totalorder %s34, %s35
    %p46 = scmp.eq.s32.totalorder %s26, 0
    %p47 = por %p45, %p46
    %p48 = scmp.ne.s32.totalorder %s34, %s35
    %p49 = scmp.eq.s32.totalorder %s27, 1
    %p50 = por %p48, %p49
    %p52 = scmp.ne.s32.totalorder %s35, %s51
    %p53 = scmp.eq.s32.totalorder %s27, 0
    %p54 = por %p52, %p53
    %s56 = sadd.s32 %s55, 1
    %p59 = scmp.eq.s32.totalorder %s21, 1
    %p60 = scmp.ne.s32.totalorder %s55, %s57
    %p61 = scmp.eq.s32.totalorder %s21, 0
    %p62 = por %p60, %p61
    %p63 = scmp.ne.s32.totalorder %s55, %s57
    %p64 = scmp.eq.s32.totalorder %s26, 1
    %p65 = por %p63, %p64
    %p66 = scmp.ne.s32.totalorder %s57, %s58
    %p67 = scmp.eq.s32.totalorder %s26, 0
    %p68 = por %p66, %p67
    %p69 = scmp.ne.s32.totalorder %s57, %s58
    %p70 = scmp.eq.s32.totalorder %s27, 1
    %p71 = por %p69, %p70
    %p73 = scmp.ne.s32.totalorder %s58, %s72
    %p74 = scmp.eq.s32.totalorder %s27, 0
    %p75 = por %p73, %p74
    %s77 = sadd.s32 %s76, 1
    %p80 = scmp.eq.s32.totalorder %s21, 1
    %p81 = scmp.ne.s32.totalorder %s76, %s78
    %p82 = scmp.eq.s32.totalorder %s21, 0
    %p83 = por %p81, %p82
    %p84 = scmp.ne.s32.totalorder %s76, %s78
    %p85 = scmp.eq.s32.totalorder %s26, 1
    %p86 = por %p84, %p85
    %p87 = scmp.ne.s32.totalorder %s78, %s79
    %p88 = scmp.eq.s32.totalorder %s26, 0
    %p89 = por %p87, %p88
    %p90 = scmp.ne.s32.totalorder %s78, %s79
    %p91 = scmp.eq.s32.totalorder %s27, 1
    %p92 = por %p90, %p91
    %p94 = scmp.ne.s32.totalorder %s79, %s93
    %p95 = scmp.eq.s32.totalorder %s27, 0
    %p96 = por %p94, %p95
    %s98 = sadd.s32 %s97, 1
    %p101 = scmp.eq.s32.totalorder %s21, 1
    %p102 = scmp.ne.s32.totalorder %s97, %s99
    %p103 = scmp.eq.s32.totalorder %s21, 0
    %p104 = por %p102, %p103
    %p105 = scmp.ne.s32.totalorder %s97, %s99
    %p106 = scmp.eq.s32.totalorder %s26, 1
    %p107 = por %p105, %p106
    %p108 = scmp.ne.s32.totalorder %s99, %s100
    %p109 = scmp.eq.s32.totalorder %s26, 0
    %p110 = por %p108, %p109
    %p111 = scmp.ne.s32.totalorder %s99, %s100
    %p112 = scmp.eq.s32.totalorder %s27, 1
    %p113 = por %p111, %p112
    %p115 = scmp.ne.s32.totalorder %s100, %s114
    %p116 = scmp.eq.s32.totalorder %s27, 0
    %p117 = por %p115, %p116
    %s119 = sadd.s32 %s118, 1
    %p122 = scmp.eq.s32.totalorder %s21, 1
    %p123 = scmp.ne.s32.totalorder %s118, %s120
    %p124 = scmp.eq.s32.totalorder %s21, 0
    %p125 = por %p123, %p124
    %p126 = scmp.ne.s32.totalorder %s118, %s120
    %p127 = scmp.eq.s32.totalorder %s26, 1
    %p128 = por %p126, %p127
    %p129 = scmp.ne.s32.totalorder %s120, %s121
    %p130 = scmp.eq.s32.totalorder %s26, 0
    %p131 = por %p129, %p130
    %p132 = scmp.ne.s32.totalorder %s120, %s121
    %p133 = scmp.eq.s32.totalorder %s27, 1
    %p134 = por %p132, %p133
    %p136 = scmp.ne.s32.totalorder %s121, %s135
    %p137 = scmp.eq.s32.totalorder %s27, 0
    %p138 = por %p136, %p137
    %s140 = sadd.s32 %s139, 1
    %p143 = scmp.eq.s32.totalorder %s21, 1
    %p144 = scmp.ne.s32.totalorder %s139, %s141
    %p145 = scmp.eq.s32.totalorder %s21, 0
    %p146 = por %p144, %p145
    %p147 = scmp.ne.s32.totalorder %s139, %s141
    %p148 = scmp.eq.s32.totalorder %s26, 1
    %p149 = por %p147, %p148
    %p150 = scmp.ne.s32.totalorder %s141, %s142
    %p151 = scmp.eq.s32.totalorder %s26, 0
    %p152 = por %p150, %p151
    %p153 = scmp.ne.s32.totalorder %s141, %s142
    %p154 = scmp.eq.s32.totalorder %s27, 1
    %p155 = por %p153, %p154
    %p157 = scmp.ne.s32.totalorder %s142, %s156
    %p158 = scmp.eq.s32.totalorder %s27, 0
    %p159 = por %p157, %p158
    %s161 = sadd.s32 %s160, 1
    %p164 = scmp.eq.s32.totalorder %s21, 1
    %p165 = scmp.ne.s32.totalorder %s160, %s162
    %p166 = scmp.eq.s32.totalorder %s21, 0
    %p167 = por %p165, %p166
    %p168 = scmp.ne.s32.totalorder %s160, %s162
    %p169 = scmp.eq.s32.totalorder %s26, 1
    %p170 = por %p168, %p169
    %p171 = scmp.ne.s32.totalorder %s162, %s163
    %p172 = scmp.eq.s32.totalorder %s26, 0
    %p173 = por %p171, %p172
    %p174 = scmp.ne.s32.totalorder %s162, %s163
    %p175 = scmp.eq.s32.totalorder %s27, 1
    %p176 = por %p174, %p175
    %p178 = scmp.ne.s32.totalorder %s163, %s177
    %p179 = scmp.eq.s32.totalorder %s27, 0
    %p180 = por %p178, %p179
    %s182 = sadd.s32 %s181, 1
    %p185 = scmp.eq.s32.totalorder %s21, 1
    %p186 = scmp.ne.s32.totalorder %s181, %s183
    %p187 = scmp.eq.s32.totalorder %s21, 0
    %p188 = por %p186, %p187
    %p189 = scmp.ne.s32.totalorder %s181, %s183
    %p190 = scmp.eq.s32.totalorder %s26, 1
    %p191 = por %p189, %p190
    %p192 = scmp.ne.s32.totalorder %s183, %s184
    %p193 = scmp.eq.s32.totalorder %s26, 0
    %p194 = por %p192, %p193
    %p195 = scmp.ne.s32.totalorder %s183, %s184
    %p196 = scmp.eq.s32.totalorder %s27, 1
    %p197 = por %p195, %p196
    %p199 = scmp.ne.s32.totalorder %s184, %s198
    %p200 = scmp.eq.s32.totalorder %s27, 0
    %p201 = por %p199, %p200
    %s203 = sadd.s32 %s202, 1
    %p206 = scmp.eq.s32.totalorder %s21, 1
    %p207 = scmp.ne.s32.totalorder %s202, %s204
    %p208 = scmp.eq.s32.totalorder %s21, 0
    %p209 = por %p207, %p208
    %p210 = scmp.ne.s32.totalorder %s202, %s204
    %p211 = scmp.eq.s32.totalorder %s26, 1
    %p212 = por %p210, %p211
    %p213 = scmp.ne.s32.totalorder %s204, %s205
    %p214 = scmp.eq.s32.totalorder %s26, 0
    %p215 = por %p213, %p214
    %p216 = scmp.ne.s32.totalorder %s204, %s205
    %p217 = scmp.eq.s32.totalorder %s27, 1
    %p218 = por %p216, %p217
    %p220 = scmp.ne.s32.totalorder %s205, %s219
    %p221 = scmp.eq.s32.totalorder %s27, 0
    %p222 = por %p220, %p221
    %s224 = sadd.s32 %s223, 1
    %p227 = scmp.eq.s32.totalorder %s21, 1
    %p228 = scmp.ne.s32.totalorder %s223, %s225
    %p229 = scmp.eq.s32.totalorder %s21, 0
    %p230 = por %p228, %p229
    %p231 = scmp.ne.s32.totalorder %s223, %s225
    %p232 = scmp.eq.s32.totalorder %s26, 1
    %p233 = por %p231, %p232
    %p234 = scmp.ne.s32.totalorder %s225, %s226
    %p235 = scmp.eq.s32.totalorder %s26, 0
    %p236 = por %p234, %p235
    %p237 = scmp.ne.s32.totalorder %s225, %s226
    %p238 = scmp.eq.s32.totalorder %s27, 1
    %p239 = por %p237, %p238
    %p241 = scmp.ne.s32.totalorder %s226, %s240
    %p242 = scmp.eq.s32.totalorder %s27, 0
    %p243 = por %p241, %p242
    %s245 = sadd.s32 %s244, 1
    %p248 = scmp.eq.s32.totalorder %s21, 1
    %p249 = scmp.ne.s32.totalorder %s244, %s246
    %p250 = scmp.eq.s32.totalorder %s21, 0
    %p251 = por %p249, %p250
    %p252 = scmp.ne.s32.totalorder %s244, %s246
    %p253 = scmp.eq.s32.totalorder %s26, 1
    %p254 = por %p252, %p253
    %p255 = scmp.ne.s32.totalorder %s246, %s247
    %p256 = scmp.eq.s32.totalorder %s26, 0
    %p257 = por %p255, %p256
    %p258 = scmp.ne.s32.totalorder %s246, %s247
    %p259 = scmp.eq.s32.totalorder %s27, 1
    %p260 = por %p258, %p259
    %p262 = scmp.ne.s32.totalorder %s247, %s261
    %p263 = scmp.eq.s32.totalorder %s27, 0
    %p264 = por %p262, %p263
    %s266 = sadd.s32 %s265, 1
    %p269 = scmp.eq.s32.totalorder %s21, 1
    %p270 = scmp.ne.s32.totalorder %s265, %s267
    %p271 = scmp.eq.s32.totalorder %s21, 0
    %p272 = por %p270, %p271
    %p273 = scmp.ne.s32.totalorder %s265, %s267
    %p274 = scmp.eq.s32.totalorder %s26, 1
    %p275 = por %p273, %p274
    %p276 = scmp.ne.s32.totalorder %s267, %s268
    %p277 = scmp.eq.s32.totalorder %s26, 0
    %p278 = por %p276, %p277
    %p279 = scmp.ne.s32.totalorder %s267, %s268
    %p280 = scmp.eq.s32.totalorder %s27, 1
    %p281 = por %p279, %p280
    %p283 = scmp.ne.s32.totalorder %s268, %s282
    %p284 = scmp.eq.s32.totalorder %s27, 0
    %p285 = por %p283, %p284
    %s287 = sadd.s32 %s286, 1
    %p290 = scmp.eq.s32.totalorder %s21, 1
    %p291 = scmp.ne.s32.totalorder %s286, %s288
    %p292 = scmp.eq.s32.totalorder %s21, 0
    %p293 = por %p291, %p292
    %p294 = scmp.ne.s32.totalorder %s286, %s288
    %p295 = scmp.eq.s32.totalorder %s26, 1
    %p296 = por %p294, %p295
    %p297 = scmp.ne.s32.totalorder %s288, %s289
    %p298 = scmp.eq.s32.totalorder %s26, 0
    %p299 = por %p297, %p298
    %p300 = scmp.ne.s32.totalorder %s288, %s289
    %p301 = scmp.eq.s32.totalorder %s27, 1
    %p302 = por %p300, %p301
    %p304 = scmp.ne.s32.totalorder %s289, %s303
    %p305 = scmp.eq.s32.totalorder %s27, 0
    %p306 = por %p304, %p305
    %s308 = sadd.s32 %s307, 1
    %p311 = scmp.eq.s32.totalorder %s21, 1
    %p312 = scmp.ne.s32.totalorder %s307, %s309
    %p313 = scmp.eq.s32.totalorder %s21, 0
    %p314 = por %p312, %p313
    %p315 = scmp.ne.s32.totalorder %s307, %s309
    %p316 = scmp.eq.s32.totalorder %s26, 1
    %p317 = por %p315, %p316
    %p318 = scmp.ne.s32.totalorder %s309, %s310
    %p319 = scmp.eq.s32.totalorder %s26, 0
    %p320 = por %p318, %p319
    %p321 = scmp.ne.s32.totalorder %s309, %s310
    %p322 = scmp.eq.s32.totalorder %s27, 1
    %p323 = por %p321, %p322
    %p325 = scmp.ne.s32.totalorder %s310, %s324
    %p326 = scmp.eq.s32.totalorder %s27, 0
    %p327 = por %p325, %p326
    %s329 = sadd.s32 %s328, 1
    %p332 = scmp.eq.s32.totalorder %s21, 1
    %p333 = scmp.ne.s32.totalorder %s328, %s330
    %p334 = scmp.eq.s32.totalorder %s21, 0
    %p335 = por %p333, %p334
    %p336 = scmp.ne.s32.totalorder %s328, %s330
    %p337 = scmp.eq.s32.totalorder %s26, 1
    %p338 = por %p336, %p337
    %p339 = scmp.ne.s32.totalorder %s330, %s331
    %p340 = scmp.eq.s32.totalorder %s26, 0
    %p341 = por %p339, %p340
    %p342 = scmp.ne.s32.totalorder %s330, %s331
    %p343 = scmp.eq.s32.totalorder %s27, 1
    %p344 = por %p342, %p343
    %p346 = scmp.ne.s32.totalorder %s331, %s345
    %p347 = scmp.eq.s32.totalorder %s27, 0
    %p348 = por %p346, %p347
    %s349 = ssub.s32 %s21, %s28
    %p350 = scmp.eq.s32.totalorder %s349, 0
    %s352 = sadd.s32 %s351, 1
    %s353 = scalar_select %p350, %s351, %s352
    %p356 = pneg %p350
    %p357 = scmp.eq.s32.totalorder %s21, 1
    %p358 = por %p356, %p357
    %p359 = scmp.ne.s32.totalorder %s351, %s354
    %p360 = scmp.eq.s32.totalorder %s21, 0
    %p361 = por %p359, %p360
    %p362 = scmp.ne.s32.totalorder %s351, %s354
    %p363 = scmp.eq.s32.totalorder %s26, 1
    %p364 = por %p362, %p363
    %p365 = scmp.ne.s32.totalorder %s354, %s355
    %p366 = scmp.eq.s32.totalorder %s26, 0
    %p367 = por %p365, %p366
    %p368 = scmp.ne.s32.totalorder %s354, %s355
    %p369 = scmp.eq.s32.totalorder %s27, 1
    %p370 = por %p368, %p369
    %p372 = scmp.ne.s32.totalorder %s355, %s371
    %p373 = scmp.eq.s32.totalorder %s27, 0
    %p374 = por %p372, %p373
    %p375 = scmp.le.s32.totalorder 1, %s21
    %p376 = scmp.lt.s32.totalorder %s21, 3
    %p377 = pnand %p375, %p376
    %p378 = pneg %p377
    // Predicated region
    $region9: #{tpu_custom_call.1} parent=5 // pred_check
      _
    $region10: #{tpu_custom_call.1} parent=5 // pred_check_branch
      %380 = sbr.rel (%p377) target = $region12
    $region11: #{tpu_custom_call.1} parent=5 // pred_region
      %s381 = ssub.s32 %s21, 1
      // Predicated region
      $region13: #{tpu_custom_call.1} parent=11 // pred_check
        %p382 = pneg %p68
      $region14: #{tpu_custom_call.1} parent=11 // pred_check_branch
        %384 = sbr.rel (%p382) target = $region16
      $region15: #{tpu_custom_call.1} parent=11 // pred_region
        _
      $region16: #{tpu_custom_call.1} parent=11 // pred_fallthru
        _
      // Predicated region
      $region17: #{tpu_custom_call.1} parent=11 // pred_check
        %p385 = pneg %p89
      $region18: #{tpu_custom_call.1} parent=11 // pred_check_branch
        %387 = sbr.rel (%p385) target = $region20
      $region19: #{tpu_custom_call.1} parent=11 // pred_region
        _
      $region20: #{tpu_custom_call.1} parent=11 // pred_fallthru
        _
      // Predicated region
      $region21: #{tpu_custom_call.1} parent=11 // pred_check
        %p388 = pneg %p110
      $region22: #{tpu_custom_call.1} parent=11 // pred_check_branch
        %390 = sbr.rel (%p388) target = $region24
      $region23: #{tpu_custom_call.1} parent=11 // pred_region
        _
      $region24: #{tpu_custom_call.1} parent=11 // pred_fallthru
        _
      // Predicated region
      $region25: #{tpu_custom_call.1} parent=11 // pred_check
        %p391 = pneg %p131
      $region26: #{tpu_custom_call.1} parent=11 // pred_check_branch
        %393 = sbr.rel (%p391) target = $region28
      $region27: #{tpu_custom_call.1} parent=11 // pred_region
        _
      $region28: #{tpu_custom_call.1} parent=11 // pred_fallthru
        _
      // Predicated region
      $region29: #{tpu_custom_call.1} parent=11 // pred_check
        %p394 = pneg %p152
      $region30: #{tpu_custom_call.1} parent=11 // pred_check_branch
        %396 = sbr.rel (%p394) target = $region32
      $region31: #{tpu_custom_call.1} parent=11 // pred_region
        _
      $region32: #{tpu_custom_call.1} parent=11 // pred_fallthru
        _
      // Predicated region
      $region33: #{tpu_custom_call.1} parent=11 // pred_check
        %p397 = pneg %p173
      $region34: #{tpu_custom_call.1} parent=11 // pred_check_branch
        %399 = sbr.rel (%p397) target = $region36
      $region35: #{tpu_custom_call.1} parent=11 // pred_region
        _
      $region36: #{tpu_custom_call.1} parent=11 // pred_fallthru
        _
      // Predicated region
      $region37: #{tpu_custom_call.1} parent=11 // pred_check
        %p400 = pneg %p194
      $region38: #{tpu_custom_call.1} parent=11 // pred_check_branch
        %402 = sbr.rel (%p400) target = $region40
      $region39: #{tpu_custom_call.1} parent=11 // pred_region
        _
      $region40: #{tpu_custom_call.1} parent=11 // pred_fallthru
        _
      // Predicated region
      $region41: #{tpu_custom_call.1} parent=11 // pred_check
        %p403 = pneg %p215
      $region42: #{tpu_custom_call.1} parent=11 // pred_check_branch
        %405 = sbr.rel (%p403) target = $region44
      $region43: #{tpu_custom_call.1} parent=11 // pred_region
        _
      $region44: #{tpu_custom_call.1} parent=11 // pred_fallthru
        _
      // Predicated region
      $region45: #{tpu_custom_call.1} parent=11 // pred_check
        %p406 = pneg %p236
      $region46: #{tpu_custom_call.1} parent=11 // pred_check_branch
        %408 = sbr.rel (%p406) target = $region48
      $region47: #{tpu_custom_call.1} parent=11 // pred_region
        _
      $region48: #{tpu_custom_call.1} parent=11 // pred_fallthru
        _
      // Predicated region
      $region49: #{tpu_custom_call.1} parent=11 // pred_check
        %p409 = pneg %p257
      $region50: #{tpu_custom_call.1} parent=11 // pred_check_branch
        %411 = sbr.rel (%p409) target = $region52
      $region51: #{tpu_custom_call.1} parent=11 // pred_region
        _
      $region52: #{tpu_custom_call.1} parent=11 // pred_fallthru
        _
      // Predicated region
      $region53: #{tpu_custom_call.1} parent=11 // pred_check
        %p412 = pneg %p278
      $region54: #{tpu_custom_call.1} parent=11 // pred_check_branch
        %414 = sbr.rel (%p412) target = $region56
      $region55: #{tpu_custom_call.1} parent=11 // pred_region
        _
      $region56: #{tpu_custom_call.1} parent=11 // pred_fallthru
        _
      // Predicated region
      $region57: #{tpu_custom_call.1} parent=11 // pred_check
        %p415 = pneg %p299
      $region58: #{tpu_custom_call.1} parent=11 // pred_check_branch
        %417 = sbr.rel (%p415) target = $region60
      $region59: #{tpu_custom_call.1} parent=11 // pred_region
        _
      $region60: #{tpu_custom_call.1} parent=11 // pred_fallthru
        _
      // Predicated region
      $region61: #{tpu_custom_call.1} parent=11 // pred_check
        %p418 = pneg %p320
      $region62: #{tpu_custom_call.1} parent=11 // pred_check_branch
        %420 = sbr.rel (%p418) target = $region64
      $region63: #{tpu_custom_call.1} parent=11 // pred_region
        _
      $region64: #{tpu_custom_call.1} parent=11 // pred_fallthru
        _
      // Predicated region
      $region65: #{tpu_custom_call.1} parent=11 // pred_check
        %p421 = pneg %p341
      $region66: #{tpu_custom_call.1} parent=11 // pred_check_branch
        %423 = sbr.rel (%p421) target = $region68
      $region67: #{tpu_custom_call.1} parent=11 // pred_region
        _
      $region68: #{tpu_custom_call.1} parent=11 // pred_fallthru
        _
    $region12: #{tpu_custom_call.1} parent=5 // pred_fallthru
      _
    %p424 = scmp.lt.s32.totalorder %s21, 2
    // Predicated region
    $region69: #{tpu_custom_call.1} parent=5 // pred_check
      %p425 = pneg %p424
    $region70: #{tpu_custom_call.1} parent=5 // pred_check_branch
      %427 = sbr.rel (%p425) target = $region72
    $region71: #{tpu_custom_call.1} parent=5 // pred_region
      // Predicated region
      $region73: #{tpu_custom_call.1} parent=71 // pred_check
        %p428 = pneg %p41
      $region74: #{tpu_custom_call.1} parent=71 // pred_check_branch
        %430 = sbr.rel (%p428) target = $region76
      $region75: #{tpu_custom_call.1} parent=71 // pred_region
        %p431 = scmp.lt.s32.totalorder %s21, 1
        %s432 = scalar_select %p431, %s21, 1
        %s433 = smul.addr %s432, 2
        %s434 = smul.addr %s433, 8
        %s435 = scalar_lea.vmem %s0, %s434
      $region76: #{tpu_custom_call.1} parent=71 // pred_fallthru
        _
    $region72: #{tpu_custom_call.1} parent=5 // pred_fallthru
      _
    %p436 = scmp.le.s32.totalorder 1, %s21
    %p437 = scmp.lt.s32.totalorder %s21, 3
    %p438 = pnand %p436, %p437
    %p439 = pneg %p438
    // Predicated region
    $region77: #{tpu_custom_call.1} parent=5 // pred_check
      _
    $region78: #{tpu_custom_call.1} parent=5 // pred_check_branch
      %441 = sbr.rel (%p438) target = $region80
    $region79: #{tpu_custom_call.1} parent=5 // pred_region
      %s442 = ssub.s32 %s21, 1
      %p443 = scmp.lt.s32.totalorder %s26, 1
      %s444 = scalar_select %p443, %s26, 1
      %s445 = smul.addr %s444, 2
      %s446 = smul.addr %s445, 8
      %s447 = scalar_lea.vmem %s0, %s446
      %p448 = pneg %p47
      %p449 = pneg %p44
      %p450 = pneg %p68
      %p451 = pneg %p65
      %p452 = pneg %p89
      %p453 = pneg %p86
      %p454 = pneg %p110
      %p455 = pneg %p107
      %p456 = pneg %p131
      %p457 = pneg %p128
      %p458 = pneg %p152
      %p459 = pneg %p149
      %p460 = pneg %p173
      %p461 = pneg %p170
      %p462 = pneg %p194
      %p463 = pneg %p191
      %p464 = pneg %p215
      %p465 = pneg %p212
      %p466 = pneg %p236
      %p467 = pneg %p233
      %p468 = pneg %p257
      %p469 = pneg %p254
      %p470 = pneg %p278
      %p471 = pneg %p275
      %p472 = pneg %p299
      %p473 = pneg %p296
      %p474 = pneg %p320
      %p475 = pneg %p317
      %p476 = pneg %p341
      %p477 = pneg %p338
      %p478 = pneg %p367
      %p479 = pneg %p364
      %p480 = scmp.lt.s32.totalorder %s26, 1
      %s481 = scalar_select %p480, %s26, 1
      %s482 = smul.addr %s481, 8
      %s483 = scalar_lea.vmem %s15, %s482
      %p484 = scmp.lt.s32.totalorder %s26, 1
      %s485 = scalar_select %p484, %s26, 1
      %s486 = smul.addr %s485, 2
      %s487 = smul.addr %s486, 8
      %s488 = scalar_lea.vmem %s0, %s487
      %p489 = scmp.lt.s32.totalorder %s26, 1
      %s490 = scalar_select %p489, %s26, 1
      %s491 = smul.addr %s490, 8
      %s492 = scalar_lea.vmem %s15, %s491
      %v493 = vld [vmem:[%s488] sm:$0x1f]
      %v494 = vld [vmem:[%s488 + $0x8] sm:$0x1f]
      %v495 = vld [vmem:[%s1] sm:$0xff]
      %v496 = vld [vmem:[%s1 + $0x8] sm:$0xff]
      %v497 = vld [vmem:[%s1 + $0x10] sm:$0xff]
      %v498 = vld [vmem:[%s1 + $0x18] sm:$0xff]
      %v499 = vld [vmem:[%s1 + $0x20] sm:$0xff]
      %v500 = vld [vmem:[%s1 + $0x28] sm:$0xff]
      %v501 = vld [vmem:[%s1 + $0x30] sm:$0xff]
      %v502 = vld [vmem:[%s1 + $0x38] sm:$0xff]
      %v503 = vld [vmem:[%s1 + $0x40] sm:$0xff]
      %v504 = vld [vmem:[%s1 + $0x48] sm:$0xff]
      %v505 = vld [vmem:[%s1 + $0x50] sm:$0xff]
      %v506 = vld [vmem:[%s1 + $0x58] sm:$0xff]
      %v507 = vld [vmem:[%s1 + $0x60] sm:$0xff]
      %v508 = vld [vmem:[%s1 + $0x68] sm:$0xff]
      %v509 = vld [vmem:[%s1 + $0x70] sm:$0xff]
      %v510 = vld [vmem:[%s1 + $0x78] sm:$0xff]
      %v511 = vld [vmem:[%s1 + $0x80] sm:$0xff]
      %v512 = vld [vmem:[%s1 + $0x88] sm:$0xff]
      %v513 = vld [vmem:[%s1 + $0x90] sm:$0xff]
      %v514 = vld [vmem:[%s1 + $0x98] sm:$0xff]
      %v515 = vld [vmem:[%s1 + $0xa0] sm:$0xff]
      %v516 = vld [vmem:[%s1 + $0xa8] sm:$0xff]
      %v517 = vld [vmem:[%s1 + $0xb0] sm:$0xff]
      %v518 = vld [vmem:[%s1 + $0xb8] sm:$0xff]
      %v519 = vld [vmem:[%s1 + $0xc0] sm:$0xff]
      %v520 = vld [vmem:[%s1 + $0xc8] sm:$0xff]
      %v521 = vld [vmem:[%s1 + $0xd0] sm:$0xff]
      %v522 = vld [vmem:[%s1 + $0xd8] sm:$0xff]
      %v523 = vld [vmem:[%s1 + $0xe0] sm:$0xff]
      %v524 = vld [vmem:[%s1 + $0xe8] sm:$0xff]
      %v525 = vld [vmem:[%s1 + $0xf0] sm:$0xff]
      %v526 = vld [vmem:[%s1 + $0xf8] sm:$0xff]
      %v527 = vld [vmem:[%s2] sm:$0x1f]
      %528 = vmatprep.subr.mxu0 0.0
      %529 = vmatpush1.msra.mxu0 %v495
      %530 = vmatprep.subr.mxu0 0.0
      %531 = vmatpush1.msra.mxu0 %v496
      %532 = vmatprep.subr.mxu0 0.0
      %533 = vmatpush1.msra.mxu0 %v497
      %534 = vmatprep.subr.mxu0 0.0
      %535 = vmatpush1.msra.mxu0 %v498
      %536 = vmatprep.subr.mxu0 0.0
      %537 = vmatpush1.msra.mxu0 %v499
      %538 = vmatprep.subr.mxu0 0.0
      %539 = vmatpush1.msra.mxu0 %v500
      %540 = vmatprep.subr.mxu0 0.0
      %541 = vmatpush1.msra.mxu0 %v501
      %542 = vmatprep.subr.mxu0 0.0
      %543 = vmatpush1.msra.mxu0 %v502
      %544 = vmatprep.subr.mxu0 0.0
      %545 = vmatpush1.msra.mxu0 %v503
      %546 = vmatprep.subr.mxu0 0.0
      %547 = vmatpush1.msra.mxu0 %v504
      %548 = vmatprep.subr.mxu0 0.0
      %549 = vmatpush1.msra.mxu0 %v505
      %550 = vmatprep.subr.mxu0 0.0
      %551 = vmatpush1.msra.mxu0 %v506
      %552 = vmatprep.subr.mxu0 0.0
      %553 = vmatpush1.msra.mxu0 %v507
      %554 = vmatprep.subr.mxu0 0.0
      %555 = vmatpush1.msra.mxu0 %v508
      %556 = vmatprep.subr.mxu0 0.0
      %557 = vmatpush1.msra.mxu0 %v509
      %558 = vmatprep.subr.mxu0 0.0
      %559 = vmatpush1.msra.mxu0 %v510
      %560 = vmatprep.subr.mxu0 0.0
      %561 = vmatpush1.msra.mxu0 %v511
      %562 = vmatprep.subr.mxu0 0.0
      %563 = vmatpush1.msra.mxu0 %v512
      %564 = vmatprep.subr.mxu0 0.0
      %565 = vmatpush1.msra.mxu0 %v513
      %566 = vmatprep.subr.mxu0 0.0
      %567 = vmatpush1.msra.mxu0 %v514
      %568 = vmatprep.subr.mxu0 0.0
      %569 = vmatpush1.msra.mxu0 %v515
      %570 = vmatprep.subr.mxu0 0.0
      %571 = vmatpush1.msra.mxu0 %v516
      %572 = vmatprep.subr.mxu0 0.0
      %573 = vmatpush1.msra.mxu0 %v517
      %574 = vmatprep.subr.mxu0 0.0
      %575 = vmatpush1.msra.mxu0 %v518
      %576 = vmatprep.subr.mxu0 0.0
      %577 = vmatpush1.msra.mxu0 %v519
      %578 = vmatprep.subr.mxu0 0.0
      %579 = vmatpush1.msra.mxu0 %v520
      %580 = vmatprep.subr.mxu0 0.0
      %581 = vmatpush1.msra.mxu0 %v521
      %582 = vmatprep.subr.mxu0 0.0
      %583 = vmatpush1.msra.mxu0 %v522
      %584 = vmatprep.subr.mxu0 0.0
      %585 = vmatpush1.msra.mxu0 %v523
      %586 = vmatprep.subr.mxu0 0.0
      %587 = vmatpush1.msra.mxu0 %v524
      %588 = vmatprep.subr.mxu0 0.0
      %589 = vmatpush1.msra.mxu0 %v525
      %590 = vmatprep.subr.mxu0 0.0
      %591 = vmatpush1.msra.mxu0 %v526
      %592 = vmatprep.mubr.f32.mxu0 %v494
      %593 = vmatmul.mubr.f32.gmra.mrb[0].mxu0 %v493
      %v594 = vpop.f32.mrb[0].mxu0
      %v595 = vadd.f32 %v527, %v594
      %v596 = vpop.f32.mrb[0].mxu0
      %597 = vdwg.mxu0
      %v598 = vld [vmem:[%s3] sm:$0x1]
      %v599 = vld [vmem:[%s4] sm:$0x1]
      %vm600 = vcmask 258048
      %v601 = vsel %vm600, %v595, 0.0
      %602 = vadd.xlane.f32.xlu0 %v601
      %v603 = vpop.xlane.xlu0 %602
      %v604 = vrcp.pop 32.0
      %v605 = vmul.f32 %v603, %v604
      %v606 = vsub.f32 %v595, %v605
      %v607 = vmul.f32 %v606, %v606
      %v608 = vsel %vm600, %v607, 0.0
      %609 = vadd.xlane.f32.xlu0 %v608
      %v610 = vpop.xlane.xlu0 %609
      %v611 = vmul.f32 %v610, %v604
      %v612 = vadd.f32 %v611, 1e-06
      %v613 = vrsqrt.pop %v612
      %v614 = vmul.f32 %v606, %v613
      %v616 = vlaneseq
      %v617 = vshrl.u32 %v616, 7
      %v618 = vsub.s32 0, %v617
      %v619 = vrot.slane %v598, %v618
      %v621 = vmul.f32 %v614, %v619
      %v623 = vlaneseq
      %v624 = vshrl.u32 %v623, 7
      %v625 = vsub.s32 0, %v624
      %v626 = vrot.slane %v599, %v625
      %v628 = vadd.f32 %v621, %v626
      %v629 = vld [vmem:[%s5] sm:$0xff]
      %v630 = vld [vmem:[%s5 + $0x8] sm:$0xff]
      %v631 = vld [vmem:[%s5 + $0x10] sm:$0xff]
      %v632 = vld [vmem:[%s5 + $0x18] sm:$0xff]
      %v633 = vld [vmem:[%s6] sm:$0x1]
      %v635 = vlaneseq
      %v636 = vshrl.u32 %v635, 7
      %v637 = vsub.s32 0, %v636
      %v638 = vrot.slane %v633, %v637
      %vm640 = vcmask 261120
      %v642 = vsel %vm640, %v628, 0
      %644 = vmatprep.subr.mxu0 0.0
      %645 = vmatpush1.msra.mxu0 %v629
      %646 = vmatprep.subr.mxu0 0.0
      %647 = vmatpush1.msra.mxu0 %v630
      %648 = vmatprep.subr.mxu0 0.0
      %649 = vmatpush1.msra.mxu0 %v631
      %650 = vmatprep.subr.mxu0 0.0
      %651 = vmatpush1.msra.mxu0 %v632
      %652 = vmatprep.subr.mxu0 0.0
      %653 = vmatpush1.msra.mxu0 0.0
      %654 = vmatprep.subr.mxu0 0.0
      %655 = vmatpush1.msra.mxu0 0.0
      %656 = vmatprep.subr.mxu0 0.0
      %657 = vmatpush1.msra.mxu0 0.0
      %658 = vmatprep.subr.mxu0 0.0
      %659 = vmatpush1.msra.mxu0 0.0
      %660 = vmatprep.subr.mxu0 0.0
      %661 = vmatpush1.msra.mxu0 0.0
      %662 = vmatprep.subr.mxu0 0.0
      %663 = vmatpush1.msra.mxu0 0.0
      %664 = vmatprep.subr.mxu0 0.0
      %665 = vmatpush1.msra.mxu0 0.0
      %666 = vmatprep.subr.mxu0 0.0
      %667 = vmatpush1.msra.mxu0 0.0
      %668 = vmatprep.subr.mxu0 0.0
      %669 = vmatpush1.msra.mxu0 0.0
      %670 = vmatprep.subr.mxu0 0.0
      %671 = vmatpush1.msra.mxu0 0.0
      %672 = vmatprep.subr.mxu0 0.0
      %673 = vmatpush1.msra.mxu0 0.0
      %674 = vmatprep.subr.mxu0 0.0
      %675 = vmatpush1.msra.mxu0 0.0
      %676 = vmatprep.subr.mxu0 0.0
      %677 = vmatpush1.msra.mxu0 0.0
      %678 = vmatprep.subr.mxu0 0.0
      %679 = vmatpush1.msra.mxu0 0.0
      %680 = vmatprep.subr.mxu0 0.0
      %681 = vmatpush1.msra.mxu0 0.0
      %682 = vmatprep.subr.mxu0 0.0
      %683 = vmatpush1.msra.mxu0 0.0
      %684 = vmatprep.subr.mxu0 0.0
      %685 = vmatpush1.msra.mxu0 0.0
      %686 = vmatprep.subr.mxu0 0.0
      %687 = vmatpush1.msra.mxu0 0.0
      %688 = vmatprep.subr.mxu0 0.0
      %689 = vmatpush1.msra.mxu0 0.0
      %690 = vmatprep.subr.mxu0 0.0
      %691 = vmatpush1.msra.mxu0 0.0
      %692 = vmatprep.subr.mxu0 0.0
      %693 = vmatpush1.msra.mxu0 0.0
      %694 = vmatprep.subr.mxu0 0.0
      %695 = vmatpush1.msra.mxu0 0.0
      %696 = vmatprep.subr.mxu0 0.0
      %697 = vmatpush1.msra.mxu0 0.0
      %698 = vmatprep.subr.mxu0 0.0
      %699 = vmatpush1.msra.mxu0 0.0
      %700 = vmatprep.subr.mxu0 0.0
      %701 = vmatpush1.msra.mxu0 0.0
      %702 = vmatprep.subr.mxu0 0.0
      %703 = vmatpush1.msra.mxu0 0.0
      %704 = vmatprep.subr.mxu0 0.0
      %705 = vmatpush1.msra.mxu0 0.0
      %706 = vmatprep.subr.mxu0 0.0
      %707 = vmatpush1.msra.mxu0 0.0
      %708 = vmatprep.mubr.f32.mxu0 0.0
      %709 = vmatmul.mubr.f32.gmra.mrb[0].mxu0 %v642
      %v710 = vpop.f32.mrb[0].mxu0
      %v711 = vadd.f32 %v638, %v710
      %v712 = vpop.f32.mrb[0].mxu0
      %713 = vdwg.mxu0
      %715 = vrot.lane.b32.xlu0 %v711, 96
      %v716 = vpop.permute.xlu0 %715
      %vm717 = vcmask 64512
      %v718 = vsel %vm717, %v711, 0
      %v720 = vsel %vm717, %v716, 0
      %722 = vmatprep.subr.mxu0 0.0
      %723 = vmatpush1.xpose.msra.mxu0 %v720
      %724 = vmatprep.subr.mxu0 0.0
      %725 = vmatpush1.xpose.msra.mxu0 0.0
      %726 = vmatprep.subr.mxu0 0.0
      %727 = vmatpush1.xpose.msra.mxu0 0.0
      %728 = vmatprep.subr.mxu0 0.0
      %729 = vmatpush1.xpose.msra.mxu0 0.0
      %730 = vmatprep.subr.mxu0 0.0
      %731 = vmatpush1.xpose.msra.mxu0 0.0
      %732 = vmatprep.subr.mxu0 0.0
      %733 = vmatpush1.xpose.msra.mxu0 0.0
      %734 = vmatprep.subr.mxu0 0.0
      %735 = vmatpush1.xpose.msra.mxu0 0.0
      %736 = vmatprep.subr.mxu0 0.0
      %737 = vmatpush1.xpose.msra.mxu0 0.0
      %738 = vmatprep.subr.mxu0 0.0
      %739 = vmatpush1.xpose.msra.mxu0 0.0
      %740 = vmatprep.subr.mxu0 0.0
      %741 = vmatpush1.xpose.msra.mxu0 0.0
      %742 = vmatprep.subr.mxu0 0.0
      %743 = vmatpush1.xpose.msra.mxu0 0.0
      %744 = vmatprep.subr.mxu0 0.0
      %745 = vmatpush1.xpose.msra.mxu0 0.0
      %746 = vmatprep.subr.mxu0 0.0
      %747 = vmatpush1.xpose.msra.mxu0 0.0
      %748 = vmatprep.subr.mxu0 0.0
      %749 = vmatpush1.xpose.msra.mxu0 0.0
      %750 = vmatprep.subr.mxu0 0.0
      %751 = vmatpush1.xpose.msra.mxu0 0.0
      %752 = vmatprep.subr.mxu0 0.0
      %753 = vmatpush1.xpose.msra.mxu0 0.0
      %754 = vmatprep.subr.mxu0 0.0
      %755 = vmatpush1.xpose.msra.mxu0 0.0
      %756 = vmatprep.subr.mxu0 0.0
      %757 = vmatpush1.xpose.msra.mxu0 0.0
      %758 = vmatprep.subr.mxu0 0.0
      %759 = vmatpush1.xpose.msra.mxu0 0.0
      %760 = vmatprep.subr.mxu0 0.0
      %761 = vmatpush1.xpose.msra.mxu0 0.0
      %762 = vmatprep.subr.mxu0 0.0
      %763 = vmatpush1.xpose.msra.mxu0 0.0
      %764 = vmatprep.subr.mxu0 0.0
      %765 = vmatpush1.xpose.msra.mxu0 0.0
      %766 = vmatprep.subr.mxu0 0.0
      %767 = vmatpush1.xpose.msra.mxu0 0.0
      %768 = vmatprep.subr.mxu0 0.0
      %769 = vmatpush1.xpose.msra.mxu0 0.0
      %770 = vmatprep.subr.mxu0 0.0
      %771 = vmatpush1.xpose.msra.mxu0 0.0
      %772 = vmatprep.subr.mxu0 0.0
      %773 = vmatpush1.xpose.msra.mxu0 0.0
      %774 = vmatprep.subr.mxu0 0.0
      %775 = vmatpush1.xpose.msra.mxu0 0.0
      %776 = vmatprep.subr.mxu0 0.0
      %777 = vmatpush1.xpose.msra.mxu0 0.0
      %778 = vmatprep.subr.mxu0 0.0
      %779 = vmatpush1.xpose.msra.mxu0 0.0
      %780 = vmatprep.subr.mxu0 0.0
      %781 = vmatpush1.xpose.msra.mxu0 0.0
      %782 = vmatprep.subr.mxu0 0.0
      %783 = vmatpush1.xpose.msra.mxu0 0.0
      %784 = vmatprep.subr.mxu0 0.0
      %785 = vmatpush1.xpose.msra.mxu0 0.0
      %786 = vmatprep.mubr.f32.mxu0 0.0
      %787 = vmatmul.mubr.f32.gmra.mrb[0].mxu0 %v718
      %v788 = vpop.f32.mrb[0].mxu0
      %v789 = vadd.f32 0.0, %v788
      %v790 = vpop.f32.mrb[0].mxu0
      %791 = vdwg.mxu0
      %vm792 = vcmask 36864
      %v793 = vsel %vm792, %v789, -inf
      %794 = vmax.xlane.f32.xlu0 %v793
      %v795 = vpop.xlane.xlu0 %794
      %v796 = vsub.f32 %v789, %v795
      %v797 = vmul.f32 %v796, 1.442695
      %v798 = vpow.pop %v797
      %v799 = vsel %vm792, %v798, 0.0
      %800 = vadd.xlane.f32.xlu0 %v799
      %v801 = vpop.xlane.xlu0 %800
      %v802 = vrcp.pop %v801
      %v803 = vmul.f32 1.0, %v802
      %v804 = vmul.f32 %v798, %v803
      %805 = vrot.lane.b32.xlu0 %v711, 64
      %v806 = vpop.permute.xlu0 %805
      %vm807 = vcmask 39936
      %v809 = vsel %vm807, %v804, 0
      %vm811 = vcmask 1044480
      %v812 = vsel %vm811, %v806, 0
      %814 = vmatprep.subr.mxu0 0.0
      %815 = vmatpush1.msra.mxu0 %v812
      %816 = vmatprep.subr.mxu0 0.0
      %817 = vmatpush1.msra.mxu0 0.0
      %818 = vmatprep.subr.mxu0 0.0
      %819 = vmatpush1.msra.mxu0 0.0
      %820 = vmatprep.subr.mxu0 0.0
      %821 = vmatpush1.msra.mxu0 0.0
      %822 = vmatprep.subr.mxu0 0.0
      %823 = vmatpush1.msra.mxu0 0.0
      %824 = vmatprep.subr.mxu0 0.0
      %825 = vmatpush1.msra.mxu0 0.0
      %826 = vmatprep.subr.mxu0 0.0
      %827 = vmatpush1.msra.mxu0 0.0
      %828 = vmatprep.subr.mxu0 0.0
      %829 = vmatpush1.msra.mxu0 0.0
      %830 = vmatprep.subr.mxu0 0.0
      %831 = vmatpush1.msra.mxu0 0.0
      %832 = vmatprep.subr.mxu0 0.0
      %833 = vmatpush1.msra.mxu0 0.0
      %834 = vmatprep.subr.mxu0 0.0
      %835 = vmatpush1.msra.mxu0 0.0
      %836 = vmatprep.subr.mxu0 0.0
      %837 = vmatpush1.msra.mxu0 0.0
      %838 = vmatprep.subr.mxu0 0.0
      %839 = vmatpush1.msra.mxu0 0.0
      %840 = vmatprep.subr.mxu0 0.0
      %841 = vmatpush1.msra.mxu0 0.0
      %842 = vmatprep.subr.mxu0 0.0
      %843 = vmatpush1.msra.mxu0 0.0
      %844 = vmatprep.subr.mxu0 0.0
      %845 = vmatpush1.msra.mxu0 0.0
      %846 = vmatprep.subr.mxu0 0.0
      %847 = vmatpush1.msra.mxu0 0.0
      %848 = vmatprep.subr.mxu0 0.0
      %849 = vmatpush1.msra.mxu0 0.0
      %850 = vmatprep.subr.mxu0 0.0
      %851 = vmatpush1.msra.mxu0 0.0
      %852 = vmatprep.subr.mxu0 0.0
      %853 = vmatpush1.msra.mxu0 0.0
      %854 = vmatprep.subr.mxu0 0.0
      %855 = vmatpush1.msra.mxu0 0.0
      %856 = vmatprep.subr.mxu0 0.0
      %857 = vmatpush1.msra.mxu0 0.0
      %858 = vmatprep.subr.mxu0 0.0
      %859 = vmatpush1.msra.mxu0 0.0
      %860 = vmatprep.subr.mxu0 0.0
      %861 = vmatpush1.msra.mxu0 0.0
      %862 = vmatprep.subr.mxu0 0.0
      %863 = vmatpush1.msra.mxu0 0.0
      %864 = vmatprep.subr.mxu0 0.0
      %865 = vmatpush1.msra.mxu0 0.0
      %866 = vmatprep.subr.mxu0 0.0
      %867 = vmatpush1.msra.mxu0 0.0
      %868 = vmatprep.subr.mxu0 0.0
      %869 = vmatpush1.msra.mxu0 0.0
      %870 = vmatprep.subr.mxu0 0.0
      %871 = vmatpush1.msra.mxu0 0.0
      %872 = vmatprep.subr.mxu0 0.0
      %873 = vmatpush1.msra.mxu0 0.0
      %874 = vmatprep.subr.mxu0 0.0
      %875 = vmatpush1.msra.mxu0 0.0
      %876 = vmatprep.subr.mxu0 0.0
      %877 = vmatpush1.msra.mxu0 0.0
      %878 = vmatprep.mubr.f32.mxu0 0.0
      %879 = vmatmul.mubr.f32.gmra.mrb[0].mxu0 %v809
      %v880 = vpop.f32.mrb[0].mxu0
      %v881 = vadd.f32 0.0, %v880
      %v882 = vpop.f32.mrb[0].mxu0
      %883 = vdwg.mxu0
      %884 = vrot.lane.b32.xlu0 %v711, 120
      %v885 = vpop.permute.xlu0 %884
      %886 = vrot.lane.b32.xlu0 %v711, 88
      %v887 = vpop.permute.xlu0 %886
      %v888 = vsel %vm717, %v885, 0
      %v890 = vsel %vm717, %v887, 0
      %892 = vmatprep.subr.mxu0 0.0
      %893 = vmatpush1.xpose.msra.mxu0 %v890
      %894 = vmatprep.subr.mxu0 0.0
      %895 = vmatpush1.xpose.msra.mxu0 0.0
      %896 = vmatprep.subr.mxu0 0.0
      %897 = vmatpush1.xpose.msra.mxu0 0.0
      %898 = vmatprep.subr.mxu0 0.0
      %899 = vmatpush1.xpose.msra.mxu0 0.0
      %900 = vmatprep.subr.mxu0 0.0
      %901 = vmatpush1.xpose.msra.mxu0 0.0
      %902 = vmatprep.subr.mxu0 0.0
      %903 = vmatpush1.xpose.msra.mxu0 0.0
      %904 = vmatprep.subr.mxu0 0.0
      %905 = vmatpush1.xpose.msra.mxu0 0.0
      %906 = vmatprep.subr.mxu0 0.0
      %907 = vmatpush1.xpose.msra.mxu0 0.0
      %908 = vmatprep.subr.mxu0 0.0
      %909 = vmatpush1.xpose.msra.mxu0 0.0
      %910 = vmatprep.subr.mxu0 0.0
      %911 = vmatpush1.xpose.msra.mxu0 0.0
      %912 = vmatprep.subr.mxu0 0.0
      %913 = vmatpush1.xpose.msra.mxu0 0.0
      %914 = vmatprep.subr.mxu0 0.0
      %915 = vmatpush1.xpose.msra.mxu0 0.0
      %916 = vmatprep.subr.mxu0 0.0
      %917 = vmatpush1.xpose.msra.mxu0 0.0
      %918 = vmatprep.subr.mxu0 0.0
      %919 = vmatpush1.xpose.msra.mxu0 0.0
      %920 = vmatprep.subr.mxu0 0.0
      %921 = vmatpush1.xpose.msra.mxu0 0.0
      %922 = vmatprep.subr.mxu0 0.0
      %923 = vmatpush1.xpose.msra.mxu0 0.0
      %924 = vmatprep.subr.mxu0 0.0
      %925 = vmatpush1.xpose.msra.mxu0 0.0
      %926 = vmatprep.subr.mxu0 0.0
      %927 = vmatpush1.xpose.msra.mxu0 0.0
      %928 = vmatprep.subr.mxu0 0.0
      %929 = vmatpush1.xpose.msra.mxu0 0.0
      %930 = vmatprep.subr.mxu0 0.0
      %931 = vmatpush1.xpose.msra.mxu0 0.0
      %932 = vmatprep.subr.mxu0 0.0
      %933 = vmatpush1.xpose.msra.mxu0 0.0
      %934 = vmatprep.subr.mxu0 0.0
      %935 = vmatpush1.xpose.msra.mxu0 0.0
      %936 = vmatprep.subr.mxu0 0.0
      %937 = vmatpush1.xpose.msra.mxu0 0.0
      %938 = vmatprep.subr.mxu0 0.0
      %939 = vmatpush1.xpose.msra.mxu0 0.0
      %940 = vmatprep.subr.mxu0 0.0
      %941 = vmatpush1.xpose.msra.mxu0 0.0
      %942 = vmatprep.subr.mxu0 0.0
      %943 = vmatpush1.xpose.msra.mxu0 0.0
      %944 = vmatprep.subr.mxu0 0.0
      %945 = vmatpush1.xpose.msra.mxu0 0.0
      %946 = vmatprep.subr.mxu0 0.0
      %947 = vmatpush1.xpose.msra.mxu0 0.0
      %948 = vmatprep.subr.mxu0 0.0
      %949 = vmatpush1.xpose.msra.mxu0 0.0
      %950 = vmatprep.subr.mxu0 0.0
      %951 = vmatpush1.xpose.msra.mxu0 0.0
      %952 = vmatprep.subr.mxu0 0.0
      %953 = vmatpush1.xpose.msra.mxu0 0.0
      %954 = vmatprep.subr.mxu0 0.0
      %955 = vmatpush1.xpose.msra.mxu0 0.0
      %956 = vmatprep.mubr.f32.mxu0 0.0
      %957 = vmatmul.mubr.f32.gmra.mrb[0].mxu0 %v888
      %v958 = vpop.f32.mrb[0].mxu0
      %v959 = vadd.f32 0.0, %v958
      %v960 = vpop.f32.mrb[0].mxu0
      %961 = vdwg.mxu0
      %v962 = vsel %vm792, %v959, -inf
      %963 = vmax.xlane.f32.xlu0 %v962
      %v964 = vpop.xlane.xlu0 %963
      %v965 = vsub.f32 %v959, %v964
      %v966 = vmul.f32 %v965, 1.442695
      %v967 = vpow.pop %v966
      %v968 = vsel %vm792, %v967, 0.0
      %969 = vadd.xlane.f32.xlu0 %v968
      %v970 = vpop.xlane.xlu0 %969
      %v971 = vrcp.pop %v970
      %v972 = vmul.f32 1.0, %v971
      %v973 = vmul.f32 %v967, %v972
      %974 = vrot.lane.b32.xlu0 %v711, 56
      %v975 = vpop.permute.xlu0 %974
      %v977 = vsel %vm807, %v973, 0
      %v979 = vsel %vm811, %v975, 0
      %981 = vmatprep.subr.mxu0 0.0
      %982 = vmatpush1.msra.mxu0 %v979
      %983 = vmatprep.subr.mxu0 0.0
      %984 = vmatpush1.msra.mxu0 0.0
      %985 = vmatprep.subr.mxu0 0.0
      %986 = vmatpush1.msra.mxu0 0.0
      %987 = vmatprep.subr.mxu0 0.0
      %988 = vmatpush1.msra.mxu0 0.0
      %989 = vmatprep.subr.mxu0 0.0
      %990 = vmatpush1.msra.mxu0 0.0
      %991 = vmatprep.subr.mxu0 0.0
      %992 = vmatpush1.msra.mxu0 0.0
      %993 = vmatprep.subr.mxu0 0.0
      %994 = vmatpush1.msra.mxu0 0.0
      %995 = vmatprep.subr.mxu0 0.0
      %996 = vmatpush1.msra.mxu0 0.0
      %997 = vmatprep.subr.mxu0 0.0
      %998 = vmatpush1.msra.mxu0 0.0
      %999 = vmatprep.subr.mxu0 0.0
      %1000 = vmatpush1.msra.mxu0 0.0
      %1001 = vmatprep.subr.mxu0 0.0
      %1002 = vmatpush1.msra.mxu0 0.0
      %1003 = vmatprep.subr.mxu0 0.0
      %1004 = vmatpush1.msra.mxu0 0.0
      %1005 = vmatprep.subr.mxu0 0.0
      %1006 = vmatpush1.msra.mxu0 0.0
      %1007 = vmatprep.subr.mxu0 0.0
      %1008 = vmatpush1.msra.mxu0 0.0
      %1009 = vmatprep.subr.mxu0 0.0
      %1010 = vmatpush1.msra.mxu0 0.0
      %1011 = vmatprep.subr.mxu0 0.0
      %1012 = vmatpush1.msra.mxu0 0.0
      %1013 = vmatprep.subr.mxu0 0.0
      %1014 = vmatpush1.msra.mxu0 0.0
      %1015 = vmatprep.subr.mxu0 0.0
      %1016 = vmatpush1.msra.mxu0 0.0
      %1017 = vmatprep.subr.mxu0 0.0
      %1018 = vmatpush1.msra.mxu0 0.0
      %1019 = vmatprep.subr.mxu0 0.0
      %1020 = vmatpush1.msra.mxu0 0.0
      %1021 = vmatprep.subr.mxu0 0.0
      %1022 = vmatpush1.msra.mxu0 0.0
      %1023 = vmatprep.subr.mxu0 0.0
      %1024 = vmatpush1.msra.mxu0 0.0
      %1025 = vmatprep.subr.mxu0 0.0
      %1026 = vmatpush1.msra.mxu0 0.0
      %1027 = vmatprep.subr.mxu0 0.0
      %1028 = vmatpush1.msra.mxu0 0.0
      %1029 = vmatprep.subr.mxu0 0.0
      %1030 = vmatpush1.msra.mxu0 0.0
      %1031 = vmatprep.subr.mxu0 0.0
      %1032 = vmatpush1.msra.mxu0 0.0
      %1033 = vmatprep.subr.mxu0 0.0
      %1034 = vmatpush1.msra.mxu0 0.0
      %1035 = vmatprep.subr.mxu0 0.0
      %1036 = vmatpush1.msra.mxu0 0.0
      %1037 = vmatprep.subr.mxu0 0.0
      %1038 = vmatpush1.msra.mxu0 0.0
      %1039 = vmatprep.subr.mxu0 0.0
      %1040 = vmatpush1.msra.mxu0 0.0
      %1041 = vmatprep.subr.mxu0 0.0
      %1042 = vmatpush1.msra.mxu0 0.0
      %1043 = vmatprep.subr.mxu0 0.0
      %1044 = vmatpush1.msra.mxu0 0.0
      %1045 = vmatprep.mubr.f32.mxu0 0.0
      %1046 = vmatmul.mubr.f32.gmra.mrb[0].mxu0 %v977
      %v1047 = vpop.f32.mrb[0].mxu0
      %v1048 = vadd.f32 0.0, %v1047
      %v1049 = vpop.f32.mrb[0].mxu0
      %1050 = vdwg.mxu0
      %1051 = vrot.lane.b32.xlu0 %v711, 112
      %v1052 = vpop.permute.xlu0 %1051
      %1053 = vrot.lane.b32.xlu0 %v711, 80
      %v1054 = vpop.permute.xlu0 %1053
      %v1055 = vsel %vm717, %v1052, 0
      %v1057 = vsel %vm717, %v1054, 0
      %1059 = vmatprep.subr.mxu0 0.0
      %1060 = vmatpush1.xpose.msra.mxu0 %v1057
      %1061 = vmatprep.subr.mxu0 0.0
      %1062 = vmatpush1.xpose.msra.mxu0 0.0
      %1063 = vmatprep.subr.mxu0 0.0
      %1064 = vmatpush1.xpose.msra.mxu0 0.0
      %1065 = vmatprep.subr.mxu0 0.0
      %1066 = vmatpush1.xpose.msra.mxu0 0.0
      %1067 = vmatprep.subr.mxu0 0.0
      %1068 = vmatpush1.xpose.msra.mxu0 0.0
      %1069 = vmatprep.subr.mxu0 0.0
      %1070 = vmatpush1.xpose.msra.mxu0 0.0
      %1071 = vmatprep.subr.mxu0 0.0
      %1072 = vmatpush1.xpose.msra.mxu0 0.0
      %1073 = vmatprep.subr.mxu0 0.0
      %1074 = vmatpush1.xpose.msra.mxu0 0.0
      %1075 = vmatprep.subr.mxu0 0.0
      %1076 = vmatpush1.xpose.msra.mxu0 0.0
      %1077 = vmatprep.subr.mxu0 0.0
      %1078 = vmatpush1.xpose.msra.mxu0 0.0
      %1079 = vmatprep.subr.mxu0 0.0
      %1080 = vmatpush1.xpose.msra.mxu0 0.0
      %1081 = vmatprep.subr.mxu0 0.0
      %1082 = vmatpush1.xpose.msra.mxu0 0.0
      %1083 = vmatprep.subr.mxu0 0.0
      %1084 = vmatpush1.xpose.msra.mxu0 0.0
      %1085 = vmatprep.subr.mxu0 0.0
      %1086 = vmatpush1.xpose.msra.mxu0 0.0
      %1087 = vmatprep.subr.mxu0 0.0
      %1088 = vmatpush1.xpose.msra.mxu0 0.0
      %1089 = vmatprep.subr.mxu0 0.0
      %1090 = vmatpush1.xpose.msra.mxu0 0.0
      %1091 = vmatprep.subr.mxu0 0.0
      %1092 = vmatpush1.xpose.msra.mxu0 0.0
      %1093 = vmatprep.subr.mxu0 0.0
      %1094 = vmatpush1.xpose.msra.mxu0 0.0
      %1095 = vmatprep.subr.mxu0 0.0
      %1096 = vmatpush1.xpose.msra.mxu0 0.0
      %1097 = vmatprep.subr.mxu0 0.0
      %1098 = vmatpush1.xpose.msra.mxu0 0.0
      %1099 = vmatprep.subr.mxu0 0.0
      %1100 = vmatpush1.xpose.msra.mxu0 0.0
      %1101 = vmatprep.subr.mxu0 0.0
      %1102 = vmatpush1.xpose.msra.mxu0 0.0
      %1103 = vmatprep.subr.mxu0 0.0
      %1104 = vmatpush1.xpose.msra.mxu0 0.0
      %1105 = vmatprep.subr.mxu0 0.0
      %1106 = vmatpush1.xpose.msra.mxu0 0.0
      %1107 = vmatprep.subr.mxu0 0.0
      %1108 = vmatpush1.xpose.msra.mxu0 0.0
      %1109 = vmatprep.subr.mxu0 0.0
      %1110 = vmatpush1.xpose.msra.mxu0 0.0
      %1111 = vmatprep.subr.mxu0 0.0
      %1112 = vmatpush1.xpose.msra.mxu0 0.0
      %1113 = vmatprep.subr.mxu0 0.0
      %1114 = vmatpush1.xpose.msra.mxu0 0.0
      %1115 = vmatprep.subr.mxu0 0.0
      %1116 = vmatpush1.xpose.msra.mxu0 0.0
      %1117 = vmatprep.subr.mxu0 0.0
      %1118 = vmatpush1.xpose.msra.mxu0 0.0
      %1119 = vmatprep.subr.mxu0 0.0
      %1120 = vmatpush1.xpose.msra.mxu0 0.0
      %1121 = vmatprep.subr.mxu0 0.0
      %1122 = vmatpush1.xpose.msra.mxu0 0.0
      %1123 = vmatprep.mubr.f32.mxu0 0.0
      %1124 = vmatmul.mubr.f32.gmra.mrb[0].mxu0 %v1055
      %v1125 = vpop.f32.mrb[0].mxu0
      %v1126 = vadd.f32 0.0, %v1125
      %v1127 = vpop.f32.mrb[0].mxu0
      %1128 = vdwg.mxu0
      %v1129 = vsel %vm792, %v1126, -inf
      %1130 = vmax.xlane.f32.xlu0 %v1129
      %v1131 = vpop.xlane.xlu0 %1130
      %v1132 = vsub.f32 %v1126, %v1131
      %v1133 = vmul.f32 %v1132, 1.442695
      %v1134 = vpow.pop %v1133
      %v1135 = vsel %vm792, %v1134, 0.0
      %1136 = vadd.xlane.f32.xlu0 %v1135
      %v1137 = vpop.xlane.xlu0 %1136
      %v1138 = vrcp.pop %v1137
      %v1139 = vmul.f32 1.0, %v1138
      %v1140 = vmul.f32 %v1134, %v1139
      %1141 = vrot.lane.b32.xlu0 %v711, 48
      %v1142 = vpop.permute.xlu0 %1141
      %v1144 = vsel %vm807, %v1140, 0
      %v1146 = vsel %vm811, %v1142, 0
      %1148 = vmatprep.subr.mxu0 0.0
      %1149 = vmatpush1.msra.mxu0 %v1146
      %1150 = vmatprep.subr.mxu0 0.0
      %1151 = vmatpush1.msra.mxu0 0.0
      %1152 = vmatprep.subr.mxu0 0.0
      %1153 = vmatpush1.msra.mxu0 0.0
      %1154 = vmatprep.subr.mxu0 0.0
      %1155 = vmatpush1.msra.mxu0 0.0
      %1156 = vmatprep.subr.mxu0 0.0
      %1157 = vmatpush1.msra.mxu0 0.0
      %1158 = vmatprep.subr.mxu0 0.0
      %1159 = vmatpush1.msra.mxu0 0.0
      %1160 = vmatprep.subr.mxu0 0.0
      %1161 = vmatpush1.msra.mxu0 0.0
      %1162 = vmatprep.subr.mxu0 0.0
      %1163 = vmatpush1.msra.mxu0 0.0
      %1164 = vmatprep.subr.mxu0 0.0
      %1165 = vmatpush1.msra.mxu0 0.0
      %1166 = vmatprep.subr.mxu0 0.0
      %1167 = vmatpush1.msra.mxu0 0.0
      %1168 = vmatprep.subr.mxu0 0.0
      %1169 = vmatpush1.msra.mxu0 0.0
      %1170 = vmatprep.subr.mxu0 0.0
      %1171 = vmatpush1.msra.mxu0 0.0
      %1172 = vmatprep.subr.mxu0 0.0
      %1173 = vmatpush1.msra.mxu0 0.0
      %1174 = vmatprep.subr.mxu0 0.0
      %1175 = vmatpush1.msra.mxu0 0.0
      %1176 = vmatprep.subr.mxu0 0.0
      %1177 = vmatpush1.msra.mxu0 0.0
      %1178 = vmatprep.subr.mxu0 0.0
      %1179 = vmatpush1.msra.mxu0 0.0
      %1180 = vmatprep.subr.mxu0 0.0
      %1181 = vmatpush1.msra.mxu0 0.0
      %1182 = vmatprep.subr.mxu0 0.0
      %1183 = vmatpush1.msra.mxu0 0.0
      %1184 = vmatprep.subr.mxu0 0.0
      %1185 = vmatpush1.msra.mxu0 0.0
      %1186 = vmatprep.subr.mxu0 0.0
      %1187 = vmatpush1.msra.mxu0 0.0
      %1188 = vmatprep.subr.mxu0 0.0
      %1189 = vmatpush1.msra.mxu0 0.0
      %1190 = vmatprep.subr.mxu0 0.0
      %1191 = vmatpush1.msra.mxu0 0.0
      %1192 = vmatprep.subr.mxu0 0.0
      %1193 = vmatpush1.msra.mxu0 0.0
      %1194 = vmatprep.subr.mxu0 0.0
      %1195 = vmatpush1.msra.mxu0 0.0
      %1196 = vmatprep.subr.mxu0 0.0
      %1197 = vmatpush1.msra.mxu0 0.0
      %1198 = vmatprep.subr.mxu0 0.0
      %1199 = vmatpush1.msra.mxu0 0.0
      %1200 = vmatprep.subr.mxu0 0.0
      %1201 = vmatpush1.msra.mxu0 0.0
      %1202 = vmatprep.subr.mxu0 0.0
      %1203 = vmatpush1.msra.mxu0 0.0
      %1204 = vmatprep.subr.mxu0 0.0
      %1205 = vmatpush1.msra.mxu0 0.0
      %1206 = vmatprep.subr.mxu0 0.0
      %1207 = vmatpush1.msra.mxu0 0.0
      %1208 = vmatprep.subr.mxu0 0.0
      %1209 = vmatpush1.msra.mxu0 0.0
      %1210 = vmatprep.subr.mxu0 0.0
      %1211 = vmatpush1.msra.mxu0 0.0
      %1212 = vmatprep.mubr.f32.mxu0 0.0
      %1213 = vmatmul.mubr.f32.gmra.mrb[0].mxu0 %v1144
      %v1214 = vpop.f32.mrb[0].mxu0
      %v1215 = vadd.f32 0.0, %v1214
      %v1216 = vpop.f32.mrb[0].mxu0
      %1217 = vdwg.mxu0
      %1218 = vrot.lane.b32.xlu0 %v711, 104
      %v1219 = vpop.permute.xlu0 %1218
      %1220 = vrot.lane.b32.xlu0 %v711, 72
      %v1221 = vpop.permute.xlu0 %1220
      %v1222 = vsel %vm717, %v1219, 0
      %v1224 = vsel %vm717, %v1221, 0
      %1226 = vmatprep.subr.mxu0 0.0
      %1227 = vmatpush1.xpose.msra.mxu0 %v1224
      %1228 = vmatprep.subr.mxu0 0.0
      %1229 = vmatpush1.xpose.msra.mxu0 0.0
      %1230 = vmatprep.subr.mxu0 0.0
      %1231 = vmatpush1.xpose.msra.mxu0 0.0
      %1232 = vmatprep.subr.mxu0 0.0
      %1233 = vmatpush1.xpose.msra.mxu0 0.0
      %1234 = vmatprep.subr.mxu0 0.0
      %1235 = vmatpush1.xpose.msra.mxu0 0.0
      %1236 = vmatprep.subr.mxu0 0.0
      %1237 = vmatpush1.xpose.msra.mxu0 0.0
      %1238 = vmatprep.subr.mxu0 0.0
      %1239 = vmatpush1.xpose.msra.mxu0 0.0
      %1240 = vmatprep.subr.mxu0 0.0
      %1241 = vmatpush1.xpose.msra.mxu0 0.0
      %1242 = vmatprep.subr.mxu0 0.0
      %1243 = vmatpush1.xpose.msra.mxu0 0.0
      %1244 = vmatprep.subr.mxu0 0.0
      %1245 = vmatpush1.xpose.msra.mxu0 0.0
      %1246 = vmatprep.subr.mxu0 0.0
      %1247 = vmatpush1.xpose.msra.mxu0 0.0
      %1248 = vmatprep.subr.mxu0 0.0
      %1249 = vmatpush1.xpose.msra.mxu0 0.0
      %1250 = vmatprep.subr.mxu0 0.0
      %1251 = vmatpush1.xpose.msra.mxu0 0.0
      %1252 = vmatprep.subr.mxu0 0.0
      %1253 = vmatpush1.xpose.msra.mxu0 0.0
      %1254 = vmatprep.subr.mxu0 0.0
      %1255 = vmatpush1.xpose.msra.mxu0 0.0
      %1256 = vmatprep.subr.mxu0 0.0
      %1257 = vmatpush1.xpose.msra.mxu0 0.0
      %1258 = vmatprep.subr.mxu0 0.0
      %1259 = vmatpush1.xpose.msra.mxu0 0.0
      %1260 = vmatprep.subr.mxu0 0.0
      %1261 = vmatpush1.xpose.msra.mxu0 0.0
      %1262 = vmatprep.subr.mxu0 0.0
      %1263 = vmatpush1.xpose.msra.mxu0 0.0
      %1264 = vmatprep.subr.mxu0 0.0
      %1265 = vmatpush1.xpose.msra.mxu0 0.0
      %1266 = vmatprep.subr.mxu0 0.0
      %1267 = vmatpush1.xpose.msra.mxu0 0.0
      %1268 = vmatprep.subr.mxu0 0.0
      %1269 = vmatpush1.xpose.msra.mxu0 0.0
      %1270 = vmatprep.subr.mxu0 0.0
      %1271 = vmatpush1.xpose.msra.mxu0 0.0
      %1272 = vmatprep.subr.mxu0 0.0
      %1273 = vmatpush1.xpose.msra.mxu0 0.0
      %1274 = vmatprep.subr.mxu0 0.0
      %1275 = vmatpush1.xpose.msra.mxu0 0.0
      %1276 = vmatprep.subr.mxu0 0.0
      %1277 = vmatpush1.xpose.msra.mxu0 0.0
      %1278 = vmatprep.subr.mxu0 0.0
      %1279 = vmatpush1.xpose.msra.mxu0 0.0
      %1280 = vmatprep.subr.mxu0 0.0
      %1281 = vmatpush1.xpose.msra.mxu0 0.0
      %1282 = vmatprep.subr.mxu0 0.0
      %1283 = vmatpush1.xpose.msra.mxu0 0.0
      %1284 = vmatprep.subr.mxu0 0.0
      %1285 = vmatpush1.xpose.msra.mxu0 0.0
      %1286 = vmatprep.subr.mxu0 0.0
      %1287 = vmatpush1.xpose.msra.mxu0 0.0
      %1288 = vmatprep.subr.mxu0 0.0
      %1289 = vmatpush1.xpose.msra.mxu0 0.0
      %1290 = vmatprep.mubr.f32.mxu0 0.0
      %1291 = vmatmul.mubr.f32.gmra.mrb[0].mxu0 %v1222
      %v1292 = vpop.f32.mrb[0].mxu0
      %v1293 = vadd.f32 0.0, %v1292
      %v1294 = vpop.f32.mrb[0].mxu0
      %1295 = vdwg.mxu0
      %v1296 = vsel %vm792, %v1293, -inf
      %1297 = vmax.xlane.f32.xlu0 %v1296
      %v1298 = vpop.xlane.xlu0 %1297
      %v1299 = vsub.f32 %v1293, %v1298
      %v1300 = vmul.f32 %v1299, 1.442695
      %v1301 = vpow.pop %v1300
      %v1302 = vsel %vm792, %v1301, 0.0
      %1303 = vadd.xlane.f32.xlu0 %v1302
      %v1304 = vpop.xlane.xlu0 %1303
      %v1305 = vrcp.pop %v1304
      %v1306 = vmul.f32 1.0, %v1305
      %v1307 = vmul.f32 %v1301, %v1306
      %1308 = vrot.lane.b32.xlu0 %v711, 40
      %v1309 = vpop.permute.xlu0 %1308
      %v1311 = vsel %vm807, %v1307, 0
      %v1313 = vsel %vm811, %v1309, 0
      %1315 = vmatprep.subr.mxu0 0.0
      %1316 = vmatpush1.msra.mxu0 %v1313
      %1317 = vmatprep.subr.mxu0 0.0
      %1318 = vmatpush1.msra.mxu0 0.0
      %1319 = vmatprep.subr.mxu0 0.0
      %1320 = vmatpush1.msra.mxu0 0.0
      %1321 = vmatprep.subr.mxu0 0.0
      %1322 = vmatpush1.msra.mxu0 0.0
      %1323 = vmatprep.subr.mxu0 0.0
      %1324 = vmatpush1.msra.mxu0 0.0
      %1325 = vmatprep.subr.mxu0 0.0
      %1326 = vmatpush1.msra.mxu0 0.0
      %1327 = vmatprep.subr.mxu0 0.0
      %1328 = vmatpush1.msra.mxu0 0.0
      %1329 = vmatprep.subr.mxu0 0.0
      %1330 = vmatpush1.msra.mxu0 0.0
      %1331 = vmatprep.subr.mxu0 0.0
      %1332 = vmatpush1.msra.mxu0 0.0
      %1333 = vmatprep.subr.mxu0 0.0
      %1334 = vmatpush1.msra.mxu0 0.0
      %1335 = vmatprep.subr.mxu0 0.0
      %1336 = vmatpush1.msra.mxu0 0.0
      %1337 = vmatprep.subr.mxu0 0.0
      %1338 = vmatpush1.msra.mxu0 0.0
      %1339 = vmatprep.subr.mxu0 0.0
      %1340 = vmatpush1.msra.mxu0 0.0
      %1341 = vmatprep.subr.mxu0 0.0
      %1342 = vmatpush1.msra.mxu0 0.0
      %1343 = vmatprep.subr.mxu0 0.0
      %1344 = vmatpush1.msra.mxu0 0.0
      %1345 = vmatprep.subr.mxu0 0.0
      %1346 = vmatpush1.msra.mxu0 0.0
      %1347 = vmatprep.subr.mxu0 0.0
      %1348 = vmatpush1.msra.mxu0 0.0
      %1349 = vmatprep.subr.mxu0 0.0
      %1350 = vmatpush1.msra.mxu0 0.0
      %1351 = vmatprep.subr.mxu0 0.0
      %1352 = vmatpush1.msra.mxu0 0.0
      %1353 = vmatprep.subr.mxu0 0.0
      %1354 = vmatpush1.msra.mxu0 0.0
      %1355 = vmatprep.subr.mxu0 0.0
      %1356 = vmatpush1.msra.mxu0 0.0
      %1357 = vmatprep.subr.mxu0 0.0
      %1358 = vmatpush1.msra.mxu0 0.0
      %1359 = vmatprep.subr.mxu0 0.0
      %1360 = vmatpush1.msra.mxu0 0.0
      %1361 = vmatprep.subr.mxu0 0.0
      %1362 = vmatpush1.msra.mxu0 0.0
      %1363 = vmatprep.subr.mxu0 0.0
      %1364 = vmatpush1.msra.mxu0 0.0
      %1365 = vmatprep.subr.mxu0 0.0
      %1366 = vmatpush1.msra.mxu0 0.0
      %1367 = vmatprep.subr.mxu0 0.0
      %1368 = vmatpush1.msra.mxu0 0.0
      %1369 = vmatprep.subr.mxu0 0.0
      %1370 = vmatpush1.msra.mxu0 0.0
      %1371 = vmatprep.subr.mxu0 0.0
      %1372 = vmatpush1.msra.mxu0 0.0
      %1373 = vmatprep.subr.mxu0 0.0
      %1374 = vmatpush1.msra.mxu0 0.0
      %1375 = vmatprep.subr.mxu0 0.0
      %1376 = vmatpush1.msra.mxu0 0.0
      %1377 = vmatprep.subr.mxu0 0.0
      %1378 = vmatpush1.msra.mxu0 0.0
      %1379 = vmatprep.mubr.f32.mxu0 0.0
      %1380 = vmatmul.mubr.f32.gmra.mrb[0].mxu0 %v1311
      %v1381 = vpop.f32.mrb[0].mxu0
      %v1382 = vadd.f32 0.0, %v1381
      %v1383 = vpop.f32.mrb[0].mxu0
      %1384 = vdwg.mxu0
      %1386 = vrot.lane.b32.xlu0 %v1048, 8
      %v1387 = vpop.permute.xlu0 %1386
      %1390 = vrot.lane.b32.xlu0 %v1215, 16
      %v1391 = vpop.permute.xlu0 %1390
      %1394 = vrot.lane.b32.xlu0 %v1382, 24
      %v1395 = vpop.permute.xlu0 %1394
      %v1397 = vsel %vm717, %v881, %v1387
      %vm1398 = vcmask 130048
      %v1399 = vsel %vm1398, %v1397, %v1391
      %vm1400 = vcmask 195584
      %v1401 = vsel %vm1400, %v1399, %v1395
      %v1402 = vld [vmem:[%s7] sm:$0xff]
      %v1403 = vld [vmem:[%s7 + $0x8] sm:$0xff]
      %v1404 = vld [vmem:[%s7 + $0x10] sm:$0xff]
      %v1405 = vld [vmem:[%s7 + $0x18] sm:$0xff]
      %v1407 = vsel %vm640, %v1401, 0
      %1409 = vmatprep.subr.mxu0 0.0
      %1410 = vmatpush1.msra.mxu0 %v1402
      %1411 = vmatprep.subr.mxu0 0.0
      %1412 = vmatpush1.msra.mxu0 %v1403
      %1413 = vmatprep.subr.mxu0 0.0
      %1414 = vmatpush1.msra.mxu0 %v1404
      %1415 = vmatprep.subr.mxu0 0.0
      %1416 = vmatpush1.msra.mxu0 %v1405
      %1417 = vmatprep.subr.mxu0 0.0
      %1418 = vmatpush1.msra.mxu0 0.0
      %1419 = vmatprep.subr.mxu0 0.0
      %1420 = vmatpush1.msra.mxu0 0.0
      %1421 = vmatprep.subr.mxu0 0.0
      %1422 = vmatpush1.msra.mxu0 0.0
      %1423 = vmatprep.subr.mxu0 0.0
      %1424 = vmatpush1.msra.mxu0 0.0
      %1425 = vmatprep.subr.mxu0 0.0
      %1426 = vmatpush1.msra.mxu0 0.0
      %1427 = vmatprep.subr.mxu0 0.0
      %1428 = vmatpush1.msra.mxu0 0.0
      %1429 = vmatprep.subr.mxu0 0.0
      %1430 = vmatpush1.msra.mxu0 0.0
      %1431 = vmatprep.subr.mxu0 0.0
      %1432 = vmatpush1.msra.mxu0 0.0
      %1433 = vmatprep.subr.mxu0 0.0
      %1434 = vmatpush1.msra.mxu0 0.0
      %1435 = vmatprep.subr.mxu0 0.0
      %1436 = vmatpush1.msra.mxu0 0.0
      %1437 = vmatprep.subr.mxu0 0.0
      %1438 = vmatpush1.msra.mxu0 0.0
      %1439 = vmatprep.subr.mxu0 0.0
      %1440 = vmatpush1.msra.mxu0 0.0
      %1441 = vmatprep.subr.mxu0 0.0
      %1442 = vmatpush1.msra.mxu0 0.0
      %1443 = vmatprep.subr.mxu0 0.0
      %1444 = vmatpush1.msra.mxu0 0.0
      %1445 = vmatprep.subr.mxu0 0.0
      %1446 = vmatpush1.msra.mxu0 0.0
      %1447 = vmatprep.subr.mxu0 0.0
      %1448 = vmatpush1.msra.mxu0 0.0
      %1449 = vmatprep.subr.mxu0 0.0
      %1450 = vmatpush1.msra.mxu0 0.0
      %1451 = vmatprep.subr.mxu0 0.0
      %1452 = vmatpush1.msra.mxu0 0.0
      %1453 = vmatprep.subr.mxu0 0.0
      %1454 = vmatpush1.msra.mxu0 0.0
      %1455 = vmatprep.subr.mxu0 0.0
      %1456 = vmatpush1.msra.mxu0 0.0
      %1457 = vmatprep.subr.mxu0 0.0
      %1458 = vmatpush1.msra.mxu0 0.0
      %1459 = vmatprep.subr.mxu0 0.0
      %1460 = vmatpush1.msra.mxu0 0.0
      %1461 = vmatprep.subr.mxu0 0.0
      %1462 = vmatpush1.msra.mxu0 0.0
      %1463 = vmatprep.subr.mxu0 0.0
      %1464 = vmatpush1.msra.mxu0 0.0
      %1465 = vmatprep.subr.mxu0 0.0
      %1466 = vmatpush1.msra.mxu0 0.0
      %1467 = vmatprep.subr.mxu0 0.0
      %1468 = vmatpush1.msra.mxu0 0.0
      %1469 = vmatprep.subr.mxu0 0.0
      %1470 = vmatpush1.msra.mxu0 0.0
      %1471 = vmatprep.subr.mxu0 0.0
      %1472 = vmatpush1.msra.mxu0 0.0
      %1473 = vmatprep.mubr.f32.mxu0 0.0
      %1474 = vmatmul.mubr.f32.gmra.mrb[0].mxu0 %v1407
      %v1475 = vpop.f32.mrb[0].mxu0
      %v1476 = vadd.f32 0.0, %v1475
      %v1477 = vpop.f32.mrb[0].mxu0
      %1478 = vdwg.mxu0
      %v1479 = vadd.f32 %v595, %v1476
      %v1480 = vld [vmem:[%s8] sm:$0x1]
      %v1482 = vlaneseq
      %v1483 = vshrl.u32 %v1482, 7
      %v1484 = vsub.s32 0, %v1483
      %v1485 = vrot.slane %v1480, %v1484
      %v1487 = vadd.f32 %v1479, %v1485
      %v1488 = vld [vmem:[%s9] sm:$0x1]
      %v1489 = vld [vmem:[%s10] sm:$0x1]
      %v1490 = vsel %vm600, %v1487, 0.0
      %1491 = vadd.xlane.f32.xlu0 %v1490
      %v1492 = vpop.xlane.xlu0 %1491
      %v1493 = vmul.f32 %v1492, %v604
      %v1494 = vsub.f32 %v1487, %v1493
      %v1495 = vmul.f32 %v1494, %v1494
      %v1496 = vsel %vm600, %v1495, 0.0
      %1497 = vadd.xlane.f32.xlu0 %v1496
      %v1498 = vpop.xlane.xlu0 %1497
      %v1499 = vmul.f32 %v1498, %v604
      %v1500 = vadd.f32 %v1499, 1e-06
      %v1501 = vrsqrt.pop %v1500
      %v1502 = vmul.f32 %v1494, %v1501
      %v1504 = vlaneseq
      %v1505 = vshrl.u32 %v1504, 7
      %v1506 = vsub.s32 0, %v1505
      %v1507 = vrot.slane %v1488, %v1506
      %v1509 = vmul.f32 %v1502, %v1507
      %v1511 = vlaneseq
      %v1512 = vshrl.u32 %v1511, 7
      %v1513 = vsub.s32 0, %v1512
      %v1514 = vrot.slane %v1489, %v1513
      %v1516 = vadd.f32 %v1509, %v1514
      %v1517 = vld [vmem:[%s11] sm:$0xff]
      %v1518 = vld [vmem:[%s11 + $0x8] sm:$0xff]
      %v1519 = vld [vmem:[%s11 + $0x10] sm:$0xff]
      %v1520 = vld [vmem:[%s11 + $0x18] sm:$0xff]
      %v1521 = vld [vmem:[%s12] sm:$0x1]
      %v1523 = vlaneseq
      %v1524 = vshrl.u32 %v1523, 7
      %v1525 = vsub.s32 0, %v1524
      %v1526 = vrot.slane %v1521, %v1525
      %v1529 = vsel %vm640, %v1516, 0
      %1531 = vmatprep.subr.mxu0 0.0
      %1532 = vmatpush1.msra.mxu0 %v1517
      %1533 = vmatprep.subr.mxu0 0.0
      %1534 = vmatpush1.msra.mxu0 %v1518
      %1535 = vmatprep.subr.mxu0 0.0
      %1536 = vmatpush1.msra.mxu0 %v1519
      %1537 = vmatprep.subr.mxu0 0.0
      %1538 = vmatpush1.msra.mxu0 %v1520
      %1539 = vmatprep.subr.mxu0 0.0
      %1540 = vmatpush1.msra.mxu0 0.0
      %1541 = vmatprep.subr.mxu0 0.0
      %1542 = vmatpush1.msra.mxu0 0.0
      %1543 = vmatprep.subr.mxu0 0.0
      %1544 = vmatpush1.msra.mxu0 0.0
      %1545 = vmatprep.subr.mxu0 0.0
      %1546 = vmatpush1.msra.mxu0 0.0
      %1547 = vmatprep.subr.mxu0 0.0
      %1548 = vmatpush1.msra.mxu0 0.0
      %1549 = vmatprep.subr.mxu0 0.0
      %1550 = vmatpush1.msra.mxu0 0.0
      %1551 = vmatprep.subr.mxu0 0.0
      %1552 = vmatpush1.msra.mxu0 0.0
      %1553 = vmatprep.subr.mxu0 0.0
      %1554 = vmatpush1.msra.mxu0 0.0
      %1555 = vmatprep.subr.mxu0 0.0
      %1556 = vmatpush1.msra.mxu0 0.0
      %1557 = vmatprep.subr.mxu0 0.0
      %1558 = vmatpush1.msra.mxu0 0.0
      %1559 = vmatprep.subr.mxu0 0.0
      %1560 = vmatpush1.msra.mxu0 0.0
      %1561 = vmatprep.subr.mxu0 0.0
      %1562 = vmatpush1.msra.mxu0 0.0
      %1563 = vmatprep.subr.mxu0 0.0
      %1564 = vmatpush1.msra.mxu0 0.0
      %1565 = vmatprep.subr.mxu0 0.0
      %1566 = vmatpush1.msra.mxu0 0.0
      %1567 = vmatprep.subr.mxu0 0.0
      %1568 = vmatpush1.msra.mxu0 0.0
      %1569 = vmatprep.subr.mxu0 0.0
      %1570 = vmatpush1.msra.mxu0 0.0
      %1571 = vmatprep.subr.mxu0 0.0
      %1572 = vmatpush1.msra.mxu0 0.0
      %1573 = vmatprep.subr.mxu0 0.0
      %1574 = vmatpush1.msra.mxu0 0.0
      %1575 = vmatprep.subr.mxu0 0.0
      %1576 = vmatpush1.msra.mxu0 0.0
      %1577 = vmatprep.subr.mxu0 0.0
      %1578 = vmatpush1.msra.mxu0 0.0
      %1579 = vmatprep.subr.mxu0 0.0
      %1580 = vmatpush1.msra.mxu0 0.0
      %1581 = vmatprep.subr.mxu0 0.0
      %1582 = vmatpush1.msra.mxu0 0.0
      %1583 = vmatprep.subr.mxu0 0.0
      %1584 = vmatpush1.msra.mxu0 0.0
      %1585 = vmatprep.subr.mxu0 0.0
      %1586 = vmatpush1.msra.mxu0 0.0
      %1587 = vmatprep.subr.mxu0 0.0
      %1588 = vmatpush1.msra.mxu0 0.0
      %1589 = vmatprep.subr.mxu0 0.0
      %1590 = vmatpush1.msra.mxu0 0.0
      %1591 = vmatprep.subr.mxu0 0.0
      %1592 = vmatpush1.msra.mxu0 0.0
      %1593 = vmatprep.subr.mxu0 0.0
      %1594 = vmatpush1.msra.mxu0 0.0
      %1595 = vmatprep.mubr.f32.mxu0 0.0
      %1596 = vmatmul.mubr.f32.gmra.mrb[0].mxu0 %v1529
      %v1597 = vpop.f32.mrb[0].mxu0
      %v1598 = vadd.f32 %v1526, %v1597
      %v1599 = vpop.f32.mrb[0].mxu0
      %1600 = vdwg.mxu0
      %v1601 = vmul.f32 %v1598, 0.5
      %v1602 = vmul.f32 %v1598, 0.70710677
      %vm1603 = vcmp.ge.f32.partialorder %v1602, 0.0
      %v1604 = vsel %vm1603, 1.0, -1.0
      %v1605 = vand.u32 2147483647, %v1602
      %v1606 = vmul.f32 %v1605, 0.3275911
      %v1607 = vadd.f32 %v1606, 1.0
      %v1608 = vrcp.pop %v1607
      %v1609 = vmul.f32 1.0, %v1608
      %v1610 = vmul.f32 %v1609, 1.0614054
      %v1611 = vadd.f32 %v1610, -1.4531521
      %v1612 = vmul.f32 %v1611, %v1609
      %v1613 = vadd.f32 %v1612, 1.4214138
      %v1614 = vmul.f32 %v1613, %v1609
      %v1615 = vadd.f32 %v1614, -0.28449672
      %v1616 = vmul.f32 %v1615, %v1609
      %v1617 = vadd.f32 %v1616, 0.2548296
      %v1618 = vmul.f32 %v1617, %v1609
      %v1619 = vsub.f32 0.0, %v1605
      %v1620 = vmul.f32 %v1619, %v1605
      %v1621 = vmul.f32 %v1620, 1.442695
      %v1622 = vpow.pop %v1621
      %v1623 = vmul.f32 %v1618, %v1622
      %v1624 = vsub.f32 1.0, %v1623
      %v1625 = vmul.f32 %v1604, %v1624
      %v1626 = vadd.f32 %v1625, 1.0
      %v1627 = vmul.f32 %v1601, %v1626
      %v1628 = vld [vmem:[%s13] sm:$0xff]
      %v1629 = vld [vmem:[%s13 + $0x8] sm:$0xff]
      %v1630 = vld [vmem:[%s13 + $0x10] sm:$0xff]
      %v1631 = vld [vmem:[%s13 + $0x18] sm:$0xff]
      %v1632 = vld [vmem:[%s13 + $0x20] sm:$0xff]
      %v1633 = vld [vmem:[%s13 + $0x28] sm:$0xff]
      %v1634 = vld [vmem:[%s13 + $0x30] sm:$0xff]
      %v1635 = vld [vmem:[%s13 + $0x38] sm:$0xff]
      %v1636 = vld [vmem:[%s13 + $0x40] sm:$0xff]
      %v1637 = vld [vmem:[%s13 + $0x48] sm:$0xff]
      %v1638 = vld [vmem:[%s13 + $0x50] sm:$0xff]
      %v1639 = vld [vmem:[%s13 + $0x58] sm:$0xff]
      %v1640 = vld [vmem:[%s13 + $0x60] sm:$0xff]
      %v1641 = vld [vmem:[%s13 + $0x68] sm:$0xff]
      %v1642 = vld [vmem:[%s13 + $0x70] sm:$0xff]
      %v1643 = vld [vmem:[%s13 + $0x78] sm:$0xff]
      %1644 = vmatprep.subr.mxu0 0.0
      %1645 = vmatpush1.msra.mxu0 %v1628
      %1646 = vmatprep.subr.mxu0 0.0
      %1647 = vmatpush1.msra.mxu0 %v1629
      %1648 = vmatprep.subr.mxu0 0.0
      %1649 = vmatpush1.msra.mxu0 %v1630
      %1650 = vmatprep.subr.mxu0 0.0
      %1651 = vmatpush1.msra.mxu0 %v1631
      %1652 = vmatprep.subr.mxu0 0.0
      %1653 = vmatpush1.msra.mxu0 %v1632
      %1654 = vmatprep.subr.mxu0 0.0
      %1655 = vmatpush1.msra.mxu0 %v1633
      %1656 = vmatprep.subr.mxu0 0.0
      %1657 = vmatpush1.msra.mxu0 %v1634
      %1658 = vmatprep.subr.mxu0 0.0
      %1659 = vmatpush1.msra.mxu0 %v1635
      %1660 = vmatprep.subr.mxu0 0.0
      %1661 = vmatpush1.msra.mxu0 %v1636
      %1662 = vmatprep.subr.mxu0 0.0
      %1663 = vmatpush1.msra.mxu0 %v1637
      %1664 = vmatprep.subr.mxu0 0.0
      %1665 = vmatpush1.msra.mxu0 %v1638
      %1666 = vmatprep.subr.mxu0 0.0
      %1667 = vmatpush1.msra.mxu0 %v1639
      %1668 = vmatprep.subr.mxu0 0.0
      %1669 = vmatpush1.msra.mxu0 %v1640
      %1670 = vmatprep.subr.mxu0 0.0
      %1671 = vmatpush1.msra.mxu0 %v1641
      %1672 = vmatprep.subr.mxu0 0.0
      %1673 = vmatpush1.msra.mxu0 %v1642
      %1674 = vmatprep.subr.mxu0 0.0
      %1675 = vmatpush1.msra.mxu0 %v1643
      %1676 = vmatprep.subr.mxu0 0.0
      %1677 = vmatpush1.msra.mxu0 0.0
      %1678 = vmatprep.subr.mxu0 0.0
      %1679 = vmatpush1.msra.mxu0 0.0
      %1680 = vmatprep.subr.mxu0 0.0
      %1681 = vmatpush1.msra.mxu0 0.0
      %1682 = vmatprep.subr.mxu0 0.0
      %1683 = vmatpush1.msra.mxu0 0.0
      %1684 = vmatprep.subr.mxu0 0.0
      %1685 = vmatpush1.msra.mxu0 0.0
      %1686 = vmatprep.subr.mxu0 0.0
      %1687 = vmatpush1.msra.mxu0 0.0
      %1688 = vmatprep.subr.mxu0 0.0
      %1689 = vmatpush1.msra.mxu0 0.0
      %1690 = vmatprep.subr.mxu0 0.0
      %1691 = vmatpush1.msra.mxu0 0.0
      %1692 = vmatprep.subr.mxu0 0.0
      %1693 = vmatpush1.msra.mxu0 0.0
      %1694 = vmatprep.subr.mxu0 0.0
      %1695 = vmatpush1.msra.mxu0 0.0
      %1696 = vmatprep.subr.mxu0 0.0
      %1697 = vmatpush1.msra.mxu0 0.0
      %1698 = vmatprep.subr.mxu0 0.0
      %1699 = vmatpush1.msra.mxu0 0.0
      %1700 = vmatprep.subr.mxu0 0.0
      %1701 = vmatpush1.msra.mxu0 0.0
      %1702 = vmatprep.subr.mxu0 0.0
      %1703 = vmatpush1.msra.mxu0 0.0
      %1704 = vmatprep.subr.mxu0 0.0
      %1705 = vmatpush1.msra.mxu0 0.0
      %1706 = vmatprep.subr.mxu0 0.0
      %1707 = vmatpush1.msra.mxu0 0.0
      %1708 = vmatprep.mubr.f32.mxu0 0.0
      %1709 = vmatmul.mubr.f32.gmra.mrb[0].mxu0 %v1627
      %v1710 = vpop.f32.mrb[0].mxu0
      %v1711 = vadd.f32 0.0, %v1710
      %v1712 = vpop.f32.mrb[0].mxu0
      %1713 = vdwg.mxu0
      %v1714 = vadd.f32 %v1487, %v1711
      %v1715 = vld [vmem:[%s14] sm:$0x1]
      %v1717 = vlaneseq
      %v1718 = vshrl.u32 %v1717, 7
      %v1719 = vsub.s32 0, %v1718
      %v1720 = vrot.slane %v1715, %v1719
      %v1722 = vadd.f32 %v1714, %v1720
      %s1723 = scalar_lea.vmem %s3, 1
      %v1724 = vld [vmem:[%s1723] sm:$0x1]
      %s1725 = scalar_lea.vmem %s4, 1
      %v1726 = vld [vmem:[%s1725] sm:$0x1]
      %v1727 = vsel %vm600, %v1722, 0.0
      %1728 = vadd.xlane.f32.xlu0 %v1727
      %v1729 = vpop.xlane.xlu0 %1728
      %v1730 = vmul.f32 %v1729, %v604
      %v1731 = vsub.f32 %v1722, %v1730
      %v1732 = vmul.f32 %v1731, %v1731
      %v1733 = vsel %vm600, %v1732, 0.0
      %1734 = vadd.xlane.f32.xlu0 %v1733
      %v1735 = vpop.xlane.xlu0 %1734
      %v1736 = vmul.f32 %v1735, %v604
      %v1737 = vadd.f32 %v1736, 1e-06
      %v1738 = vrsqrt.pop %v1737
      %v1739 = vmul.f32 %v1731, %v1738
      %v1741 = vlaneseq
      %v1742 = vshrl.u32 %v1741, 7
      %v1743 = vsub.s32 0, %v1742
      %v1744 = vrot.slane %v1724, %v1743
      %v1746 = vmul.f32 %v1739, %v1744
      %v1748 = vlaneseq
      %v1749 = vshrl.u32 %v1748, 7
      %v1750 = vsub.s32 0, %v1749
      %v1751 = vrot.slane %v1726, %v1750
      %v1753 = vadd.f32 %v1746, %v1751
      %s1754 = scalar_lea.vmem %s5, 32
      %v1755 = vld [vmem:[%s1754] sm:$0xff]
      %v1756 = vld [vmem:[%s1754 + $0x8] sm:$0xff]
      %v1757 = vld [vmem:[%s1754 + $0x10] sm:$0xff]
      %v1758 = vld [vmem:[%s1754 + $0x18] sm:$0xff]
      %s1759 = scalar_lea.vmem %s6, 1
      %v1760 = vld [vmem:[%s1759] sm:$0x1]
      %v1762 = vlaneseq
      %v1763 = vshrl.u32 %v1762, 7
      %v1764 = vsub.s32 0, %v1763
      %v1765 = vrot.slane %v1760, %v1764
      %v1768 = vsel %vm640, %v1753, 0
      %1770 = vmatprep.subr.mxu0 0.0
      %1771 = vmatpush1.msra.mxu0 %v1755
      %1772 = vmatprep.subr.mxu0 0.0
      %1773 = vmatpush1.msra.mxu0 %v1756
      %1774 = vmatprep.subr.mxu0 0.0
      %1775 = vmatpush1.msra.mxu0 %v1757
      %1776 = vmatprep.subr.mxu0 0.0
      %1777 = vmatpush1.msra.mxu0 %v1758
      %1778 = vmatprep.subr.mxu0 0.0
      %1779 = vmatpush1.msra.mxu0 0.0
      %1780 = vmatprep.subr.mxu0 0.0
      %1781 = vmatpush1.msra.mxu0 0.0
      %1782 = vmatprep.subr.mxu0 0.0
      %1783 = vmatpush1.msra.mxu0 0.0
      %1784 = vmatprep.subr.mxu0 0.0
      %1785 = vmatpush1.msra.mxu0 0.0
      %1786 = vmatprep.subr.mxu0 0.0
      %1787 = vmatpush1.msra.mxu0 0.0
      %1788 = vmatprep.subr.mxu0 0.0
      %1789 = vmatpush1.msra.mxu0 0.0
      %1790 = vmatprep.subr.mxu0 0.0
      %1791 = vmatpush1.msra.mxu0 0.0
      %1792 = vmatprep.subr.mxu0 0.0
      %1793 = vmatpush1.msra.mxu0 0.0
      %1794 = vmatprep.subr.mxu0 0.0
      %1795 = vmatpush1.msra.mxu0 0.0
      %1796 = vmatprep.subr.mxu0 0.0
      %1797 = vmatpush1.msra.mxu0 0.0
      %1798 = vmatprep.subr.mxu0 0.0
      %1799 = vmatpush1.msra.mxu0 0.0
      %1800 = vmatprep.subr.mxu0 0.0
      %1801 = vmatpush1.msra.mxu0 0.0
      %1802 = vmatprep.subr.mxu0 0.0
      %1803 = vmatpush1.msra.mxu0 0.0
      %1804 = vmatprep.subr.mxu0 0.0
      %1805 = vmatpush1.msra.mxu0 0.0
      %1806 = vmatprep.subr.mxu0 0.0
      %1807 = vmatpush1.msra.mxu0 0.0
      %1808 = vmatprep.subr.mxu0 0.0
      %1809 = vmatpush1.msra.mxu0 0.0
      %1810 = vmatprep.subr.mxu0 0.0
      %1811 = vmatpush1.msra.mxu0 0.0
      %1812 = vmatprep.subr.mxu0 0.0
      %1813 = vmatpush1.msra.mxu0 0.0
      %1814 = vmatprep.subr.mxu0 0.0
      %1815 = vmatpush1.msra.mxu0 0.0
      %1816 = vmatprep.subr.mxu0 0.0
      %1817 = vmatpush1.msra.mxu0 0.0
      %1818 = vmatprep.subr.mxu0 0.0
      %1819 = vmatpush1.msra.mxu0 0.0
      %1820 = vmatprep.subr.mxu0 0.0
      %1821 = vmatpush1.msra.mxu0 0.0
      %1822 = vmatprep.subr.mxu0 0.0
      %1823 = vmatpush1.msra.mxu0 0.0
      %1824 = vmatprep.subr.mxu0 0.0
      %1825 = vmatpush1.msra.mxu0 0.0
      %1826 = vmatprep.subr.mxu0 0.0
      %1827 = vmatpush1.msra.mxu0 0.0
      %1828 = vmatprep.subr.mxu0 0.0
      %1829 = vmatpush1.msra.mxu0 0.0
      %1830 = vmatprep.subr.mxu0 0.0
      %1831 = vmatpush1.msra.mxu0 0.0
      %1832 = vmatprep.subr.mxu0 0.0
      %1833 = vmatpush1.msra.mxu0 0.0
      %1834 = vmatprep.mubr.f32.mxu0 0.0
      %1835 = vmatmul.mubr.f32.gmra.mrb[0].mxu0 %v1768
      %v1836 = vpop.f32.mrb[0].mxu0
      %v1837 = vadd.f32 %v1765, %v1836
      %v1838 = vpop.f32.mrb[0].mxu0
      %1839 = vdwg.mxu0
      %1841 = vrot.lane.b32.xlu0 %v1837, 96
      %v1842 = vpop.permute.xlu0 %1841
      %v1843 = vsel %vm717, %v1837, 0
      %v1845 = vsel %vm717, %v1842, 0
      %1847 = vmatprep.subr.mxu0 0.0
      %1848 = vmatpush1.xpose.msra.mxu0 %v1845
      %1849 = vmatprep.subr.mxu0 0.0
      %1850 = vmatpush1.xpose.msra.mxu0 0.0
      %1851 = vmatprep.subr.mxu0 0.0
      %1852 = vmatpush1.xpose.msra.mxu0 0.0
      %1853 = vmatprep.subr.mxu0 0.0
      %1854 = vmatpush1.xpose.msra.mxu0 0.0
      %1855 = vmatprep.subr.mxu0 0.0
      %1856 = vmatpush1.xpose.msra.mxu0 0.0
      %1857 = vmatprep.subr.mxu0 0.0
      %1858 = vmatpush1.xpose.msra.mxu0 0.0
      %1859 = vmatprep.subr.mxu0 0.0
      %1860 = vmatpush1.xpose.msra.mxu0 0.0
      %1861 = vmatprep.subr.mxu0 0.0
      %1862 = vmatpush1.xpose.msra.mxu0 0.0
      %1863 = vmatprep.subr.mxu0 0.0
      %1864 = vmatpush1.xpose.msra.mxu0 0.0
      %1865 = vmatprep.subr.mxu0 0.0
      %1866 = vmatpush1.xpose.msra.mxu0 0.0
      %1867 = vmatprep.subr.mxu0 0.0
      %1868 = vmatpush1.xpose.msra.mxu0 0.0
      %1869 = vmatprep.subr.mxu0 0.0
      %1870 = vmatpush1.xpose.msra.mxu0 0.0
      %1871 = vmatprep.subr.mxu0 0.0
      %1872 = vmatpush1.xpose.msra.mxu0 0.0
      %1873 = vmatprep.subr.mxu0 0.0
      %1874 = vmatpush1.xpose.msra.mxu0 0.0
      %1875 = vmatprep.subr.mxu0 0.0
      %1876 = vmatpush1.xpose.msra.mxu0 0.0
      %1877 = vmatprep.subr.mxu0 0.0
      %1878 = vmatpush1.xpose.msra.mxu0 0.0
      %1879 = vmatprep.subr.mxu0 0.0
      %1880 = vmatpush1.xpose.msra.mxu0 0.0
      %1881 = vmatprep.subr.mxu0 0.0
      %1882 = vmatpush1.xpose.msra.mxu0 0.0
      %1883 = vmatprep.subr.mxu0 0.0
      %1884 = vmatpush1.xpose.msra.mxu0 0.0
      %1885 = vmatprep.subr.mxu0 0.0
      %1886 = vmatpush1.xpose.msra.mxu0 0.0
      %1887 = vmatprep.subr.mxu0 0.0
      %1888 = vmatpush1.xpose.msra.mxu0 0.0
      %1889 = vmatprep.subr.mxu0 0.0
      %1890 = vmatpush1.xpose.msra.mxu0 0.0
      %1891 = vmatprep.subr.mxu0 0.0
      %1892 = vmatpush1.xpose.msra.mxu0 0.0
      %1893 = vmatprep.subr.mxu0 0.0
      %1894 = vmatpush1.xpose.msra.mxu0 0.0
      %1895 = vmatprep.subr.mxu0 0.0
      %1896 = vmatpush1.xpose.msra.mxu0 0.0
      %1897 = vmatprep.subr.mxu0 0.0
      %1898 = vmatpush1.xpose.msra.mxu0 0.0
      %1899 = vmatprep.subr.mxu0 0.0
      %1900 = vmatpush1.xpose.msra.mxu0 0.0
      %1901 = vmatprep.subr.mxu0 0.0
      %1902 = vmatpush1.xpose.msra.mxu0 0.0
      %1903 = vmatprep.subr.mxu0 0.0
      %1904 = vmatpush1.xpose.msra.mxu0 0.0
      %1905 = vmatprep.subr.mxu0 0.0
      %1906 = vmatpush1.xpose.msra.mxu0 0.0
      %1907 = vmatprep.subr.mxu0 0.0
      %1908 = vmatpush1.xpose.msra.mxu0 0.0
      %1909 = vmatprep.subr.mxu0 0.0
      %1910 = vmatpush1.xpose.msra.mxu0 0.0
      %1911 = vmatprep.mubr.f32.mxu0 0.0
      %1912 = vmatmul.mubr.f32.gmra.mrb[0].mxu0 %v1843
      %v1913 = vpop.f32.mrb[0].mxu0
      %v1914 = vadd.f32 0.0, %v1913
      %v1915 = vpop.f32.mrb[0].mxu0
      %1916 = vdwg.mxu0
      %v1917 = vsel %vm792, %v1914, -inf
      %1918 = vmax.xlane.f32.xlu0 %v1917
      %v1919 = vpop.xlane.xlu0 %1918
      %v1920 = vsub.f32 %v1914, %v1919
      %v1921 = vmul.f32 %v1920, 1.442695
      %v1922 = vpow.pop %v1921
      %v1923 = vsel %vm792, %v1922, 0.0
      %1924 = vadd.xlane.f32.xlu0 %v1923
      %v1925 = vpop.xlane.xlu0 %1924
      %v1926 = vrcp.pop %v1925
      %v1927 = vmul.f32 1.0, %v1926
      %v1928 = vmul.f32 %v1922, %v1927
      %1929 = vrot.lane.b32.xlu0 %v1837, 64
      %v1930 = vpop.permute.xlu0 %1929
      %v1932 = vsel %vm807, %v1928, 0
      %v1934 = vsel %vm811, %v1930, 0
      %1936 = vmatprep.subr.mxu0 0.0
      %1937 = vmatpush1.msra.mxu0 %v1934
      %1938 = vmatprep.subr.mxu0 0.0
      %1939 = vmatpush1.msra.mxu0 0.0
      %1940 = vmatprep.subr.mxu0 0.0
      %1941 = vmatpush1.msra.mxu0 0.0
      %1942 = vmatprep.subr.mxu0 0.0
      %1943 = vmatpush1.msra.mxu0 0.0
      %1944 = vmatprep.subr.mxu0 0.0
      %1945 = vmatpush1.msra.mxu0 0.0
      %1946 = vmatprep.subr.mxu0 0.0
      %1947 = vmatpush1.msra.mxu0 0.0
      %1948 = vmatprep.subr.mxu0 0.0
      %1949 = vmatpush1.msra.mxu0 0.0
      %1950 = vmatprep.subr.mxu0 0.0
      %1951 = vmatpush1.msra.mxu0 0.0
      %1952 = vmatprep.subr.mxu0 0.0
      %1953 = vmatpush1.msra.mxu0 0.0
      %1954 = vmatprep.subr.mxu0 0.0
      %1955 = vmatpush1.msra.mxu0 0.0
      %1956 = vmatprep.subr.mxu0 0.0
      %1957 = vmatpush1.msra.mxu0 0.0
      %1958 = vmatprep.subr.mxu0 0.0
      %1959 = vmatpush1.msra.mxu0 0.0
      %1960 = vmatprep.subr.mxu0 0.0
      %1961 = vmatpush1.msra.mxu0 0.0
      %1962 = vmatprep.subr.mxu0 0.0
      %1963 = vmatpush1.msra.mxu0 0.0
      %1964 = vmatprep.subr.mxu0 0.0
      %1965 = vmatpush1.msra.mxu0 0.0
      %1966 = vmatprep.subr.mxu0 0.0
      %1967 = vmatpush1.msra.mxu0 0.0
      %1968 = vmatprep.subr.mxu0 0.0
      %1969 = vmatpush1.msra.mxu0 0.0
      %1970 = vmatprep.subr.mxu0 0.0
      %1971 = vmatpush1.msra.mxu0 0.0
      %1972 = vmatprep.subr.mxu0 0.0
      %1973 = vmatpush1.msra.mxu0 0.0
      %1974 = vmatprep.subr.mxu0 0.0
      %1975 = vmatpush1.msra.mxu0 0.0
      %1976 = vmatprep.subr.mxu0 0.0
      %1977 = vmatpush1.msra.mxu0 0.0
      %1978 = vmatprep.subr.mxu0 0.0
      %1979 = vmatpush1.msra.mxu0 0.0
      %1980 = vmatprep.subr.mxu0 0.0
      %1981 = vmatpush1.msra.mxu0 0.0
      %1982 = vmatprep.subr.mxu0 0.0
      %1983 = vmatpush1.msra.mxu0 0.0
      %1984 = vmatprep.subr.mxu0 0.0
      %1985 = vmatpush1.msra.mxu0 0.0
      %1986 = vmatprep.subr.mxu0 0.0
      %1987 = vmatpush1.msra.mxu0 0.0
      %1988 = vmatprep.subr.mxu0 0.0
      %1989 = vmatpush1.msra.mxu0 0.0
      %1990 = vmatprep.subr.mxu0 0.0
      %1991 = vmatpush1.msra.mxu0 0.0
      %1992 = vmatprep.subr.mxu0 0.0
      %1993 = vmatpush1.msra.mxu0 0.0
      %1994 = vmatprep.subr.mxu0 0.0
      %1995 = vmatpush1.msra.mxu0 0.0
      %1996 = vmatprep.subr.mxu0 0.0
      %1997 = vmatpush1.msra.mxu0 0.0
      %1998 = vmatprep.subr.mxu0 0.0
      %1999 = vmatpush1.msra.mxu0 0.0
      %2000 = vmatprep.mubr.f32.mxu0 0.0
      %2001 = vmatmul.mubr.f32.gmra.mrb[0].mxu0 %v1932
      %v2002 = vpop.f32.mrb[0].mxu0
      %v2003 = vadd.f32 0.0, %v2002
      %v2004 = vpop.f32.mrb[0].mxu0
      %2005 = vdwg.mxu0
      %2006 = vrot.lane.b32.xlu0 %v1837, 120
      %v2007 = vpop.permute.xlu0 %2006
      %2008 = vrot.lane.b32.xlu0 %v1837, 88
      %v2009 = vpop.permute.xlu0 %2008
      %v2010 = vsel %vm717, %v2007, 0
      %v2012 = vsel %vm717, %v2009, 0
      %2014 = vmatprep.subr.mxu0 0.0
      %2015 = vmatpush1.xpose.msra.mxu0 %v2012
      %2016 = vmatprep.subr.mxu0 0.0
      %2017 = vmatpush1.xpose.msra.mxu0 0.0
      %2018 = vmatprep.subr.mxu0 0.0
      %2019 = vmatpush1.xpose.msra.mxu0 0.0
      %2020 = vmatprep.subr.mxu0 0.0
      %2021 = vmatpush1.xpose.msra.mxu0 0.0
      %2022 = vmatprep.subr.mxu0 0.0
      %2023 = vmatpush1.xpose.msra.mxu0 0.0
      %2024 = vmatprep.subr.mxu0 0.0
      %2025 = vmatpush1.xpose.msra.mxu0 0.0
      %2026 = vmatprep.subr.mxu0 0.0
      %2027 = vmatpush1.xpose.msra.mxu0 0.0
      %2028 = vmatprep.subr.mxu0 0.0
      %2029 = vmatpush1.xpose.msra.mxu0 0.0
      %2030 = vmatprep.subr.mxu0 0.0
      %2031 = vmatpush1.xpose.msra.mxu0 0.0
      %2032 = vmatprep.subr.mxu0 0.0
      %2033 = vmatpush1.xpose.msra.mxu0 0.0
      %2034 = vmatprep.subr.mxu0 0.0
      %2035 = vmatpush1.xpose.msra.mxu0 0.0
      %2036 = vmatprep.subr.mxu0 0.0
      %2037 = vmatpush1.xpose.msra.mxu0 0.0
      %2038 = vmatprep.subr.mxu0 0.0
      %2039 = vmatpush1.xpose.msra.mxu0 0.0
      %2040 = vmatprep.subr.mxu0 0.0
      %2041 = vmatpush1.xpose.msra.mxu0 0.0
      %2042 = vmatprep.subr.mxu0 0.0
      %2043 = vmatpush1.xpose.msra.mxu0 0.0
      %2044 = vmatprep.subr.mxu0 0.0
      %2045 = vmatpush1.xpose.msra.mxu0 0.0
      %2046 = vmatprep.subr.mxu0 0.0
      %2047 = vmatpush1.xpose.msra.mxu0 0.0
      %2048 = vmatprep.subr.mxu0 0.0
      %2049 = vmatpush1.xpose.msra.mxu0 0.0
      %2050 = vmatprep.subr.mxu0 0.0
      %2051 = vmatpush1.xpose.msra.mxu0 0.0
      %2052 = vmatprep.subr.mxu0 0.0
      %2053 = vmatpush1.xpose.msra.mxu0 0.0
      %2054 = vmatprep.subr.mxu0 0.0
      %2055 = vmatpush1.xpose.msra.mxu0 0.0
      %2056 = vmatprep.subr.mxu0 0.0
      %2057 = vmatpush1.xpose.msra.mxu0 0.0
      %2058 = vmatprep.subr.mxu0 0.0
      %2059 = vmatpush1.xpose.msra.mxu0 0.0
      %2060 = vmatprep.subr.mxu0 0.0
      %2061 = vmatpush1.xpose.msra.mxu0 0.0
      %2062 = vmatprep.subr.mxu0 0.0
      %2063 = vmatpush1.xpose.msra.mxu0 0.0
      %2064 = vmatprep.subr.mxu0 0.0
      %2065 = vmatpush1.xpose.msra.mxu0 0.0
      %2066 = vmatprep.subr.mxu0 0.0
      %2067 = vmatpush1.xpose.msra.mxu0 0.0
      %2068 = vmatprep.subr.mxu0 0.0
      %2069 = vmatpush1.xpose.msra.mxu0 0.0
      %2070 = vmatprep.subr.mxu0 0.0
      %2071 = vmatpush1.xpose.msra.mxu0 0.0
      %2072 = vmatprep.subr.mxu0 0.0
      %2073 = vmatpush1.xpose.msra.mxu0 0.0
      %2074 = vmatprep.subr.mxu0 0.0
      %2075 = vmatpush1.xpose.msra.mxu0 0.0
      %2076 = vmatprep.subr.mxu0 0.0
      %2077 = vmatpush1.xpose.msra.mxu0 0.0
      %2078 = vmatprep.mubr.f32.mxu0 0.0
      %2079 = vmatmul.mubr.f32.gmra.mrb[0].mxu0 %v2010
      %v2080 = vpop.f32.mrb[0].mxu0
      %v2081 = vadd.f32 0.0, %v2080
      %v2082 = vpop.f32.mrb[0].mxu0
      %2083 = vdwg.mxu0
      %v2084 = vsel %vm792, %v2081, -inf
      %2085 = vmax.xlane.f32.xlu0 %v2084
      %v2086 = vpop.xlane.xlu0 %2085
      %v2087 = vsub.f32 %v2081, %v2086
      %v2088 = vmul.f32 %v2087, 1.442695
      %v2089 = vpow.pop %v2088
      %v2090 = vsel %vm792, %v2089, 0.0
      %2091 = vadd.xlane.f32.xlu0 %v2090
      %v2092 = vpop.xlane.xlu0 %2091
      %v2093 = vrcp.pop %v2092
      %v2094 = vmul.f32 1.0, %v2093
      %v2095 = vmul.f32 %v2089, %v2094
      %2096 = vrot.lane.b32.xlu0 %v1837, 56
      %v2097 = vpop.permute.xlu0 %2096
      %v2099 = vsel %vm807, %v2095, 0
      %v2101 = vsel %vm811, %v2097, 0
      %2103 = vmatprep.subr.mxu0 0.0
      %2104 = vmatpush1.msra.mxu0 %v2101
      %2105 = vmatprep.subr.mxu0 0.0
      %2106 = vmatpush1.msra.mxu0 0.0
      %2107 = vmatprep.subr.mxu0 0.0
      %2108 = vmatpush1.msra.mxu0 0.0
      %2109 = vmatprep.subr.mxu0 0.0
      %2110 = vmatpush1.msra.mxu0 0.0
      %2111 = vmatprep.subr.mxu0 0.0
      %2112 = vmatpush1.msra.mxu0 0.0
      %2113 = vmatprep.subr.mxu0 0.0
      %2114 = vmatpush1.msra.mxu0 0.0
      %2115 = vmatprep.subr.mxu0 0.0
      %2116 = vmatpush1.msra.mxu0 0.0
      %2117 = vmatprep.subr.mxu0 0.0
      %2118 = vmatpush1.msra.mxu0 0.0
      %2119 = vmatprep.subr.mxu0 0.0
      %2120 = vmatpush1.msra.mxu0 0.0
      %2121 = vmatprep.subr.mxu0 0.0
      %2122 = vmatpush1.msra.mxu0 0.0
      %2123 = vmatprep.subr.mxu0 0.0
      %2124 = vmatpush1.msra.mxu0 0.0
      %2125 = vmatprep.subr.mxu0 0.0
      %2126 = vmatpush1.msra.mxu0 0.0
      %2127 = vmatprep.subr.mxu0 0.0
      %2128 = vmatpush1.msra.mxu0 0.0
      %2129 = vmatprep.subr.mxu0 0.0
      %2130 = vmatpush1.msra.mxu0 0.0
      %2131 = vmatprep.subr.mxu0 0.0
      %2132 = vmatpush1.msra.mxu0 0.0
      %2133 = vmatprep.subr.mxu0 0.0
      %2134 = vmatpush1.msra.mxu0 0.0
      %2135 = vmatprep.subr.mxu0 0.0
      %2136 = vmatpush1.msra.mxu0 0.0
      %2137 = vmatprep.subr.mxu0 0.0
      %2138 = vmatpush1.msra.mxu0 0.0
      %2139 = vmatprep.subr.mxu0 0.0
      %2140 = vmatpush1.msra.mxu0 0.0
      %2141 = vmatprep.subr.mxu0 0.0
      %2142 = vmatpush1.msra.mxu0 0.0
      %2143 = vmatprep.subr.mxu0 0.0
      %2144 = vmatpush1.msra.mxu0 0.0
      %2145 = vmatprep.subr.mxu0 0.0
      %2146 = vmatpush1.msra.mxu0 0.0
      %2147 = vmatprep.subr.mxu0 0.0
      %2148 = vmatpush1.msra.mxu0 0.0
      %2149 = vmatprep.subr.mxu0 0.0
      %2150 = vmatpush1.msra.mxu0 0.0
      %2151 = vmatprep.subr.mxu0 0.0
      %2152 = vmatpush1.msra.mxu0 0.0
      %2153 = vmatprep.subr.mxu0 0.0
      %2154 = vmatpush1.msra.mxu0 0.0
      %2155 = vmatprep.subr.mxu0 0.0
      %2156 = vmatpush1.msra.mxu0 0.0
      %2157 = vmatprep.subr.mxu0 0.0
      %2158 = vmatpush1.msra.mxu0 0.0
      %2159 = vmatprep.subr.mxu0 0.0
      %2160 = vmatpush1.msra.mxu0 0.0
      %2161 = vmatprep.subr.mxu0 0.0
      %2162 = vmatpush1.msra.mxu0 0.0
      %2163 = vmatprep.subr.mxu0 0.0
      %2164 = vmatpush1.msra.mxu0 0.0
      %2165 = vmatprep.subr.mxu0 0.0
      %2166 = vmatpush1.msra.mxu0 0.0
      %2167 = vmatprep.mubr.f32.mxu0 0.0
      %2168 = vmatmul.mubr.f32.gmra.mrb[0].mxu0 %v2099
      %v2169 = vpop.f32.mrb[0].mxu0
      %v2170 = vadd.f32 0.0, %v2169
      %v2171 = vpop.f32.mrb[0].mxu0
      %2172 = vdwg.mxu0
      %2173 = vrot.lane.b32.xlu0 %v1837, 112
      %v2174 = vpop.permute.xlu0 %2173
      %2175 = vrot.lane.b32.xlu0 %v1837, 80
      %v2176 = vpop.permute.xlu0 %2175
      %v2177 = vsel %vm717, %v2174, 0
      %v2179 = vsel %vm717, %v2176, 0
      %2181 = vmatprep.subr.mxu0 0.0
      %2182 = vmatpush1.xpose.msra.mxu0 %v2179
      %2183 = vmatprep.subr.mxu0 0.0
      %2184 = vmatpush1.xpose.msra.mxu0 0.0
      %2185 = vmatprep.subr.mxu0 0.0
      %2186 = vmatpush1.xpose.msra.mxu0 0.0
      %2187 = vmatprep.subr.mxu0 0.0
      %2188 = vmatpush1.xpose.msra.mxu0 0.0
      %2189 = vmatprep.subr.mxu0 0.0
      %2190 = vmatpush1.xpose.msra.mxu0 0.0
      %2191 = vmatprep.subr.mxu0 0.0
      %2192 = vmatpush1.xpose.msra.mxu0 0.0
      %2193 = vmatprep.subr.mxu0 0.0
      %2194 = vmatpush1.xpose.msra.mxu0 0.0
      %2195 = vmatprep.subr.mxu0 0.0
      %2196 = vmatpush1.xpose.msra.mxu0 0.0
      %2197 = vmatprep.subr.mxu0 0.0
      %2198 = vmatpush1.xpose.msra.mxu0 0.0
      %2199 = vmatprep.subr.mxu0 0.0
      %2200 = vmatpush1.xpose.msra.mxu0 0.0
      %2201 = vmatprep.subr.mxu0 0.0
      %2202 = vmatpush1.xpose.msra.mxu0 0.0
      %2203 = vmatprep.subr.mxu0 0.0
      %2204 = vmatpush1.xpose.msra.mxu0 0.0
      %2205 = vmatprep.subr.mxu0 0.0
      %2206 = vmatpush1.xpose.msra.mxu0 0.0
      %2207 = vmatprep.subr.mxu0 0.0
      %2208 = vmatpush1.xpose.msra.mxu0 0.0
      %2209 = vmatprep.subr.mxu0 0.0
      %2210 = vmatpush1.xpose.msra.mxu0 0.0
      %2211 = vmatprep.subr.mxu0 0.0
      %2212 = vmatpush1.xpose.msra.mxu0 0.0
      %2213 = vmatprep.subr.mxu0 0.0
      %2214 = vmatpush1.xpose.msra.mxu0 0.0
      %2215 = vmatprep.subr.mxu0 0.0
      %2216 = vmatpush1.xpose.msra.mxu0 0.0
      %2217 = vmatprep.subr.mxu0 0.0
      %2218 = vmatpush1.xpose.msra.mxu0 0.0
      %2219 = vmatprep.subr.mxu0 0.0
      %2220 = vmatpush1.xpose.msra.mxu0 0.0
      %2221 = vmatprep.subr.mxu0 0.0
      %2222 = vmatpush1.xpose.msra.mxu0 0.0
      %2223 = vmatprep.subr.mxu0 0.0
      %2224 = vmatpush1.xpose.msra.mxu0 0.0
      %2225 = vmatprep.subr.mxu0 0.0
      %2226 = vmatpush1.xpose.msra.mxu0 0.0
      %2227 = vmatprep.subr.mxu0 0.0
      %2228 = vmatpush1.xpose.msra.mxu0 0.0
      %2229 = vmatprep.subr.mxu0 0.0
      %2230 = vmatpush1.xpose.msra.mxu0 0.0
      %2231 = vmatprep.subr.mxu0 0.0
      %2232 = vmatpush1.xpose.msra.mxu0 0.0
      %2233 = vmatprep.subr.mxu0 0.0
      %2234 = vmatpush1.xpose.msra.mxu0 0.0
      %2235 = vmatprep.subr.mxu0 0.0
      %2236 = vmatpush1.xpose.msra.mxu0 0.0
      %2237 = vmatprep.subr.mxu0 0.0
      %2238 = vmatpush1.xpose.msra.mxu0 0.0
      %2239 = vmatprep.subr.mxu0 0.0
      %2240 = vmatpush1.xpose.msra.mxu0 0.0
      %2241 = vmatprep.subr.mxu0 0.0
      %2242 = vmatpush1.xpose.msra.mxu0 0.0
      %2243 = vmatprep.subr.mxu0 0.0
      %2244 = vmatpush1.xpose.msra.mxu0 0.0
      %2245 = vmatprep.mubr.f32.mxu0 0.0
      %2246 = vmatmul.mubr.f32.gmra.mrb[0].mxu0 %v2177
      %v2247 = vpop.f32.mrb[0].mxu0
      %v2248 = vadd.f32 0.0, %v2247
      %v2249 = vpop.f32.mrb[0].mxu0
      %2250 = vdwg.mxu0
      %v2251 = vsel %vm792, %v2248, -inf
      %2252 = vmax.xlane.f32.xlu0 %v2251
      %v2253 = vpop.xlane.xlu0 %2252
      %v2254 = vsub.f32 %v2248, %v2253
      %v2255 = vmul.f32 %v2254, 1.442695
      %v2256 = vpow.pop %v2255
      %v2257 = vsel %vm792, %v2256, 0.0
      %2258 = vadd.xlane.f32.xlu0 %v2257
      %v2259 = vpop.xlane.xlu0 %2258
      %v2260 = vrcp.pop %v2259
      %v2261 = vmul.f32 1.0, %v2260
      %v2262 = vmul.f32 %v2256, %v2261
      %2263 = vrot.lane.b32.xlu0 %v1837, 48
      %v2264 = vpop.permute.xlu0 %2263
      %v2266 = vsel %vm807, %v2262, 0
      %v2268 = vsel %vm811, %v2264, 0
      %2270 = vmatprep.subr.mxu0 0.0
      %2271 = vmatpush1.msra.mxu0 %v2268
      %2272 = vmatprep.subr.mxu0 0.0
      %2273 = vmatpush1.msra.mxu0 0.0
      %2274 = vmatprep.subr.mxu0 0.0
      %2275 = vmatpush1.msra.mxu0 0.0
      %2276 = vmatprep.subr.mxu0 0.0
      %2277 = vmatpush1.msra.mxu0 0.0
      %2278 = vmatprep.subr.mxu0 0.0
      %2279 = vmatpush1.msra.mxu0 0.0
      %2280 = vmatprep.subr.mxu0 0.0
      %2281 = vmatpush1.msra.mxu0 0.0
      %2282 = vmatprep.subr.mxu0 0.0
      %2283 = vmatpush1.msra.mxu0 0.0
      %2284 = vmatprep.subr.mxu0 0.0
      %2285 = vmatpush1.msra.mxu0 0.0
      %2286 = vmatprep.subr.mxu0 0.0
      %2287 = vmatpush1.msra.mxu0 0.0
      %2288 = vmatprep.subr.mxu0 0.0
      %2289 = vmatpush1.msra.mxu0 0.0
      %2290 = vmatprep.subr.mxu0 0.0
      %2291 = vmatpush1.msra.mxu0 0.0
      %2292 = vmatprep.subr.mxu0 0.0
      %2293 = vmatpush1.msra.mxu0 0.0
      %2294 = vmatprep.subr.mxu0 0.0
      %2295 = vmatpush1.msra.mxu0 0.0
      %2296 = vmatprep.subr.mxu0 0.0
      %2297 = vmatpush1.msra.mxu0 0.0
      %2298 = vmatprep.subr.mxu0 0.0
      %2299 = vmatpush1.msra.mxu0 0.0
      %2300 = vmatprep.subr.mxu0 0.0
      %2301 = vmatpush1.msra.mxu0 0.0
      %2302 = vmatprep.subr.mxu0 0.0
      %2303 = vmatpush1.msra.mxu0 0.0
      %2304 = vmatprep.subr.mxu0 0.0
      %2305 = vmatpush1.msra.mxu0 0.0
      %2306 = vmatprep.subr.mxu0 0.0
      %2307 = vmatpush1.msra.mxu0 0.0
      %2308 = vmatprep.subr.mxu0 0.0
      %2309 = vmatpush1.msra.mxu0 0.0
      %2310 = vmatprep.subr.mxu0 0.0
      %2311 = vmatpush1.msra.mxu0 0.0
      %2312 = vmatprep.subr.mxu0 0.0
      %2313 = vmatpush1.msra.mxu0 0.0
      %2314 = vmatprep.subr.mxu0 0.0
      %2315 = vmatpush1.msra.mxu0 0.0
      %2316 = vmatprep.subr.mxu0 0.0
      %2317 = vmatpush1.msra.mxu0 0.0
      %2318 = vmatprep.subr.mxu0 0.0
      %2319 = vmatpush1.msra.mxu0 0.0
      %2320 = vmatprep.subr.mxu0 0.0
      %2321 = vmatpush1.msra.mxu0 0.0
      %2322 = vmatprep.subr.mxu0 0.0
      %2323 = vmatpush1.msra.mxu0 0.0
      %2324 = vmatprep.subr.mxu0 0.0
      %2325 = vmatpush1.msra.mxu0 0.0
      %2326 = vmatprep.subr.mxu0 0.0
      %2327 = vmatpush1.msra.mxu0 0.0
      %2328 = vmatprep.subr.mxu0 0.0
      %2329 = vmatpush1.msra.mxu0 0.0
      %2330 = vmatprep.subr.mxu0 0.0
      %2331 = vmatpush1.msra.mxu0 0.0
      %2332 = vmatprep.subr.mxu0 0.0
      %2333 = vmatpush1.msra.mxu0 0.0
      %2334 = vmatprep.mubr.f32.mxu0 0.0
      %2335 = vmatmul.mubr.f32.gmra.mrb[0].mxu0 %v2266
      %v2336 = vpop.f32.mrb[0].mxu0
      %v2337 = vadd.f32 0.0, %v2336
      %v2338 = vpop.f32.mrb[0].mxu0
      %2339 = vdwg.mxu0
      %2340 = vrot.lane.b32.xlu0 %v1837, 104
      %v2341 = vpop.permute.xlu0 %2340
      %2342 = vrot.lane.b32.xlu0 %v1837, 72
      %v2343 = vpop.permute.xlu0 %2342
      %v2344 = vsel %vm717, %v2341, 0
      %v2346 = vsel %vm717, %v2343, 0
      %2348 = vmatprep.subr.mxu0 0.0
      %2349 = vmatpush1.xpose.msra.mxu0 %v2346
      %2350 = vmatprep.subr.mxu0 0.0
      %2351 = vmatpush1.xpose.msra.mxu0 0.0
      %2352 = vmatprep.subr.mxu0 0.0
      %2353 = vmatpush1.xpose.msra.mxu0 0.0
      %2354 = vmatprep.subr.mxu0 0.0
      %2355 = vmatpush1.xpose.msra.mxu0 0.0
      %2356 = vmatprep.subr.mxu0 0.0
      %2357 = vmatpush1.xpose.msra.mxu0 0.0
      %2358 = vmatprep.subr.mxu0 0.0
      %2359 = vmatpush1.xpose.msra.mxu0 0.0
      %2360 = vmatprep.subr.mxu0 0.0
      %2361 = vmatpush1.xpose.msra.mxu0 0.0
      %2362 = vmatprep.subr.mxu0 0.0
      %2363 = vmatpush1.xpose.msra.mxu0 0.0
      %2364 = vmatprep.subr.mxu0 0.0
      %2365 = vmatpush1.xpose.msra.mxu0 0.0
      %2366 = vmatprep.subr.mxu0 0.0
      %2367 = vmatpush1.xpose.msra.mxu0 0.0
      %2368 = vmatprep.subr.mxu0 0.0
      %2369 = vmatpush1.xpose.msra.mxu0 0.0
      %2370 = vmatprep.subr.mxu0 0.0
      %2371 = vmatpush1.xpose.msra.mxu0 0.0
      %2372 = vmatprep.subr.mxu0 0.0
      %2373 = vmatpush1.xpose.msra.mxu0 0.0
      %2374 = vmatprep.subr.mxu0 0.0
      %2375 = vmatpush1.xpose.msra.mxu0 0.0
      %2376 = vmatprep.subr.mxu0 0.0
      %2377 = vmatpush1.xpose.msra.mxu0 0.0
      %2378 = vmatprep.subr.mxu0 0.0
      %2379 = vmatpush1.xpose.msra.mxu0 0.0
      %2380 = vmatprep.subr.mxu0 0.0
      %2381 = vmatpush1.xpose.msra.mxu0 0.0
      %2382 = vmatprep.subr.mxu0 0.0
      %2383 = vmatpush1.xpose.msra.mxu0 0.0
      %2384 = vmatprep.subr.mxu0 0.0
      %2385 = vmatpush1.xpose.msra.mxu0 0.0
      %2386 = vmatprep.subr.mxu0 0.0
      %2387 = vmatpush1.xpose.msra.mxu0 0.0
      %2388 = vmatprep.subr.mxu0 0.0
      %2389 = vmatpush1.xpose.msra.mxu0 0.0
      %2390 = vmatprep.subr.mxu0 0.0
      %2391 = vmatpush1.xpose.msra.mxu0 0.0
      %2392 = vmatprep.subr.mxu0 0.0
      %2393 = vmatpush1.xpose.msra.mxu0 0.0
      %2394 = vmatprep.subr.mxu0 0.0
      %2395 = vmatpush1.xpose.msra.mxu0 0.0
      %2396 = vmatprep.subr.mxu0 0.0
      %2397 = vmatpush1.xpose.msra.mxu0 0.0
      %2398 = vmatprep.subr.mxu0 0.0
      %2399 = vmatpush1.xpose.msra.mxu0 0.0
      %2400 = vmatprep.subr.mxu0 0.0
      %2401 = vmatpush1.xpose.msra.mxu0 0.0
      %2402 = vmatprep.subr.mxu0 0.0
      %2403 = vmatpush1.xpose.msra.mxu0 0.0
      %2404 = vmatprep.subr.mxu0 0.0
      %2405 = vmatpush1.xpose.msra.mxu0 0.0
      %2406 = vmatprep.subr.mxu0 0.0
      %2407 = vmatpush1.xpose.msra.mxu0 0.0
      %2408 = vmatprep.subr.mxu0 0.0
      %2409 = vmatpush1.xpose.msra.mxu0 0.0
      %2410 = vmatprep.subr.mxu0 0.0
      %2411 = vmatpush1.xpose.msra.mxu0 0.0
      %2412 = vmatprep.mubr.f32.mxu0 0.0
      %2413 = vmatmul.mubr.f32.gmra.mrb[0].mxu0 %v2344
      %v2414 = vpop.f32.mrb[0].mxu0
      %v2415 = vadd.f32 0.0, %v2414
      %v2416 = vpop.f32.mrb[0].mxu0
      %2417 = vdwg.mxu0
      %v2418 = vsel %vm792, %v2415, -inf
      %2419 = vmax.xlane.f32.xlu0 %v2418
      %v2420 = vpop.xlane.xlu0 %2419
      %v2421 = vsub.f32 %v2415, %v2420
      %v2422 = vmul.f32 %v2421, 1.442695
      %v2423 = vpow.pop %v2422
      %v2424 = vsel %vm792, %v2423, 0.0
      %2425 = vadd.xlane.f32.xlu0 %v2424
      %v2426 = vpop.xlane.xlu0 %2425
      %v2427 = vrcp.pop %v2426
      %v2428 = vmul.f32 1.0, %v2427
      %v2429 = vmul.f32 %v2423, %v2428
      %2430 = vrot.lane.b32.xlu0 %v1837, 40
      %v2431 = vpop.permute.xlu0 %2430
      %v2433 = vsel %vm807, %v2429, 0
      %v2435 = vsel %vm811, %v2431, 0
      %2437 = vmatprep.subr.mxu0 0.0
      %2438 = vmatpush1.msra.mxu0 %v2435
      %2439 = vmatprep.subr.mxu0 0.0
      %2440 = vmatpush1.msra.mxu0 0.0
      %2441 = vmatprep.subr.mxu0 0.0
      %2442 = vmatpush1.msra.mxu0 0.0
      %2443 = vmatprep.subr.mxu0 0.0
      %2444 = vmatpush1.msra.mxu0 0.0
      %2445 = vmatprep.subr.mxu0 0.0
      %2446 = vmatpush1.msra.mxu0 0.0
      %2447 = vmatprep.subr.mxu0 0.0
      %2448 = vmatpush1.msra.mxu0 0.0
      %2449 = vmatprep.subr.mxu0 0.0
      %2450 = vmatpush1.msra.mxu0 0.0
      %2451 = vmatprep.subr.mxu0 0.0
      %2452 = vmatpush1.msra.mxu0 0.0
      %2453 = vmatprep.subr.mxu0 0.0
      %2454 = vmatpush1.msra.mxu0 0.0
      %2455 = vmatprep.subr.mxu0 0.0
      %2456 = vmatpush1.msra.mxu0 0.0
      %2457 = vmatprep.subr.mxu0 0.0
      %2458 = vmatpush1.msra.mxu0 0.0
      %2459 = vmatprep.subr.mxu0 0.0
      %2460 = vmatpush1.msra.mxu0 0.0
      %2461 = vmatprep.subr.mxu0 0.0
      %2462 = vmatpush1.msra.mxu0 0.0
      %2463 = vmatprep.subr.mxu0 0.0
      %2464 = vmatpush1.msra.mxu0 0.0
      %2465 = vmatprep.subr.mxu0 0.0
      %2466 = vmatpush1.msra.mxu0 0.0
      %2467 = vmatprep.subr.mxu0 0.0
      %2468 = vmatpush1.msra.mxu0 0.0
      %2469 = vmatprep.subr.mxu0 0.0
      %2470 = vmatpush1.msra.mxu0 0.0
      %2471 = vmatprep.subr.mxu0 0.0
      %2472 = vmatpush1.msra.mxu0 0.0
      %2473 = vmatprep.subr.mxu0 0.0
      %2474 = vmatpush1.msra.mxu0 0.0
      %2475 = vmatprep.subr.mxu0 0.0
      %2476 = vmatpush1.msra.mxu0 0.0
      %2477 = vmatprep.subr.mxu0 0.0
      %2478 = vmatpush1.msra.mxu0 0.0
      %2479 = vmatprep.subr.mxu0 0.0
      %2480 = vmatpush1.msra.mxu0 0.0
      %2481 = vmatprep.subr.mxu0 0.0
      %2482 = vmatpush1.msra.mxu0 0.0
      %2483 = vmatprep.subr.mxu0 0.0
      %2484 = vmatpush1.msra.mxu0 0.0
      %2485 = vmatprep.subr.mxu0 0.0
      %2486 = vmatpush1.msra.mxu0 0.0
      %2487 = vmatprep.subr.mxu0 0.0
      %2488 = vmatpush1.msra.mxu0 0.0
      %2489 = vmatprep.subr.mxu0 0.0
      %2490 = vmatpush1.msra.mxu0 0.0
      %2491 = vmatprep.subr.mxu0 0.0
      %2492 = vmatpush1.msra.mxu0 0.0
      %2493 = vmatprep.subr.mxu0 0.0
      %2494 = vmatpush1.msra.mxu0 0.0
      %2495 = vmatprep.subr.mxu0 0.0
      %2496 = vmatpush1.msra.mxu0 0.0
      %2497 = vmatprep.subr.mxu0 0.0
      %2498 = vmatpush1.msra.mxu0 0.0
      %2499 = vmatprep.subr.mxu0 0.0
      %2500 = vmatpush1.msra.mxu0 0.0
      %2501 = vmatprep.mubr.f32.mxu0 0.0
      %2502 = vmatmul.mubr.f32.gmra.mrb[0].mxu0 %v2433
      %v2503 = vpop.f32.mrb[0].mxu0
      %v2504 = vadd.f32 0.0, %v2503
      %v2505 = vpop.f32.mrb[0].mxu0
      %2506 = vdwg.mxu0
      %2508 = vrot.lane.b32.xlu0 %v2170, 8
      %v2509 = vpop.permute.xlu0 %2508
      %2512 = vrot.lane.b32.xlu0 %v2337, 16
      %v2513 = vpop.permute.xlu0 %2512
      %2516 = vrot.lane.b32.xlu0 %v2504, 24
      %v2517 = vpop.permute.xlu0 %2516
      %v2519 = vsel %vm717, %v2003, %v2509
      %v2520 = vsel %vm1398, %v2519, %v2513
      %v2521 = vsel %vm1400, %v2520, %v2517
      %s2522 = scalar_lea.vmem %s7, 32
      %v2523 = vld [vmem:[%s2522] sm:$0xff]
      %v2524 = vld [vmem:[%s2522 + $0x8] sm:$0xff]
      %v2525 = vld [vmem:[%s2522 + $0x10] sm:$0xff]
      %v2526 = vld [vmem:[%s2522 + $0x18] sm:$0xff]
      %v2528 = vsel %vm640, %v2521, 0
      %2530 = vmatprep.subr.mxu0 0.0
      %2531 = vmatpush1.msra.mxu0 %v2523
      %2532 = vmatprep.subr.mxu0 0.0
      %2533 = vmatpush1.msra.mxu0 %v2524
      %2534 = vmatprep.subr.mxu0 0.0
      %2535 = vmatpush1.msra.mxu0 %v2525
      %2536 = vmatprep.subr.mxu0 0.0
      %2537 = vmatpush1.msra.mxu0 %v2526
      %2538 = vmatprep.subr.mxu0 0.0
      %2539 = vmatpush1.msra.mxu0 0.0
      %2540 = vmatprep.subr.mxu0 0.0
      %2541 = vmatpush1.msra.mxu0 0.0
      %2542 = vmatprep.subr.mxu0 0.0
      %2543 = vmatpush1.msra.mxu0 0.0
      %2544 = vmatprep.subr.mxu0 0.0
      %2545 = vmatpush1.msra.mxu0 0.0
      %2546 = vmatprep.subr.mxu0 0.0
      %2547 = vmatpush1.msra.mxu0 0.0
      %2548 = vmatprep.subr.mxu0 0.0
      %2549 = vmatpush1.msra.mxu0 0.0
      %2550 = vmatprep.subr.mxu0 0.0
      %2551 = vmatpush1.msra.mxu0 0.0
      %2552 = vmatprep.subr.mxu0 0.0
      %2553 = vmatpush1.msra.mxu0 0.0
      %2554 = vmatprep.subr.mxu0 0.0
      %2555 = vmatpush1.msra.mxu0 0.0
      %2556 = vmatprep.subr.mxu0 0.0
      %2557 = vmatpush1.msra.mxu0 0.0
      %2558 = vmatprep.subr.mxu0 0.0
      %2559 = vmatpush1.msra.mxu0 0.0
      %2560 = vmatprep.subr.mxu0 0.0
      %2561 = vmatpush1.msra.mxu0 0.0
      %2562 = vmatprep.subr.mxu0 0.0
      %2563 = vmatpush1.msra.mxu0 0.0
      %2564 = vmatprep.subr.mxu0 0.0
      %2565 = vmatpush1.msra.mxu0 0.0
      %2566 = vmatprep.subr.mxu0 0.0
      %2567 = vmatpush1.msra.mxu0 0.0
      %2568 = vmatprep.subr.mxu0 0.0
      %2569 = vmatpush1.msra.mxu0 0.0
      %2570 = vmatprep.subr.mxu0 0.0
      %2571 = vmatpush1.msra.mxu0 0.0
      %2572 = vmatprep.subr.mxu0 0.0
      %2573 = vmatpush1.msra.mxu0 0.0
      %2574 = vmatprep.subr.mxu0 0.0
      %2575 = vmatpush1.msra.mxu0 0.0
      %2576 = vmatprep.subr.mxu0 0.0
      %2577 = vmatpush1.msra.mxu0 0.0
      %2578 = vmatprep.subr.mxu0 0.0
      %2579 = vmatpush1.msra.mxu0 0.0
      %2580 = vmatprep.subr.mxu0 0.0
      %2581 = vmatpush1.msra.mxu0 0.0
      %2582 = vmatprep.subr.mxu0 0.0
      %2583 = vmatpush1.msra.mxu0 0.0
      %2584 = vmatprep.subr.mxu0 0.0
      %2585 = vmatpush1.msra.mxu0 0.0
      %2586 = vmatprep.subr.mxu0 0.0
      %2587 = vmatpush1.msra.mxu0 0.0
      %2588 = vmatprep.subr.mxu0 0.0
      %2589 = vmatpush1.msra.mxu0 0.0
      %2590 = vmatprep.subr.mxu0 0.0
      %2591 = vmatpush1.msra.mxu0 0.0
      %2592 = vmatprep.subr.mxu0 0.0
      %2593 = vmatpush1.msra.mxu0 0.0
      %2594 = vmatprep.mubr.f32.mxu0 0.0
      %2595 = vmatmul.mubr.f32.gmra.mrb[0].mxu0 %v2528
      %v2596 = vpop.f32.mrb[0].mxu0
      %v2597 = vadd.f32 0.0, %v2596
      %v2598 = vpop.f32.mrb[0].mxu0
      %2599 = vdwg.mxu0
      %v2600 = vadd.f32 %v1722, %v2597
      %s2601 = scalar_lea.vmem %s8, 1
      %v2602 = vld [vmem:[%s2601] sm:$0x1]
      %v2604 = vlaneseq
      %v2605 = vshrl.u32 %v2604, 7
      %v2606 = vsub.s32 0, %v2605
      %v2607 = vrot.slane %v2602, %v2606
      %v2609 = vadd.f32 %v2600, %v2607
      %s2610 = scalar_lea.vmem %s9, 1
      %v2611 = vld [vmem:[%s2610] sm:$0x1]
      %s2612 = scalar_lea.vmem %s10, 1
      %v2613 = vld [vmem:[%s2612] sm:$0x1]
      %v2614 = vsel %vm600, %v2609, 0.0
      %2615 = vadd.xlane.f32.xlu0 %v2614
      %v2616 = vpop.xlane.xlu0 %2615
      %v2617 = vmul.f32 %v2616, %v604
      %v2618 = vsub.f32 %v2609, %v2617
      %v2619 = vmul.f32 %v2618, %v2618
      %v2620 = vsel %vm600, %v2619, 0.0
      %2621 = vadd.xlane.f32.xlu0 %v2620
      %v2622 = vpop.xlane.xlu0 %2621
      %v2623 = vmul.f32 %v2622, %v604
      %v2624 = vadd.f32 %v2623, 1e-06
      %v2625 = vrsqrt.pop %v2624
      %v2626 = vmul.f32 %v2618, %v2625
      %v2628 = vlaneseq
      %v2629 = vshrl.u32 %v2628, 7
      %v2630 = vsub.s32 0, %v2629
      %v2631 = vrot.slane %v2611, %v2630
      %v2633 = vmul.f32 %v2626, %v2631
      %v2635 = vlaneseq
      %v2636 = vshrl.u32 %v2635, 7
      %v2637 = vsub.s32 0, %v2636
      %v2638 = vrot.slane %v2613, %v2637
      %v2640 = vadd.f32 %v2633, %v2638
      %s2641 = scalar_lea.vmem %s11, 32
      %v2642 = vld [vmem:[%s2641] sm:$0xff]
      %v2643 = vld [vmem:[%s2641 + $0x8] sm:$0xff]
      %v2644 = vld [vmem:[%s2641 + $0x10] sm:$0xff]
      %v2645 = vld [vmem:[%s2641 + $0x18] sm:$0xff]
      %s2646 = scalar_lea.vmem %s12, 1
      %v2647 = vld [vmem:[%s2646] sm:$0x1]
      %v2649 = vlaneseq
      %v2650 = vshrl.u32 %v2649, 7
      %v2651 = vsub.s32 0, %v2650
      %v2652 = vrot.slane %v2647, %v2651
      %v2655 = vsel %vm640, %v2640, 0
      %2657 = vmatprep.subr.mxu0 0.0
      %2658 = vmatpush1.msra.mxu0 %v2642
      %2659 = vmatprep.subr.mxu0 0.0
      %2660 = vmatpush1.msra.mxu0 %v2643
      %2661 = vmatprep.subr.mxu0 0.0
      %2662 = vmatpush1.msra.mxu0 %v2644
      %2663 = vmatprep.subr.mxu0 0.0
      %2664 = vmatpush1.msra.mxu0 %v2645
      %2665 = vmatprep.subr.mxu0 0.0
      %2666 = vmatpush1.msra.mxu0 0.0
      %2667 = vmatprep.subr.mxu0 0.0
      %2668 = vmatpush1.msra.mxu0 0.0
      %2669 = vmatprep.subr.mxu0 0.0
      %2670 = vmatpush1.msra.mxu0 0.0
      %2671 = vmatprep.subr.mxu0 0.0
      %2672 = vmatpush1.msra.mxu0 0.0
      %2673 = vmatprep.subr.mxu0 0.0
      %2674 = vmatpush1.msra.mxu0 0.0
      %2675 = vmatprep.subr.mxu0 0.0
      %2676 = vmatpush1.msra.mxu0 0.0
      %2677 = vmatprep.subr.mxu0 0.0
      %2678 = vmatpush1.msra.mxu0 0.0
      %2679 = vmatprep.subr.mxu0 0.0
      %2680 = vmatpush1.msra.mxu0 0.0
      %2681 = vmatprep.subr.mxu0 0.0
      %2682 = vmatpush1.msra.mxu0 0.0
      %2683 = vmatprep.subr.mxu0 0.0
      %2684 = vmatpush1.msra.mxu0 0.0
      %2685 = vmatprep.subr.mxu0 0.0
      %2686 = vmatpush1.msra.mxu0 0.0
      %2687 = vmatprep.subr.mxu0 0.0
      %2688 = vmatpush1.msra.mxu0 0.0
      %2689 = vmatprep.subr.mxu0 0.0
      %2690 = vmatpush1.msra.mxu0 0.0
      %2691 = vmatprep.subr.mxu0 0.0
      %2692 = vmatpush1.msra.mxu0 0.0
      %2693 = vmatprep.subr.mxu0 0.0
      %2694 = vmatpush1.msra.mxu0 0.0
      %2695 = vmatprep.subr.mxu0 0.0
      %2696 = vmatpush1.msra.mxu0 0.0
      %2697 = vmatprep.subr.mxu0 0.0
      %2698 = vmatpush1.msra.mxu0 0.0
      %2699 = vmatprep.subr.mxu0 0.0
      %2700 = vmatpush1.msra.mxu0 0.0
      %2701 = vmatprep.subr.mxu0 0.0
      %2702 = vmatpush1.msra.mxu0 0.0
      %2703 = vmatprep.subr.mxu0 0.0
      %2704 = vmatpush1.msra.mxu0 0.0
      %2705 = vmatprep.subr.mxu0 0.0
      %2706 = vmatpush1.msra.mxu0 0.0
      %2707 = vmatprep.subr.mxu0 0.0
      %2708 = vmatpush1.msra.mxu0 0.0
      %2709 = vmatprep.subr.mxu0 0.0
      %2710 = vmatpush1.msra.mxu0 0.0
      %2711 = vmatprep.subr.mxu0 0.0
      %2712 = vmatpush1.msra.mxu0 0.0
      %2713 = vmatprep.subr.mxu0 0.0
      %2714 = vmatpush1.msra.mxu0 0.0
      %2715 = vmatprep.subr.mxu0 0.0
      %2716 = vmatpush1.msra.mxu0 0.0
      %2717 = vmatprep.subr.mxu0 0.0
      %2718 = vmatpush1.msra.mxu0 0.0
      %2719 = vmatprep.subr.mxu0 0.0
      %2720 = vmatpush1.msra.mxu0 0.0
      %2721 = vmatprep.mubr.f32.mxu0 0.0
      %2722 = vmatmul.mubr.f32.gmra.mrb[0].mxu0 %v2655
      %v2723 = vpop.f32.mrb[0].mxu0
      %v2724 = vadd.f32 %v2652, %v2723
      %v2725 = vpop.f32.mrb[0].mxu0
      %2726 = vdwg.mxu0
      %v2727 = vmul.f32 %v2724, 0.5
      %v2728 = vmul.f32 %v2724, 0.70710677
      %vm2729 = vcmp.ge.f32.partialorder %v2728, 0.0
      %v2730 = vsel %vm2729, 1.0, -1.0
      %v2731 = vand.u32 2147483647, %v2728
      %v2732 = vmul.f32 %v2731, 0.3275911
      %v2733 = vadd.f32 %v2732, 1.0
      %v2734 = vrcp.pop %v2733
      %v2735 = vmul.f32 1.0, %v2734
      %v2736 = vmul.f32 %v2735, 1.0614054
      %v2737 = vadd.f32 %v2736, -1.4531521
      %v2738 = vmul.f32 %v2737, %v2735
      %v2739 = vadd.f32 %v2738, 1.4214138
      %v2740 = vmul.f32 %v2739, %v2735
      %v2741 = vadd.f32 %v2740, -0.28449672
      %v2742 = vmul.f32 %v2741, %v2735
      %v2743 = vadd.f32 %v2742, 0.2548296
      %v2744 = vmul.f32 %v2743, %v2735
      %v2745 = vsub.f32 0.0, %v2731
      %v2746 = vmul.f32 %v2745, %v2731
      %v2747 = vmul.f32 %v2746, 1.442695
      %v2748 = vpow.pop %v2747
      %v2749 = vmul.f32 %v2744, %v2748
      %v2750 = vsub.f32 1.0, %v2749
      %v2751 = vmul.f32 %v2730, %v2750
      %v2752 = vadd.f32 %v2751, 1.0
      %v2753 = vmul.f32 %v2727, %v2752
      %s2754 = scalar_lea.vmem %s13, 128
      %v2755 = vld [vmem:[%s2754] sm:$0xff]
      %v2756 = vld [vmem:[%s2754 + $0x8] sm:$0xff]
      %v2757 = vld [vmem:[%s2754 + $0x10] sm:$0xff]
      %v2758 = vld [vmem:[%s2754 + $0x18] sm:$0xff]
      %v2759 = vld [vmem:[%s2754 + $0x20] sm:$0xff]
      %v2760 = vld [vmem:[%s2754 + $0x28] sm:$0xff]
      %v2761 = vld [vmem:[%s2754 + $0x30] sm:$0xff]
      %v2762 = vld [vmem:[%s2754 + $0x38] sm:$0xff]
      %v2763 = vld [vmem:[%s2754 + $0x40] sm:$0xff]
      %v2764 = vld [vmem:[%s2754 + $0x48] sm:$0xff]
      %v2765 = vld [vmem:[%s2754 + $0x50] sm:$0xff]
      %v2766 = vld [vmem:[%s2754 + $0x58] sm:$0xff]
      %v2767 = vld [vmem:[%s2754 + $0x60] sm:$0xff]
      %v2768 = vld [vmem:[%s2754 + $0x68] sm:$0xff]
      %v2769 = vld [vmem:[%s2754 + $0x70] sm:$0xff]
      %v2770 = vld [vmem:[%s2754 + $0x78] sm:$0xff]
      %2771 = vmatprep.subr.mxu0 0.0
      %2772 = vmatpush1.msra.mxu0 %v2755
      %2773 = vmatprep.subr.mxu0 0.0
      %2774 = vmatpush1.msra.mxu0 %v2756
      %2775 = vmatprep.subr.mxu0 0.0
      %2776 = vmatpush1.msra.mxu0 %v2757
      %2777 = vmatprep.subr.mxu0 0.0
      %2778 = vmatpush1.msra.mxu0 %v2758
      %2779 = vmatprep.subr.mxu0 0.0
      %2780 = vmatpush1.msra.mxu0 %v2759
      %2781 = vmatprep.subr.mxu0 0.0
      %2782 = vmatpush1.msra.mxu0 %v2760
      %2783 = vmatprep.subr.mxu0 0.0
      %2784 = vmatpush1.msra.mxu0 %v2761
      %2785 = vmatprep.subr.mxu0 0.0
      %2786 = vmatpush1.msra.mxu0 %v2762
      %2787 = vmatprep.subr.mxu0 0.0
      %2788 = vmatpush1.msra.mxu0 %v2763
      %2789 = vmatprep.subr.mxu0 0.0
      %2790 = vmatpush1.msra.mxu0 %v2764
      %2791 = vmatprep.subr.mxu0 0.0
      %2792 = vmatpush1.msra.mxu0 %v2765
      %2793 = vmatprep.subr.mxu0 0.0
      %2794 = vmatpush1.msra.mxu0 %v2766
      %2795 = vmatprep.subr.mxu0 0.0
      %2796 = vmatpush1.msra.mxu0 %v2767
      %2797 = vmatprep.subr.mxu0 0.0
      %2798 = vmatpush1.msra.mxu0 %v2768
      %2799 = vmatprep.subr.mxu0 0.0
      %2800 = vmatpush1.msra.mxu0 %v2769
      %2801 = vmatprep.subr.mxu0 0.0
      %2802 = vmatpush1.msra.mxu0 %v2770
      %2803 = vmatprep.subr.mxu0 0.0
      %2804 = vmatpush1.msra.mxu0 0.0
      %2805 = vmatprep.subr.mxu0 0.0
      %2806 = vmatpush1.msra.mxu0 0.0
      %2807 = vmatprep.subr.mxu0 0.0
      %2808 = vmatpush1.msra.mxu0 0.0
      %2809 = vmatprep.subr.mxu0 0.0
      %2810 = vmatpush1.msra.mxu0 0.0
      %2811 = vmatprep.subr.mxu0 0.0
      %2812 = vmatpush1.msra.mxu0 0.0
      %2813 = vmatprep.subr.mxu0 0.0
      %2814 = vmatpush1.msra.mxu0 0.0
      %2815 = vmatprep.subr.mxu0 0.0
      %2816 = vmatpush1.msra.mxu0 0.0
      %2817 = vmatprep.subr.mxu0 0.0
      %2818 = vmatpush1.msra.mxu0 0.0
      %2819 = vmatprep.subr.mxu0 0.0
      %2820 = vmatpush1.msra.mxu0 0.0
      %2821 = vmatprep.subr.mxu0 0.0
      %2822 = vmatpush1.msra.mxu0 0.0
      %2823 = vmatprep.subr.mxu0 0.0
      %2824 = vmatpush1.msra.mxu0 0.0
      %2825 = vmatprep.subr.mxu0 0.0
      %2826 = vmatpush1.msra.mxu0 0.0
      %2827 = vmatprep.subr.mxu0 0.0
      %2828 = vmatpush1.msra.mxu0 0.0
      %2829 = vmatprep.subr.mxu0 0.0
      %2830 = vmatpush1.msra.mxu0 0.0
      %2831 = vmatprep.subr.mxu0 0.0
      %2832 = vmatpush1.msra.mxu0 0.0
      %2833 = vmatprep.subr.mxu0 0.0
      %2834 = vmatpush1.msra.mxu0 0.0
      %2835 = vmatprep.mubr.f32.mxu0 0.0
      %2836 = vmatmul.mubr.f32.gmra.mrb[0].mxu0 %v2753
      %v2837 = vpop.f32.mrb[0].mxu0
      %v2838 = vadd.f32 0.0, %v2837
      %v2839 = vpop.f32.mrb[0].mxu0
      %2840 = vdwg.mxu0
      %v2841 = vadd.f32 %v2609, %v2838
      %s2842 = scalar_lea.vmem %s14, 1
      %v2843 = vld [vmem:[%s2842] sm:$0x1]
      %v2845 = vlaneseq
      %v2846 = vshrl.u32 %v2845, 7
      %v2847 = vsub.s32 0, %v2846
      %v2848 = vrot.slane %v2843, %v2847
      %v2850 = vadd.f32 %v2841, %v2848
      %2851 = vst.msk [vmem:[%s492] sm:$0x1f] %vm600, %v2850
      %p2852 = scmp.lt.s32.totalorder %s26, 1
      %s2853 = scalar_select %p2852, %s26, 1
      %s2854 = smul.addr %s2853, 8
      %s2855 = scalar_lea.vmem %s15, %s2854
      // Predicated region
      $region81: #{tpu_custom_call.1} parent=79 // pred_check
        %p2856 = pneg %p364
      $region82: #{tpu_custom_call.1} parent=79 // pred_check_branch
        %2858 = sbr.rel (%p2856) target = $region84
      $region83: #{tpu_custom_call.1} parent=79 // pred_region
        _
      $region84: #{tpu_custom_call.1} parent=79 // pred_fallthru
        _
    $region80: #{tpu_custom_call.1} parent=5 // pred_fallthru
      _
    %p2859 = scmp.le.s32.totalorder 2, %s21
    // Predicated region
    $region85: #{tpu_custom_call.1} parent=5 // pred_check
      %p2860 = pneg %p2859
    $region86: #{tpu_custom_call.1} parent=5 // pred_check_branch
      %2862 = sbr.rel (%p2860) target = $region88
    $region87: #{tpu_custom_call.1} parent=5 // pred_region
      %s2863 = ssub.s32 %s21, 2
      // Predicated region
      $region89: #{tpu_custom_call.1} parent=87 // pred_check
        %p2864 = pneg %p370
      $region90: #{tpu_custom_call.1} parent=87 // pred_check_branch
        %2866 = sbr.rel (%p2864) target = $region92
      $region91: #{tpu_custom_call.1} parent=87 // pred_region
        %p2867 = scmp.lt.s32.totalorder %s27, 1
        %s2868 = scalar_select %p2867, %s27, 1
        %s2869 = smul.addr %s2868, 8
        %s2870 = scalar_lea.vmem %s15, %s2869
      $region92: #{tpu_custom_call.1} parent=87 // pred_fallthru
        _
    $region88: #{tpu_custom_call.1} parent=5 // pred_fallthru
      _
  $region6: #{tpu_custom_call.1} parent=0 // loop_footer
    %s25 = sadd.s32 1, %s21
  $region7: #{tpu_custom_call.1} parent=0 // loop_footer_branch
    %20 = sbr.rel target = $region3
  $region8: #{tpu_custom_call.1} parent=0 // loop_exit
    _

</llo_original>
